<compile_context>
chip_gen: v6e
topology: v6e:2x2x1
jax: 0.10.0
libtpu: 0.0.40
codegen_flags: <defaults>
</compile_context>

<pallas_src>
from functools import partial

import jax
import jax.numpy as jnp
from jax.experimental import pallas as pl
from jax.experimental.pallas import tpu as pltpu

S_VALS = (-3.0, -1.0, 1.0, 3.0)  # PAM-4 constellation, same as the torch module
_LANE = 128


def _round_up(x, m):
    return ((x + m - 1) // m) * m


def ms_kernel(pre_ref, h_ref, y_ref, coef_ref, scal_ref, p1_ref, gamma_ref):
    """One batch tile.

    Layouts: pre/p1 (4, R, C, TB), h (R, C, TB), y (R, 1, TB),
    coef (R, C, 1) = (1 - damp) * lamb, gamma out (3, C, TB) -- planes s=-1,1,3
    (the s=-3 plane is identically 0 and added in the wrapper).
    TB is the lane axis; C sits in sublanes.
    """
    damp = scal_ref[0]          # damping parameter (scalar, SMEM)
    nvar = scal_ref[1]          # noise variance    (scalar, SMEM)

    h = h_ref[...]              # (R, C, TB)
    yv = y_ref[...]             # (R, 1, TB)
    # Hoisted lane broadcast of (1-damp)*lamb: done once, reused for 4 planes.
    coef_b = jnp.broadcast_to(coef_ref[...], h.shape)          # (R, C, TB)

    pre0 = pre_ref[0]           # (R, C, TB)  constellation plane s = -3
    pre1 = pre_ref[1]           #                                 s = -1
    pre2 = pre_ref[2]           #                                 s = +1
    pre3 = pre_ref[3]           #                                 s = +3

    eps = 1e-12                 # F.normalize clamp_min eps
    # P = F.normalize(Pre_P, p=1, dim=3): L1-normalize over the 4 planes.
    norm1 = jnp.maximum(jnp.abs(pre0) + jnp.abs(pre1) + jnp.abs(pre2) + jnp.abs(pre3),
                        eps)
    inv_n = pl.reciprocal(norm1)         # exact; 1 recip + 4 muls instead of 4 divides
    P0 = pre0 * inv_n
    P1 = pre1 * inv_n
    P2 = pre2 * inv_n
    P3 = pre3 * inv_n

    # P @ s and P @ s^2 via PAM-4 symmetry (fewer VPU ops / temporaries):
    #   s = (-3,-1,1,3)  ->  ps = 3*(P3-P0) + (P2-P1),  pss = 9*(P0+P3) + (P1+P2)
    ps = 3.0 * (P3 - P0) + (P2 - P1)                           # (R, C, TB)
    pss = 9.0 * (P0 + P3) + (P1 + P2)

    hps = h * ps
    mean_z = jnp.sum(hps, axis=1, keepdims=True) - hps          # sum over C (sublanes)
    h2 = h * h
    vcore = h2 * (pss - ps * ps)
    var_z = jnp.sum(vcore, axis=1, keepdims=True) - vcore + nvar  # (R, C, TB) > 0

    # beta_k = (2 H (y - mean_z)(s_k - s_0) - H^2 (s_k^2 - s_0^2)) / (2 var_z)
    # With s0 = -3:  (s_k - s0) = (0,2,4,6),  (s_k^2 - s0^2) = (0,-8,-8,0)
    #   beta1 = t2 + u4, beta2 = beta1 + t2, beta3 = 3*t2
    # where t2 = 2 H (y - mean_z) / var_z,  u4 = 4 H^2 / var_z.
    inv_v = pl.reciprocal(var_z)
    dlt = yv - mean_z                                           # (R, C, TB)
    t2 = 2.0 * (h * dlt) * inv_v
    u4 = 4.0 * h2 * inv_v
    beta1 = t2 + u4
    beta2 = beta1 + t2
    beta3 = 3.0 * t2

    gamma1 = jnp.sum(beta1, axis=0)      # sum over R -> (C, TB); gamma_0 == 0
    gamma2 = jnp.sum(beta2, axis=0)
    gamma3 = jnp.sum(beta3, axis=0)

    alpha1 = gamma1[None] - beta1        # (R, C, TB); alpha_0 == 0
    alpha2 = gamma2[None] - beta2
    alpha3 = gamma3[None] - beta3

    amax = jnp.maximum(jnp.maximum(alpha1, alpha2), jnp.maximum(alpha3, 0.0))

    # P1 = (1 - damp) * lamb * exp(alpha - amax) + damp * P
    p1_ref[0] = coef_b * jnp.exp(-amax) + damp * P0             # alpha_0 == 0
    p1_ref[1] = coef_b * jnp.exp(alpha1 - amax) + damp * P1
    p1_ref[2] = coef_b * jnp.exp(alpha2 - amax) + damp * P2
    p1_ref[3] = coef_b * jnp.exp(alpha3 - amax) + damp * P3

    gamma_ref[0] = gamma1               # plane s = -1 (s = -3 plane is 0, wrapper adds it)
    gamma_ref[1] = gamma2               # plane s = +1
    gamma_ref[2] = gamma3               # plane s = +3


@partial(jax.jit, static_argnames=("tb_max", "vmem_budget_bytes"))
def ms_layer_forward(y, H, Pre_P, noise_var, damp_scalar, lamb, *,
                     tb_max=512, vmem_budget_bytes=40 * 1024 * 1024):
    """Pallas implementation of MS_layer.forward.

    y: (B, 2N, 1), H: (B, 2N, 2M), Pre_P: (B, 2N, 2M, 4),
    noise_var: scalar (> 0; padded batch lanes rely on it), damp_scalar: scalar,
    lamb: (1, 2N, 2M, 1).
    Returns (P1: (B,2N,2M,4), gamma: (B,1,2M,4)) exactly like the torch module.
    """
    B, R, C, K = Pre_P.shape
    assert K == 4 and lamb.shape == (1, R, C, 1)
    f32 = jnp.float32

    # ---- batch-tile selection (lane axis), driven by a VMEM byte budget -----
    # Per lane: double-buffered I/O blocks (Pre_P + P1: 2*4*R*C, H: R*C, y: R,
    # gamma: 3*C) plus ~14 live (R, C, tb) f32 temporaries inside the body.
    io_per_lane = 4 * (2 * (4 * R * C) + R * C + R + 3 * C)
    tmp_per_lane = 4 * 14 * R * C
    per_lane = 2 * io_per_lane + tmp_per_lane
    tb_budget = max(_LANE, (vmem_budget_bytes // per_lane) // _LANE * _LANE)

    Bl = _round_up(B, _LANE)
    tb = min(tb_budget, _round_up(tb_max, _LANE), Bl)
    # v7x megacore: keep >= 2 grid steps whenever the batch allows it so the
    # "parallel" batch axis can shard across both TensorCores.
    if Bl >= 2 * _LANE:
        tb = min(tb, max(_LANE, (Bl // 2) // _LANE * _LANE))

    Bp = _round_up(B, tb)
    pad = Bp - B
    if pad:
        # Zero padding is numerically safe as long as noise_var > 0:
        # padded lanes give P = 0 and var_z = noise_var.
        Pre_P = jnp.pad(Pre_P, ((0, pad), (0, 0), (0, 0), (0, 0)))
        H = jnp.pad(H, ((0, pad), (0, 0), (0, 0)))
        y = jnp.pad(y, ((0, pad), (0, 0), (0, 0)))

    # Lane-dense kernel layout: batch in the last (lane) axis.
    # (cast + transpose in one expression so XLA fuses them into a single copy)
    pre_t = jnp.transpose(Pre_P.astype(f32), (3, 1, 2, 0))     # (4, R, C, Bp)
    h_t = jnp.transpose(H.astype(f32), (1, 2, 0))              # (R, C, Bp)
    y_t = jnp.transpose(y.astype(f32), (1, 2, 0))              # (R, 1, Bp)

    d = jnp.asarray(damp_scalar, f32).reshape(())
    nv = jnp.asarray(noise_var, f32).reshape(())
    coef = ((1.0 - d) * lamb[0]).astype(f32)                   # (R, C, 1)
    scal = jnp.stack([d, nv])                                  # (2,) -> SMEM

    grid = (Bp // tb,)
    p1_t, gamma_t = pl.pallas_call(
        ms_kernel,
        out_shape=(jax.ShapeDtypeStruct((4, R, C, Bp), f32),
                   jax.ShapeDtypeStruct((3, C, Bp), f32)),
        grid=grid,
        in_specs=[
            pl.BlockSpec((4, R, C, tb), lambda b: (0, 0, 0, b)),   # Pre_P (planes)
            pl.BlockSpec((R, C, tb), lambda b: (0, 0, b)),         # H
            pl.BlockSpec((R, 1, tb), lambda b: (0, 0, b)),         # y
            pl.BlockSpec((R, C, 1), lambda b: (0, 0, 0)),          # (1-damp)*lamb
            pl.BlockSpec(memory_space=pltpu.MemorySpace.SMEM),     # [damp, noise_var]
        ],
        out_specs=(
            pl.BlockSpec((4, R, C, tb), lambda b: (0, 0, 0, b)),   # P1 (planes)
            pl.BlockSpec((3, C, tb), lambda b: (0, 0, b)),         # gamma (planes 1..3)
        ),
        compiler_params=pltpu.CompilerParams(
            dimension_semantics=("parallel",),
            # 48 MiB: fits the 64 MiB VMEM on v7x, with headroom on v5e/v6e.
            vmem_limit_bytes=48 * 1024 * 1024,
        ),
    )(pre_t, h_t, y_t, coef, scal)

    P1 = jnp.transpose(p1_t, (3, 1, 2, 0))[:B]                  # (B, 2N, 2M, 4)
    g = jnp.transpose(gamma_t, (2, 1, 0))[:B]                   # (B, 2M, 3)
    gamma = jnp.concatenate([jnp.zeros((B, C, 1), f32), g], axis=-1)[:, None, :, :]
    return P1, gamma


def ms_layer_ref(y, H, Pre_P, noise_var, damp, lamb):
    """Pure-JAX mirror of the torch forward, for verification."""
    s = jnp.array(S_VALS, dtype=jnp.float32)
    norm = jnp.maximum(jnp.sum(jnp.abs(Pre_P), axis=3, keepdims=True), 1e-12)
    P = Pre_P / norm
    Ps = P @ s
    Pss = P @ (s * s)
    mean_z = jnp.sum(H * Ps, axis=2, keepdims=True) - H * Ps
    var_core = H ** 2 * (Pss - Ps ** 2)
    var_z = jnp.sum(var_core, axis=2, keepdims=True) - var_core + noise_var
    beta = ((2.0 * H * (y - mean_z))[..., None] * (s - s[0])[None, None, None, :]
            - (H ** 2)[..., None] * (s ** 2 - s[0] ** 2)[None, None, None, :]
            ) / (2.0 * var_z[..., None])
    gamma = jnp.sum(beta, axis=1, keepdims=True)
    alpha = gamma - beta
    Post_P = jnp.exp(alpha - jnp.max(alpha, axis=3, keepdims=True))
    P1 = (1.0 - damp) * lamb * Post_P + damp * P
    return P1, gamma


if __name__ == "__main__":
    key = jax.random.PRNGKey(0)
    M, N, B = 8, 8, 200               # module constructor args M, N; batch B
    R, C = 2 * N, 2 * M               # rows = 2N, cols = 2M

    k1, k2, k3 = jax.random.split(key, 3)
    H = jax.random.normal(k1, (B, R, C), dtype=jnp.float32)
    Pre_P = jax.random.uniform(k2, (B, R, C, 4), dtype=jnp.float32,
                               minval=0.05, maxval=1.0)
    y = jax.random.normal(k3, (B, R, 1), dtype=jnp.float32)
    noise_var = jnp.float32(0.1)

    # Deterministic parameter init, exactly as the module's __init__:
    damp = jnp.full((1, 1, 1, 1), 0.5, dtype=jnp.float32)
    lamb = jnp.full((1, R, C, 1), 0.5, dtype=jnp.float32)

    # B=200 -> tb=128, 2 grid steps (exercises tiling, padding and megacore split).
    P1, gamma = ms_layer_forward(y, H, Pre_P, noise_var, damp[0, 0, 0, 0], lamb)
    jax.block_until_ready((P1, gamma))

    P1_ref, gamma_ref = ms_layer_ref(y, H, Pre_P, noise_var, damp, lamb)
    assert P1.shape == (B, R, C, 4) and gamma.shape == (B, 1, C, 4)
    # f32 reassociation (different reduction order / layout) bounds the tolerance.
    assert jnp.allclose(P1, P1_ref, atol=1e-4, rtol=1e-4), \
        float(jnp.max(jnp.abs(P1 - P1_ref)))
    assert jnp.allclose(gamma, gamma_ref, atol=1e-3, rtol=1e-3), \
        float(jnp.max(jnp.abs(gamma - gamma_ref)))

    print("KERNEL_OK")
</pallas_src>

<mosaic_0001>
module attributes {stable_mosaic.version = 11 : i64} {
  func.func @ms_kernel(%arg0: i32, %arg1: memref<4x16x16x128xf32, #tpu.memory_space<vmem>>, %arg2: memref<16x16x128xf32, #tpu.memory_space<vmem>>, %arg3: memref<16x1x128xf32, #tpu.memory_space<vmem>>, %arg4: memref<16x16x1xf32, #tpu.memory_space<vmem>>, %arg5: memref<2xf32, #tpu.memory_space<smem>>, %arg6: memref<4x16x16x128xf32, #tpu.memory_space<vmem>>, %arg7: memref<3x16x128xf32, #tpu.memory_space<vmem>>) attributes {dimension_semantics = [#tpu.dimension_semantics<parallel>], iteration_bounds = array<i64: 2>, scalar_prefetch = 0 : i64, scratch_operands = 0 : i64, tpu.core_type = #tpu.core_type<tc>, window_params = [{transform_indices = @transform_0, window_bounds = array<i64: 4, 16, 16, 128>}, {transform_indices = @transform_1, window_bounds = array<i64: 16, 16, 128>}, {transform_indices = @transform_2, window_bounds = array<i64: 16, 1, 128>}, {pipeline_mode = #tpu.pipeline_mode<synchronous>, transform_indices = @transform_3, window_bounds = array<i64: 16, 16, 1>}, {transform_indices = @transform_4, window_bounds = array<i64: 2>}, {transform_indices = @transform_5, window_bounds = array<i64: 4, 16, 16, 128>}, {transform_indices = @transform_6, window_bounds = array<i64: 3, 16, 128>}]} {
    %c0 = arith.constant 0 : index
    %0 = memref.load %arg5[%c0] : memref<2xf32, #tpu.memory_space<smem>>
    %c1 = arith.constant 1 : index
    %1 = memref.load %arg5[%c1] : memref<2xf32, #tpu.memory_space<smem>>
    %c0_0 = arith.constant 0 : index
    %c0_1 = arith.constant 0 : index
    %c0_2 = arith.constant 0 : index
    %2 = vector.load %arg2[%c0_0, %c0_1, %c0_2] : memref<16x16x128xf32, #tpu.memory_space<vmem>>, vector<16x16x128xf32>
    %c0_3 = arith.constant 0 : index
    %c0_4 = arith.constant 0 : index
    %c0_5 = arith.constant 0 : index
    %3 = vector.load %arg3[%c0_3, %c0_4, %c0_5] : memref<16x1x128xf32, #tpu.memory_space<vmem>>, vector<16x1x128xf32>
    %c0_6 = arith.constant 0 : index
    %c0_7 = arith.constant 0 : index
    %c0_8 = arith.constant 0 : index
    %4 = vector.load %arg4[%c0_6, %c0_7, %c0_8] : memref<16x16x1xf32, #tpu.memory_space<vmem>>, vector<16x16x1xf32>
    %5 = vector.shape_cast %4 : vector<16x16x1xf32> to vector<16x16x1xf32>
    %6 = vector.broadcast %5 : vector<16x16x1xf32> to vector<16x16x128xf32>
    %c0_9 = arith.constant 0 : index
    %c0_10 = arith.constant 0 : index
    %c0_11 = arith.constant 0 : index
    %c0_12 = arith.constant 0 : index
    %7 = vector.load %arg1[%c0_9, %c0_10, %c0_11, %c0_12] : memref<4x16x16x128xf32, #tpu.memory_space<vmem>>, vector<1x16x16x128xf32>
    %8 = vector.shape_cast %7 : vector<1x16x16x128xf32> to vector<16x16x128xf32>
    %c1_13 = arith.constant 1 : index
    %c0_14 = arith.constant 0 : index
    %c0_15 = arith.constant 0 : index
    %c0_16 = arith.constant 0 : index
    %9 = vector.load %arg1[%c1_13, %c0_14, %c0_15, %c0_16] : memref<4x16x16x128xf32, #tpu.memory_space<vmem>>, vector<1x16x16x128xf32>
    %10 = vector.shape_cast %9 : vector<1x16x16x128xf32> to vector<16x16x128xf32>
    %c2 = arith.constant 2 : index
    %c0_17 = arith.constant 0 : index
    %c0_18 = arith.constant 0 : index
    %c0_19 = arith.constant 0 : index
    %11 = vector.load %arg1[%c2, %c0_17, %c0_18, %c0_19] : memref<4x16x16x128xf32, #tpu.memory_space<vmem>>, vector<1x16x16x128xf32>
    %12 = vector.shape_cast %11 : vector<1x16x16x128xf32> to vector<16x16x128xf32>
    %c3 = arith.constant 3 : index
    %c0_20 = arith.constant 0 : index
    %c0_21 = arith.constant 0 : index
    %c0_22 = arith.constant 0 : index
    %13 = vector.load %arg1[%c3, %c0_20, %c0_21, %c0_22] : memref<4x16x16x128xf32, #tpu.memory_space<vmem>>, vector<1x16x16x128xf32>
    %14 = vector.shape_cast %13 : vector<1x16x16x128xf32> to vector<16x16x128xf32>
    %15 = math.absf %8 : vector<16x16x128xf32>
    %16 = math.absf %10 : vector<16x16x128xf32>
    %17 = arith.addf %15, %16 : vector<16x16x128xf32>
    %18 = math.absf %12 : vector<16x16x128xf32>
    %19 = arith.addf %17, %18 : vector<16x16x128xf32>
    %20 = math.absf %14 : vector<16x16x128xf32>
    %21 = arith.addf %19, %20 : vector<16x16x128xf32>
    %cst = arith.constant 9.99999996E-13 : f32
    %22 = vector.broadcast %cst : f32 to vector<16x16x128xf32>
    %23 = arith.maximumf %21, %22 : vector<16x16x128xf32>
    %24 = tpu.reciprocal %23 : vector<16x16x128xf32> -> vector<16x16x128xf32>
    %25 = arith.mulf %8, %24 : vector<16x16x128xf32>
    %26 = arith.mulf %10, %24 : vector<16x16x128xf32>
    %27 = arith.mulf %12, %24 : vector<16x16x128xf32>
    %28 = arith.mulf %14, %24 : vector<16x16x128xf32>
    %29 = arith.subf %28, %25 : vector<16x16x128xf32>
    %cst_23 = arith.constant 3.000000e+00 : f32
    %30 = vector.broadcast %cst_23 : f32 to vector<16x16x128xf32>
    %31 = arith.mulf %30, %29 : vector<16x16x128xf32>
    %32 = arith.subf %27, %26 : vector<16x16x128xf32>
    %33 = arith.addf %31, %32 : vector<16x16x128xf32>
    %34 = arith.addf %25, %28 : vector<16x16x128xf32>
    %cst_24 = arith.constant 9.000000e+00 : f32
    %35 = vector.broadcast %cst_24 : f32 to vector<16x16x128xf32>
    %36 = arith.mulf %35, %34 : vector<16x16x128xf32>
    %37 = arith.addf %26, %27 : vector<16x16x128xf32>
    %38 = arith.addf %36, %37 : vector<16x16x128xf32>
    %39 = arith.mulf %2, %33 : vector<16x16x128xf32>
    %cst_25 = arith.constant dense<0.000000e+00> : vector<16x128xf32>
    %40 = vector.multi_reduction <add>, %39, %cst_25 [1] : vector<16x16x128xf32> to vector<16x128xf32>
    %41 = vector.shape_cast %40 : vector<16x128xf32> to vector<16x1x128xf32>
    %42 = vector.broadcast %41 : vector<16x1x128xf32> to vector<16x16x128xf32>
    %43 = arith.subf %42, %39 : vector<16x16x128xf32>
    %44 = arith.mulf %2, %2 : vector<16x16x128xf32>
    %45 = arith.mulf %33, %33 : vector<16x16x128xf32>
    %46 = arith.subf %38, %45 : vector<16x16x128xf32>
    %47 = arith.mulf %44, %46 : vector<16x16x128xf32>
    %cst_26 = arith.constant dense<0.000000e+00> : vector<16x128xf32>
    %48 = vector.multi_reduction <add>, %47, %cst_26 [1] : vector<16x16x128xf32> to vector<16x128xf32>
    %49 = vector.shape_cast %48 : vector<16x128xf32> to vector<16x1x128xf32>
    %50 = vector.broadcast %49 : vector<16x1x128xf32> to vector<16x16x128xf32>
    %51 = arith.subf %50, %47 : vector<16x16x128xf32>
    %52 = vector.broadcast %1 : f32 to vector<16x16x128xf32>
    %53 = arith.addf %51, %52 : vector<16x16x128xf32>
    %54 = tpu.reciprocal %53 : vector<16x16x128xf32> -> vector<16x16x128xf32>
    %55 = vector.broadcast %3 : vector<16x1x128xf32> to vector<16x16x128xf32>
    %56 = arith.subf %55, %43 : vector<16x16x128xf32>
    %57 = arith.mulf %2, %56 : vector<16x16x128xf32>
    %cst_27 = arith.constant 2.000000e+00 : f32
    %58 = vector.broadcast %cst_27 : f32 to vector<16x16x128xf32>
    %59 = arith.mulf %58, %57 : vector<16x16x128xf32>
    %60 = arith.mulf %59, %54 : vector<16x16x128xf32>
    %cst_28 = arith.constant 4.000000e+00 : f32
    %61 = vector.broadcast %cst_28 : f32 to vector<16x16x128xf32>
    %62 = arith.mulf %61, %44 : vector<16x16x128xf32>
    %63 = arith.mulf %62, %54 : vector<16x16x128xf32>
    %64 = arith.addf %60, %63 : vector<16x16x128xf32>
    %65 = arith.addf %64, %60 : vector<16x16x128xf32>
    %cst_29 = arith.constant 3.000000e+00 : f32
    %66 = vector.broadcast %cst_29 : f32 to vector<16x16x128xf32>
    %67 = arith.mulf %66, %60 : vector<16x16x128xf32>
    %cst_30 = arith.constant dense<0.000000e+00> : vector<16x128xf32>
    %68 = vector.multi_reduction <add>, %64, %cst_30 [0] : vector<16x16x128xf32> to vector<16x128xf32>
    %cst_31 = arith.constant dense<0.000000e+00> : vector<16x128xf32>
    %69 = vector.multi_reduction <add>, %65, %cst_31 [0] : vector<16x16x128xf32> to vector<16x128xf32>
    %cst_32 = arith.constant dense<0.000000e+00> : vector<16x128xf32>
    %70 = vector.multi_reduction <add>, %67, %cst_32 [0] : vector<16x16x128xf32> to vector<16x128xf32>
    %71 = vector.shape_cast %68 : vector<16x128xf32> to vector<1x16x128xf32>
    %72 = vector.broadcast %71 : vector<1x16x128xf32> to vector<16x16x128xf32>
    %73 = arith.subf %72, %64 : vector<16x16x128xf32>
    %74 = vector.shape_cast %69 : vector<16x128xf32> to vector<1x16x128xf32>
    %75 = vector.broadcast %74 : vector<1x16x128xf32> to vector<16x16x128xf32>
    %76 = arith.subf %75, %65 : vector<16x16x128xf32>
    %77 = vector.shape_cast %70 : vector<16x128xf32> to vector<1x16x128xf32>
    %78 = vector.broadcast %77 : vector<1x16x128xf32> to vector<16x16x128xf32>
    %79 = arith.subf %78, %67 : vector<16x16x128xf32>
    %80 = arith.maximumf %73, %76 : vector<16x16x128xf32>
    %cst_33 = arith.constant 0.000000e+00 : f32
    %81 = vector.broadcast %cst_33 : f32 to vector<16x16x128xf32>
    %82 = arith.maximumf %79, %81 : vector<16x16x128xf32>
    %83 = arith.maximumf %80, %82 : vector<16x16x128xf32>
    %cst_34 = arith.constant 0.000000e+00 : f32
    %84 = vector.broadcast %cst_34 : f32 to vector<16x16x128xf32>
    %85 = arith.subf %84, %83 : vector<16x16x128xf32>
    %86 = math.exp %85 : vector<16x16x128xf32>
    %87 = arith.mulf %6, %86 : vector<16x16x128xf32>
    %88 = vector.broadcast %0 : f32 to vector<16x16x128xf32>
    %89 = arith.mulf %88, %25 : vector<16x16x128xf32>
    %90 = arith.addf %87, %89 : vector<16x16x128xf32>
    %c0_35 = arith.constant 0 : index
    %c0_36 = arith.constant 0 : index
    %c0_37 = arith.constant 0 : index
    %c0_38 = arith.constant 0 : index
    %91 = vector.load %arg6[%c0_35, %c0_36, %c0_37, %c0_38] : memref<4x16x16x128xf32, #tpu.memory_space<vmem>>, vector<1x16x16x128xf32>
    %92 = vector.shape_cast %91 : vector<1x16x16x128xf32> to vector<16x16x128xf32>
    %93 = vector.shape_cast %90 : vector<16x16x128xf32> to vector<1x16x16x128xf32>
    tpu.vector_store %arg6[%c0_35, %c0_36, %c0_37, %c0_38], %93 {strides = array<i32>} : memref<4x16x16x128xf32, #tpu.memory_space<vmem>>, vector<1x16x16x128xf32>,
    %94 = arith.subf %73, %83 : vector<16x16x128xf32>
    %95 = math.exp %94 : vector<16x16x128xf32>
    %96 = arith.mulf %6, %95 : vector<16x16x128xf32>
    %97 = vector.broadcast %0 : f32 to vector<16x16x128xf32>
    %98 = arith.mulf %97, %26 : vector<16x16x128xf32>
    %99 = arith.addf %96, %98 : vector<16x16x128xf32>
    %c1_39 = arith.constant 1 : index
    %c0_40 = arith.constant 0 : index
    %c0_41 = arith.constant 0 : index
    %c0_42 = arith.constant 0 : index
    %100 = vector.load %arg6[%c1_39, %c0_40, %c0_41, %c0_42] : memref<4x16x16x128xf32, #tpu.memory_space<vmem>>, vector<1x16x16x128xf32>
    %101 = vector.shape_cast %100 : vector<1x16x16x128xf32> to vector<16x16x128xf32>
    %102 = vector.shape_cast %99 : vector<16x16x128xf32> to vector<1x16x16x128xf32>
    tpu.vector_store %arg6[%c1_39, %c0_40, %c0_41, %c0_42], %102 {strides = array<i32>} : memref<4x16x16x128xf32, #tpu.memory_space<vmem>>, vector<1x16x16x128xf32>,
    %103 = arith.subf %76, %83 : vector<16x16x128xf32>
    %104 = math.exp %103 : vector<16x16x128xf32>
    %105 = arith.mulf %6, %104 : vector<16x16x128xf32>
    %106 = vector.broadcast %0 : f32 to vector<16x16x128xf32>
    %107 = arith.mulf %106, %27 : vector<16x16x128xf32>
    %108 = arith.addf %105, %107 : vector<16x16x128xf32>
    %c2_43 = arith.constant 2 : index
    %c0_44 = arith.constant 0 : index
    %c0_45 = arith.constant 0 : index
    %c0_46 = arith.constant 0 : index
    %109 = vector.load %arg6[%c2_43, %c0_44, %c0_45, %c0_46] : memref<4x16x16x128xf32, #tpu.memory_space<vmem>>, vector<1x16x16x128xf32>
    %110 = vector.shape_cast %109 : vector<1x16x16x128xf32> to vector<16x16x128xf32>
    %111 = vector.shape_cast %108 : vector<16x16x128xf32> to vector<1x16x16x128xf32>
    tpu.vector_store %arg6[%c2_43, %c0_44, %c0_45, %c0_46], %111 {strides = array<i32>} : memref<4x16x16x128xf32, #tpu.memory_space<vmem>>, vector<1x16x16x128xf32>,
    %112 = arith.subf %79, %83 : vector<16x16x128xf32>
    %113 = math.exp %112 : vector<16x16x128xf32>
    %114 = arith.mulf %6, %113 : vector<16x16x128xf32>
    %115 = vector.broadcast %0 : f32 to vector<16x16x128xf32>
    %116 = arith.mulf %115, %28 : vector<16x16x128xf32>
    %117 = arith.addf %114, %116 : vector<16x16x128xf32>
    %c3_47 = arith.constant 3 : index
    %c0_48 = arith.constant 0 : index
    %c0_49 = arith.constant 0 : index
    %c0_50 = arith.constant 0 : index
    %118 = vector.load %arg6[%c3_47, %c0_48, %c0_49, %c0_50] : memref<4x16x16x128xf32, #tpu.memory_space<vmem>>, vector<1x16x16x128xf32>
    %119 = vector.shape_cast %118 : vector<1x16x16x128xf32> to vector<16x16x128xf32>
    %120 = vector.shape_cast %117 : vector<16x16x128xf32> to vector<1x16x16x128xf32>
    tpu.vector_store %arg6[%c3_47, %c0_48, %c0_49, %c0_50], %120 {strides = array<i32>} : memref<4x16x16x128xf32, #tpu.memory_space<vmem>>, vector<1x16x16x128xf32>,
    %c0_51 = arith.constant 0 : index
    %c0_52 = arith.constant 0 : index
    %c0_53 = arith.constant 0 : index
    %121 = vector.load %arg7[%c0_51, %c0_52, %c0_53] : memref<3x16x128xf32, #tpu.memory_space<vmem>>, vector<1x16x128xf32>
    %122 = vector.shape_cast %121 : vector<1x16x128xf32> to vector<16x128xf32>
    %123 = vector.shape_cast %68 : vector<16x128xf32> to vector<1x16x128xf32>
    tpu.vector_store %arg7[%c0_51, %c0_52, %c0_53], %123 {strides = array<i32>} : memref<3x16x128xf32, #tpu.memory_space<vmem>>, vector<1x16x128xf32>,
    %c1_54 = arith.constant 1 : index
    %c0_55 = arith.constant 0 : index
    %c0_56 = arith.constant 0 : index
    %124 = vector.load %arg7[%c1_54, %c0_55, %c0_56] : memref<3x16x128xf32, #tpu.memory_space<vmem>>, vector<1x16x128xf32>
    %125 = vector.shape_cast %124 : vector<1x16x128xf32> to vector<16x128xf32>
    %126 = vector.shape_cast %69 : vector<16x128xf32> to vector<1x16x128xf32>
    tpu.vector_store %arg7[%c1_54, %c0_55, %c0_56], %126 {strides = array<i32>} : memref<3x16x128xf32, #tpu.memory_space<vmem>>, vector<1x16x128xf32>,
    %c2_57 = arith.constant 2 : index
    %c0_58 = arith.constant 0 : index
    %c0_59 = arith.constant 0 : index
    %127 = vector.load %arg7[%c2_57, %c0_58, %c0_59] : memref<3x16x128xf32, #tpu.memory_space<vmem>>, vector<1x16x128xf32>
    %128 = vector.shape_cast %127 : vector<1x16x128xf32> to vector<16x128xf32>
    %129 = vector.shape_cast %70 : vector<16x128xf32> to vector<1x16x128xf32>
    tpu.vector_store %arg7[%c2_57, %c0_58, %c0_59], %129 {strides = array<i32>} : memref<3x16x128xf32, #tpu.memory_space<vmem>>, vector<1x16x128xf32>,
    return
  }
  func.func @transform_0(%arg0: i32) -> (i32, i32, i32, i32) {
    %c0_i32 = arith.constant 0 : i32
    %c0_i32_0 = arith.constant 0 : i32
    %c0_i32_1 = arith.constant 0 : i32
    %c0_i32_2 = arith.constant 0 : i32
    return %c0_i32, %c0_i32_0, %c0_i32_1, %arg0 : i32, i32, i32, i32
  }
  func.func @transform_1(%arg0: i32) -> (i32, i32, i32) {
    %c0_i32 = arith.constant 0 : i32
    %c0_i32_0 = arith.constant 0 : i32
    %c0_i32_1 = arith.constant 0 : i32
    return %c0_i32, %c0_i32_0, %arg0 : i32, i32, i32
  }
  func.func @transform_2(%arg0: i32) -> (i32, i32, i32) {
    %c0_i32 = arith.constant 0 : i32
    %c0_i32_0 = arith.constant 0 : i32
    %c0_i32_1 = arith.constant 0 : i32
    return %c0_i32, %c0_i32_0, %arg0 : i32, i32, i32
  }
  func.func @transform_3(%arg0: i32) -> (i32, i32, i32) {
    %c0_i32 = arith.constant 0 : i32
    %c0_i32_0 = arith.constant 0 : i32
    %c0_i32_1 = arith.constant 0 : i32
    %c0_i32_2 = arith.constant 0 : i32
    return %c0_i32, %c0_i32_0, %c0_i32_1 : i32, i32, i32
  }
  func.func @transform_4(%arg0: i32) -> i32 {
    %c0_i32 = arith.constant 0 : i32
    %c0_i32_0 = arith.constant 0 : i32
    return %c0_i32 : i32
  }
  func.func @transform_5(%arg0: i32) -> (i32, i32, i32, i32) {
    %c0_i32 = arith.constant 0 : i32
    %c0_i32_0 = arith.constant 0 : i32
    %c0_i32_1 = arith.constant 0 : i32
    %c0_i32_2 = arith.constant 0 : i32
    return %c0_i32, %c0_i32_0, %c0_i32_1, %arg0 : i32, i32, i32, i32
  }
  func.func @transform_6(%arg0: i32) -> (i32, i32, i32) {
    %c0_i32 = arith.constant 0 : i32
    %c0_i32_0 = arith.constant 0 : i32
    %c0_i32_1 = arith.constant 0 : i32
    return %c0_i32, %c0_i32_0, %arg0 : i32, i32, i32
  }
}

</mosaic_0001>

<llo_original>
// kernel: ms_layer_forward.1
$region0: #{ms_layer_forward.1}
  #allocation0 [shape = 'u32[]', space=smem, size = 0x4, offset = 0x4, fixed_abs, tag = 'smem constant byte address 0x4 - core index']
  #allocation1 [shape = 'u32[144,128]{1,0:T(1,128)}', space=vmem, size = 0x12000, scoped, tag = 'internal scratch']
  %s0 = inlined_call_operand.vmem [shape: f32[4,16,16,256], index: 0, kind: input, shape index: {}]
  %s1 = inlined_call_operand.vmem [shape: f32[16,16,256], index: 1, kind: input, shape index: {}]
  %s2 = inlined_call_operand.vmem [shape: f32[16,1,256], index: 2, kind: input, shape index: {}]
  %s3 = inlined_call_operand.vmem [shape: f32[16,16,1], index: 3, kind: input, shape index: {}]
  %s4 = inlined_call_operand.vmem [shape: f32[2], index: 4, kind: input, shape index: {}]
  %s5 = inlined_call_operand.vmem [shape: f32[4,16,16,256], index: 5, kind: output, shape index: {0}]
  %s6 = inlined_call_operand.vmem [shape: f32[3,16,256], index: 6, kind: output, shape index: {1}]
  %7 = xla_tuple %s5, %s6
  %s8 = sld [smem:[#allocation0]]
  $region250: #{ms_layer_forward.1} parent=0
    _
  %s10 = ssub.s32 1, %s8
  %s11 = scalar_select 0, %s10, %s8
  $region1: #{ms_layer_forward.1} parent=0
    #allocation2 [shape = 'u8[1048576]{0}', space=vmem, size = 0x100000, scoped, tag = 'input window, operand 0']
    #allocation3 [shape = 'u8[262144]{0}', space=vmem, size = 0x40000, scoped, tag = 'input window, operand 1']
    #allocation4 [shape = 'u8[16384]{0}', space=vmem, size = 0x4000, scoped, tag = 'input window, operand 2']
    #allocation5 [shape = 'u8[512]{0}', space=smem, size = 0x200, scoped, tag = 'input window, operand 4, single buffered']
    #allocation6 [shape = 's32[2]{0}', space=sflag, size = 0x8, scoped, tag = 'scoped memory for ms_layer_forward.1']
    #allocation7 [shape = 'u8[1048576]{0}', space=vmem, size = 0x100000, scoped, tag = 'output window, operand 0']
    #allocation8 [shape = 'u8[49152]{0}', space=vmem, size = 0xc000, scoped, tag = 'output window, operand 1']
    %12 = vsyncpa [#allocation6], 0
    loop: start=0, step=1, limit=4
    $region2: #{ms_layer_forward.1} parent=1 // loop_pre_header
      _
    $region3: #{ms_layer_forward.1} parent=1 // loop_header
      %s14 = sphi 0, %s18
      %p15 = scmp.ge.s32.totalorder %s14, 4
      %s24 = sphi 0, %s26
      %s27 = sphi 0, %s24
      %s28 = sphi 0, %s27
      %s44 = sphi 0, %s28
      %s50 = sphi 0, %s52
      %s53 = sphi 0, %s50
      %s54 = sphi 0, %s53
      %s70 = sphi 0, %s54
      %s76 = sphi 0, %s78
      %s79 = sphi 0, %s76
      %s80 = sphi 0, %s79
      %s96 = sphi 0, %s80
      %s100 = sphi 0, %s100
      %s102 = sphi 0, %s100
      %s103 = sphi 0, %s102
      %s117 = sphi 0, %s103
      %s121 = sphi 0, %s121
      %s123 = sphi 0, %s121
      %s124 = sphi 0, %s123
      %s138 = sphi 0, %s124
      %s144 = sphi 0, %s146
      %s147 = sphi 0, %s144
      %s148 = sphi 0, %s147
      %s164 = sphi 0, %s148
      %s170 = sphi 0, %s172
      %s173 = sphi 0, %s170
      %s174 = sphi 0, %s173
      %s190 = sphi 0, %s174
    $region4: #{ms_layer_forward.1} parent=1 // loop_header_branch
      %17 = sbr.rel (%p15) target = $region8
    $region5: #{ms_layer_forward.1} parent=1 // loop_body
      %s19 = ssub.s32 %s14, 1
      %s20 = ssub.s32 %s14, 2
      %s21 = sadd.s32 %s14, 1
      %s22 = ssub.s32 %s14, %s21
      %p23 = scmp.eq.s32.totalorder %s22, 0
      %s25 = sadd.s32 %s24, 1
      %s26 = scalar_select %p23, %s24, %s25
      %p29 = pneg %p23
      %p30 = scmp.eq.s32.totalorder %s14, 1
      %p31 = por %p29, %p30
      %p32 = scmp.ne.s32.totalorder %s24, %s27
      %p33 = scmp.eq.s32.totalorder %s14, 0
      %p34 = por %p32, %p33
      %p35 = scmp.ne.s32.totalorder %s24, %s27
      %p36 = scmp.eq.s32.totalorder %s19, 1
      %p37 = por %p35, %p36
      %p38 = scmp.ne.s32.totalorder %s27, %s28
      %p39 = scmp.eq.s32.totalorder %s19, 0
      %p40 = por %p38, %p39
      %p41 = scmp.ne.s32.totalorder %s27, %s28
      %p42 = scmp.eq.s32.totalorder %s20, 1
      %p43 = por %p41, %p42
      %p45 = scmp.ne.s32.totalorder %s28, %s44
      %p46 = scmp.eq.s32.totalorder %s20, 0
      %p47 = por %p45, %p46
      %s48 = ssub.s32 %s14, %s21
      %p49 = scmp.eq.s32.totalorder %s48, 0
      %s51 = sadd.s32 %s50, 1
      %s52 = scalar_select %p49, %s50, %s51
      %p55 = pneg %p49
      %p56 = scmp.eq.s32.totalorder %s14, 1
      %p57 = por %p55, %p56
      %p58 = scmp.ne.s32.totalorder %s50, %s53
      %p59 = scmp.eq.s32.totalorder %s14, 0
      %p60 = por %p58, %p59
      %p61 = scmp.ne.s32.totalorder %s50, %s53
      %p62 = scmp.eq.s32.totalorder %s19, 1
      %p63 = por %p61, %p62
      %p64 = scmp.ne.s32.totalorder %s53, %s54
      %p65 = scmp.eq.s32.totalorder %s19, 0
      %p66 = por %p64, %p65
      %p67 = scmp.ne.s32.totalorder %s53, %s54
      %p68 = scmp.eq.s32.totalorder %s20, 1
      %p69 = por %p67, %p68
      %p71 = scmp.ne.s32.totalorder %s54, %s70
      %p72 = scmp.eq.s32.totalorder %s20, 0
      %p73 = por %p71, %p72
      %s74 = ssub.s32 %s14, %s21
      %p75 = scmp.eq.s32.totalorder %s74, 0
      %s77 = sadd.s32 %s76, 1
      %s78 = scalar_select %p75, %s76, %s77
      %p81 = pneg %p75
      %p82 = scmp.eq.s32.totalorder %s14, 1
      %p83 = por %p81, %p82
      %p84 = scmp.ne.s32.totalorder %s76, %s79
      %p85 = scmp.eq.s32.totalorder %s14, 0
      %p86 = por %p84, %p85
      %p87 = scmp.ne.s32.totalorder %s76, %s79
      %p88 = scmp.eq.s32.totalorder %s19, 1
      %p89 = por %p87, %p88
      %p90 = scmp.ne.s32.totalorder %s79, %s80
      %p91 = scmp.eq.s32.totalorder %s19, 0
      %p92 = por %p90, %p91
      %p93 = scmp.ne.s32.totalorder %s79, %s80
      %p94 = scmp.eq.s32.totalorder %s20, 1
      %p95 = por %p93, %p94
      %p97 = scmp.ne.s32.totalorder %s80, %s96
      %p98 = scmp.eq.s32.totalorder %s20, 0
      %p99 = por %p97, %p98
      %s101 = sadd.s32 %s100, 1
      %p104 = scmp.eq.s32.totalorder %s14, 1
      %p105 = scmp.ne.s32.totalorder %s100, %s102
      %p106 = scmp.eq.s32.totalorder %s14, 0
      %p107 = por %p105, %p106
      %p108 = scmp.ne.s32.totalorder %s100, %s102
      %p109 = scmp.eq.s32.totalorder %s19, 1
      %p110 = por %p108, %p109
      %p111 = scmp.ne.s32.totalorder %s102, %s103
      %p112 = scmp.eq.s32.totalorder %s19, 0
      %p113 = por %p111, %p112
      %p114 = scmp.ne.s32.totalorder %s102, %s103
      %p115 = scmp.eq.s32.totalorder %s20, 1
      %p116 = por %p114, %p115
      %p118 = scmp.ne.s32.totalorder %s103, %s117
      %p119 = scmp.eq.s32.totalorder %s20, 0
      %p120 = por %p118, %p119
      %s122 = sadd.s32 %s121, 1
      %p125 = scmp.eq.s32.totalorder %s14, 1
      %p126 = scmp.ne.s32.totalorder %s121, %s123
      %p127 = scmp.eq.s32.totalorder %s14, 0
      %p128 = por %p126, %p127
      %p129 = scmp.ne.s32.totalorder %s121, %s123
      %p130 = scmp.eq.s32.totalorder %s19, 1
      %p131 = por %p129, %p130
      %p132 = scmp.ne.s32.totalorder %s123, %s124
      %p133 = scmp.eq.s32.totalorder %s19, 0
      %p134 = por %p132, %p133
      %p135 = scmp.ne.s32.totalorder %s123, %s124
      %p136 = scmp.eq.s32.totalorder %s20, 1
      %p137 = por %p135, %p136
      %p139 = scmp.ne.s32.totalorder %s124, %s138
      %p140 = scmp.eq.s32.totalorder %s20, 0
      %p141 = por %p139, %p140
      %s142 = ssub.s32 %s14, %s21
      %p143 = scmp.eq.s32.totalorder %s142, 0
      %s145 = sadd.s32 %s144, 1
      %s146 = scalar_select %p143, %s144, %s145
      %p149 = pneg %p143
      %p150 = scmp.eq.s32.totalorder %s14, 1
      %p151 = por %p149, %p150
      %p152 = scmp.ne.s32.totalorder %s144, %s147
      %p153 = scmp.eq.s32.totalorder %s14, 0
      %p154 = por %p152, %p153
      %p155 = scmp.ne.s32.totalorder %s144, %s147
      %p156 = scmp.eq.s32.totalorder %s19, 1
      %p157 = por %p155, %p156
      %p158 = scmp.ne.s32.totalorder %s147, %s148
      %p159 = scmp.eq.s32.totalorder %s19, 0
      %p160 = por %p158, %p159
      %p161 = scmp.ne.s32.totalorder %s147, %s148
      %p162 = scmp.eq.s32.totalorder %s20, 1
      %p163 = por %p161, %p162
      %p165 = scmp.ne.s32.totalorder %s148, %s164
      %p166 = scmp.eq.s32.totalorder %s20, 0
      %p167 = por %p165, %p166
      %s168 = ssub.s32 %s14, %s21
      %p169 = scmp.eq.s32.totalorder %s168, 0
      %s171 = sadd.s32 %s170, 1
      %s172 = scalar_select %p169, %s170, %s171
      %p175 = pneg %p169
      %p176 = scmp.eq.s32.totalorder %s14, 1
      %p177 = por %p175, %p176
      %p178 = scmp.ne.s32.totalorder %s170, %s173
      %p179 = scmp.eq.s32.totalorder %s14, 0
      %p180 = por %p178, %p179
      %p181 = scmp.ne.s32.totalorder %s170, %s173
      %p182 = scmp.eq.s32.totalorder %s19, 1
      %p183 = por %p181, %p182
      %p184 = scmp.ne.s32.totalorder %s173, %s174
      %p185 = scmp.eq.s32.totalorder %s19, 0
      %p186 = por %p184, %p185
      %p187 = scmp.ne.s32.totalorder %s173, %s174
      %p188 = scmp.eq.s32.totalorder %s20, 1
      %p189 = por %p187, %p188
      %p191 = scmp.ne.s32.totalorder %s174, %s190
      %p192 = scmp.eq.s32.totalorder %s20, 0
      %p193 = por %p191, %p192
      %p194 = scmp.le.s32.totalorder 1, %s14
      %p195 = scmp.lt.s32.totalorder %s14, 3
      %p196 = pnand %p194, %p195
      %p197 = pneg %p196
      // Predicated region
      $region9: #{ms_layer_forward.1} parent=5 // pred_check
        _
      $region10: #{ms_layer_forward.1} parent=5 // pred_check_branch
        %199 = sbr.rel (%p196) target = $region12
      $region11: #{ms_layer_forward.1} parent=5 // pred_region
        %s200 = ssub.s32 %s14, 1
        // Predicated region
        $region13: #{ms_layer_forward.1} parent=11 // pred_check
          %p201 = pneg %p113
        $region14: #{ms_layer_forward.1} parent=11 // pred_check_branch
          %203 = sbr.rel (%p201) target = $region16
        $region15: #{ms_layer_forward.1} parent=11 // pred_region
          _
        $region16: #{ms_layer_forward.1} parent=11 // pred_fallthru
          _
        // Predicated region
        $region17: #{ms_layer_forward.1} parent=11 // pred_check
          %p204 = pneg %p134
        $region18: #{ms_layer_forward.1} parent=11 // pred_check_branch
          %206 = sbr.rel (%p204) target = $region20
        $region19: #{ms_layer_forward.1} parent=11 // pred_region
          %s208 = ssub.s32 16, 16
          %209 = vsyncadd [#allocation6], %s208
          %s211 = sshll.u32 %s4, 4
          %s212 = int_to_ptr.vmem [resolvable:$true] %s211
          %214 = dma.vmem_to_smem %s212, 16, [#allocation5], [#allocation6]
        $region20: #{ms_layer_forward.1} parent=11 // pred_fallthru
          _
      $region12: #{ms_layer_forward.1} parent=5 // pred_fallthru
        _
      %p215 = scmp.lt.s32.totalorder %s14, 2
      // Predicated region
      $region21: #{ms_layer_forward.1} parent=5 // pred_check
        %p216 = pneg %p215
      $region22: #{ms_layer_forward.1} parent=5 // pred_check_branch
        %218 = sbr.rel (%p216) target = $region24
      $region23: #{ms_layer_forward.1} parent=5 // pred_region
        // Predicated region
        $region25: #{ms_layer_forward.1} parent=23 // pred_check
          %p219 = pneg %p34
        $region26: #{ms_layer_forward.1} parent=23 // pred_check_branch
          %221 = sbr.rel (%p219) target = $region28
        $region27: #{ms_layer_forward.1} parent=23 // pred_region
          %s222 = sand.u32 %s24, 1
          %s223 = sand.u32 %s24, 1
          %s224 = smul.addr %s223, 1024
          %s225 = scalar_lea.vmem [#allocation2], %s224
          %s226 = smul.addr %s14, 8
          %s227 = scalar_lea.vmem %s0, %s226
          // Predicated region
          $region29: #{ms_layer_forward.1} parent=27 // pred_check
            _
          $region30: #{ms_layer_forward.1} parent=27 // pred_check_branch
            %229 = sbr.rel (0) target = $region32
          $region31: #{ms_layer_forward.1} parent=27 // pred_region
            // Predicated region
            $region33: #{ms_layer_forward.1} parent=31 // pred_check
              _
            $region34: #{ms_layer_forward.1} parent=31 // pred_check_branch
              %231 = sbr.rel (0) target = $region36
            $region35: #{ms_layer_forward.1} parent=31 // pred_region
              // Predicated region
              $region48: #{ms_layer_forward.1} parent=35 // pred_check
                _
              $region49: #{ms_layer_forward.1} parent=35 // pred_check_branch
                %501 = sbr.rel (0) target = $region51
              $region50: #{ms_layer_forward.1} parent=35 // pred_region
                loop: start=0, step=1, limit=1
                $region52: #{ms_layer_forward.1} parent=50 // loop_pre_header
                  _
                $region53: #{ms_layer_forward.1} parent=50 // loop_header
                  %s503 = sphi 0, %s507
                  %p504 = scmp.ge.s32.totalorder %s503, 1
                  %s508 = sphi %s227, %s227
                  %s509 = sphi %s225, %s225
                $region54: #{ms_layer_forward.1} parent=50 // loop_header_branch
                  %506 = sbr.rel (%p504) target = $region58
                $region55: #{ms_layer_forward.1} parent=50 // loop_body
                  %v510 = vld [vmem:[%s508] sm:$0xff]
                  %511 = vst [vmem:[%s509] sm:$0xff] %v510
                  %v512 = vld [vmem:[%s508 + $0x10] sm:$0xff]
                  %513 = vst [vmem:[%s509 + $0x8] sm:$0xff] %v512
                  %v514 = vld [vmem:[%s508 + $0x20] sm:$0xff]
                  %515 = vst [vmem:[%s509 + $0x10] sm:$0xff] %v514
                  %v516 = vld [vmem:[%s508 + $0x30] sm:$0xff]
                  %517 = vst [vmem:[%s509 + $0x18] sm:$0xff] %v516
                  %v518 = vld [vmem:[%s508 + $0x40] sm:$0xff]
                  %519 = vst [vmem:[%s509 + $0x20] sm:$0xff] %v518
                  %v520 = vld [vmem:[%s508 + $0x50] sm:$0xff]
                  %521 = vst [vmem:[%s509 + $0x28] sm:$0xff] %v520
                  %v522 = vld [vmem:[%s508 + $0x60] sm:$0xff]
                  %523 = vst [vmem:[%s509 + $0x30] sm:$0xff] %v522
                  %v524 = vld [vmem:[%s508 + $0x70] sm:$0xff]
                  %525 = vst [vmem:[%s509 + $0x38] sm:$0xff] %v524
                  %v526 = vld [vmem:[%s508 + $0x80] sm:$0xff]
                  %527 = vst [vmem:[%s509 + $0x40] sm:$0xff] %v526
                  %v528 = vld [vmem:[%s508 + $0x90] sm:$0xff]
                  %529 = vst [vmem:[%s509 + $0x48] sm:$0xff] %v528
                  %v530 = vld [vmem:[%s508 + $0xa0] sm:$0xff]
                  %531 = vst [vmem:[%s509 + $0x50] sm:$0xff] %v530
                  %v532 = vld [vmem:[%s508 + $0xb0] sm:$0xff]
                  %533 = vst [vmem:[%s509 + $0x58] sm:$0xff] %v532
                  %v534 = vld [vmem:[%s508 + $0xc0] sm:$0xff]
                  %535 = vst [vmem:[%s509 + $0x60] sm:$0xff] %v534
                  %v536 = vld [vmem:[%s508 + $0xd0] sm:$0xff]
                  %537 = vst [vmem:[%s509 + $0x68] sm:$0xff] %v536
                  %v538 = vld [vmem:[%s508 + $0xe0] sm:$0xff]
                  %539 = vst [vmem:[%s509 + $0x70] sm:$0xff] %v538
                  %v540 = vld [vmem:[%s508 + $0xf0] sm:$0xff]
                  %541 = vst [vmem:[%s509 + $0x78] sm:$0xff] %v540
                  %v542 = vld [vmem:[%s508 + $0x100] sm:$0xff]
                  %543 = vst [vmem:[%s509 + $0x80] sm:$0xff] %v542
                  %v544 = vld [vmem:[%s508 + $0x110] sm:$0xff]
                  %545 = vst [vmem:[%s509 + $0x88] sm:$0xff] %v544
                  %v546 = vld [vmem:[%s508 + $0x120] sm:$0xff]
                  %547 = vst [vmem:[%s509 + $0x90] sm:$0xff] %v546
                  %v548 = vld [vmem:[%s508 + $0x130] sm:$0xff]
                  %549 = vst [vmem:[%s509 + $0x98] sm:$0xff] %v548
                  %v550 = vld [vmem:[%s508 + $0x140] sm:$0xff]
                  %551 = vst [vmem:[%s509 + $0xa0] sm:$0xff] %v550
                  %v552 = vld [vmem:[%s508 + $0x150] sm:$0xff]
                  %553 = vst [vmem:[%s509 + $0xa8] sm:$0xff] %v552
                  %v554 = vld [vmem:[%s508 + $0x160] sm:$0xff]
                  %555 = vst [vmem:[%s509 + $0xb0] sm:$0xff] %v554
                  %v556 = vld [vmem:[%s508 + $0x170] sm:$0xff]
                  %557 = vst [vmem:[%s509 + $0xb8] sm:$0xff] %v556
                  %v558 = vld [vmem:[%s508 + $0x180] sm:$0xff]
                  %559 = vst [vmem:[%s509 + $0xc0] sm:$0xff] %v558
                  %v560 = vld [vmem:[%s508 + $0x190] sm:$0xff]
                  %561 = vst [vmem:[%s509 + $0xc8] sm:$0xff] %v560
                  %v562 = vld [vmem:[%s508 + $0x1a0] sm:$0xff]
                  %563 = vst [vmem:[%s509 + $0xd0] sm:$0xff] %v562
                  %v564 = vld [vmem:[%s508 + $0x1b0] sm:$0xff]
                  %565 = vst [vmem:[%s509 + $0xd8] sm:$0xff] %v564
                  %v566 = vld [vmem:[%s508 + $0x1c0] sm:$0xff]
                  %567 = vst [vmem:[%s509 + $0xe0] sm:$0xff] %v566
                  %v568 = vld [vmem:[%s508 + $0x1d0] sm:$0xff]
                  %569 = vst [vmem:[%s509 + $0xe8] sm:$0xff] %v568
                  %v570 = vld [vmem:[%s508 + $0x1e0] sm:$0xff]
                  %571 = vst [vmem:[%s509 + $0xf0] sm:$0xff] %v570
                  %v572 = vld [vmem:[%s508 + $0x1f0] sm:$0xff]
                  %573 = vst [vmem:[%s509 + $0xf8] sm:$0xff] %v572
                  %v574 = vld [vmem:[%s508 + $0x200] sm:$0xff]
                  %575 = vst [vmem:[%s509 + $0x100] sm:$0xff] %v574
                  %v576 = vld [vmem:[%s508 + $0x210] sm:$0xff]
                  %577 = vst [vmem:[%s509 + $0x108] sm:$0xff] %v576
                  %v578 = vld [vmem:[%s508 + $0x220] sm:$0xff]
                  %579 = vst [vmem:[%s509 + $0x110] sm:$0xff] %v578
                  %v580 = vld [vmem:[%s508 + $0x230] sm:$0xff]
                  %581 = vst [vmem:[%s509 + $0x118] sm:$0xff] %v580
                  %v582 = vld [vmem:[%s508 + $0x240] sm:$0xff]
                  %583 = vst [vmem:[%s509 + $0x120] sm:$0xff] %v582
                  %v584 = vld [vmem:[%s508 + $0x250] sm:$0xff]
                  %585 = vst [vmem:[%s509 + $0x128] sm:$0xff] %v584
                  %v586 = vld [vmem:[%s508 + $0x260] sm:$0xff]
                  %587 = vst [vmem:[%s509 + $0x130] sm:$0xff] %v586
                  %v588 = vld [vmem:[%s508 + $0x270] sm:$0xff]
                  %589 = vst [vmem:[%s509 + $0x138] sm:$0xff] %v588
                  %v590 = vld [vmem:[%s508 + $0x280] sm:$0xff]
                  %591 = vst [vmem:[%s509 + $0x140] sm:$0xff] %v590
                  %v592 = vld [vmem:[%s508 + $0x290] sm:$0xff]
                  %593 = vst [vmem:[%s509 + $0x148] sm:$0xff] %v592
                  %v594 = vld [vmem:[%s508 + $0x2a0] sm:$0xff]
                  %595 = vst [vmem:[%s509 + $0x150] sm:$0xff] %v594
                  %v596 = vld [vmem:[%s508 + $0x2b0] sm:$0xff]
                  %597 = vst [vmem:[%s509 + $0x158] sm:$0xff] %v596
                  %v598 = vld [vmem:[%s508 + $0x2c0] sm:$0xff]
                  %599 = vst [vmem:[%s509 + $0x160] sm:$0xff] %v598
                  %v600 = vld [vmem:[%s508 + $0x2d0] sm:$0xff]
                  %601 = vst [vmem:[%s509 + $0x168] sm:$0xff] %v600
                  %v602 = vld [vmem:[%s508 + $0x2e0] sm:$0xff]
                  %603 = vst [vmem:[%s509 + $0x170] sm:$0xff] %v602
                  %v604 = vld [vmem:[%s508 + $0x2f0] sm:$0xff]
                  %605 = vst [vmem:[%s509 + $0x178] sm:$0xff] %v604
                  %v606 = vld [vmem:[%s508 + $0x300] sm:$0xff]
                  %607 = vst [vmem:[%s509 + $0x180] sm:$0xff] %v606
                  %v608 = vld [vmem:[%s508 + $0x310] sm:$0xff]
                  %609 = vst [vmem:[%s509 + $0x188] sm:$0xff] %v608
                  %v610 = vld [vmem:[%s508 + $0x320] sm:$0xff]
                  %611 = vst [vmem:[%s509 + $0x190] sm:$0xff] %v610
                  %v612 = vld [vmem:[%s508 + $0x330] sm:$0xff]
                  %613 = vst [vmem:[%s509 + $0x198] sm:$0xff] %v612
                  %v614 = vld [vmem:[%s508 + $0x340] sm:$0xff]
                  %615 = vst [vmem:[%s509 + $0x1a0] sm:$0xff] %v614
                  %v616 = vld [vmem:[%s508 + $0x350] sm:$0xff]
                  %617 = vst [vmem:[%s509 + $0x1a8] sm:$0xff] %v616
                  %v618 = vld [vmem:[%s508 + $0x360] sm:$0xff]
                  %619 = vst [vmem:[%s509 + $0x1b0] sm:$0xff] %v618
                  %v620 = vld [vmem:[%s508 + $0x370] sm:$0xff]
                  %621 = vst [vmem:[%s509 + $0x1b8] sm:$0xff] %v620
                  %v622 = vld [vmem:[%s508 + $0x380] sm:$0xff]
                  %623 = vst [vmem:[%s509 + $0x1c0] sm:$0xff] %v622
                  %v624 = vld [vmem:[%s508 + $0x390] sm:$0xff]
                  %625 = vst [vmem:[%s509 + $0x1c8] sm:$0xff] %v624
                  %v626 = vld [vmem:[%s508 + $0x3a0] sm:$0xff]
                  %627 = vst [vmem:[%s509 + $0x1d0] sm:$0xff] %v626
                  %v628 = vld [vmem:[%s508 + $0x3b0] sm:$0xff]
                  %629 = vst [vmem:[%s509 + $0x1d8] sm:$0xff] %v628
                  %v630 = vld [vmem:[%s508 + $0x3c0] sm:$0xff]
                  %631 = vst [vmem:[%s509 + $0x1e0] sm:$0xff] %v630
                  %v632 = vld [vmem:[%s508 + $0x3d0] sm:$0xff]
                  %633 = vst [vmem:[%s509 + $0x1e8] sm:$0xff] %v632
                  %v634 = vld [vmem:[%s508 + $0x3e0] sm:$0xff]
                  %635 = vst [vmem:[%s509 + $0x1f0] sm:$0xff] %v634
                  %v636 = vld [vmem:[%s508 + $0x3f0] sm:$0xff]
                  %637 = vst [vmem:[%s509 + $0x1f8] sm:$0xff] %v636
                  %v638 = vld [vmem:[%s508 + $0x400] sm:$0xff]
                  %639 = vst [vmem:[%s509 + $0x200] sm:$0xff] %v638
                  %v640 = vld [vmem:[%s508 + $0x410] sm:$0xff]
                  %641 = vst [vmem:[%s509 + $0x208] sm:$0xff] %v640
                  %v642 = vld [vmem:[%s508 + $0x420] sm:$0xff]
                  %643 = vst [vmem:[%s509 + $0x210] sm:$0xff] %v642
                  %v644 = vld [vmem:[%s508 + $0x430] sm:$0xff]
                  %645 = vst [vmem:[%s509 + $0x218] sm:$0xff] %v644
                  %v646 = vld [vmem:[%s508 + $0x440] sm:$0xff]
                  %647 = vst [vmem:[%s509 + $0x220] sm:$0xff] %v646
                  %v648 = vld [vmem:[%s508 + $0x450] sm:$0xff]
                  %649 = vst [vmem:[%s509 + $0x228] sm:$0xff] %v648
                  %v650 = vld [vmem:[%s508 + $0x460] sm:$0xff]
                  %651 = vst [vmem:[%s509 + $0x230] sm:$0xff] %v650
                  %v652 = vld [vmem:[%s508 + $0x470] sm:$0xff]
                  %653 = vst [vmem:[%s509 + $0x238] sm:$0xff] %v652
                  %v654 = vld [vmem:[%s508 + $0x480] sm:$0xff]
                  %655 = vst [vmem:[%s509 + $0x240] sm:$0xff] %v654
                  %v656 = vld [vmem:[%s508 + $0x490] sm:$0xff]
                  %657 = vst [vmem:[%s509 + $0x248] sm:$0xff] %v656
                  %v658 = vld [vmem:[%s508 + $0x4a0] sm:$0xff]
                  %659 = vst [vmem:[%s509 + $0x250] sm:$0xff] %v658
                  %v660 = vld [vmem:[%s508 + $0x4b0] sm:$0xff]
                  %661 = vst [vmem:[%s509 + $0x258] sm:$0xff] %v660
                  %v662 = vld [vmem:[%s508 + $0x4c0] sm:$0xff]
                  %663 = vst [vmem:[%s509 + $0x260] sm:$0xff] %v662
                  %v664 = vld [vmem:[%s508 + $0x4d0] sm:$0xff]
                  %665 = vst [vmem:[%s509 + $0x268] sm:$0xff] %v664
                  %v666 = vld [vmem:[%s508 + $0x4e0] sm:$0xff]
                  %667 = vst [vmem:[%s509 + $0x270] sm:$0xff] %v666
                  %v668 = vld [vmem:[%s508 + $0x4f0] sm:$0xff]
                  %669 = vst [vmem:[%s509 + $0x278] sm:$0xff] %v668
                  %v670 = vld [vmem:[%s508 + $0x500] sm:$0xff]
                  %671 = vst [vmem:[%s509 + $0x280] sm:$0xff] %v670
                  %v672 = vld [vmem:[%s508 + $0x510] sm:$0xff]
                  %673 = vst [vmem:[%s509 + $0x288] sm:$0xff] %v672
                  %v674 = vld [vmem:[%s508 + $0x520] sm:$0xff]
                  %675 = vst [vmem:[%s509 + $0x290] sm:$0xff] %v674
                  %v676 = vld [vmem:[%s508 + $0x530] sm:$0xff]
                  %677 = vst [vmem:[%s509 + $0x298] sm:$0xff] %v676
                  %v678 = vld [vmem:[%s508 + $0x540] sm:$0xff]
                  %679 = vst [vmem:[%s509 + $0x2a0] sm:$0xff] %v678
                  %v680 = vld [vmem:[%s508 + $0x550] sm:$0xff]
                  %681 = vst [vmem:[%s509 + $0x2a8] sm:$0xff] %v680
                  %v682 = vld [vmem:[%s508 + $0x560] sm:$0xff]
                  %683 = vst [vmem:[%s509 + $0x2b0] sm:$0xff] %v682
                  %v684 = vld [vmem:[%s508 + $0x570] sm:$0xff]
                  %685 = vst [vmem:[%s509 + $0x2b8] sm:$0xff] %v684
                  %v686 = vld [vmem:[%s508 + $0x580] sm:$0xff]
                  %687 = vst [vmem:[%s509 + $0x2c0] sm:$0xff] %v686
                  %v688 = vld [vmem:[%s508 + $0x590] sm:$0xff]
                  %689 = vst [vmem:[%s509 + $0x2c8] sm:$0xff] %v688
                  %v690 = vld [vmem:[%s508 + $0x5a0] sm:$0xff]
                  %691 = vst [vmem:[%s509 + $0x2d0] sm:$0xff] %v690
                  %v692 = vld [vmem:[%s508 + $0x5b0] sm:$0xff]
                  %693 = vst [vmem:[%s509 + $0x2d8] sm:$0xff] %v692
                  %v694 = vld [vmem:[%s508 + $0x5c0] sm:$0xff]
                  %695 = vst [vmem:[%s509 + $0x2e0] sm:$0xff] %v694
                  %v696 = vld [vmem:[%s508 + $0x5d0] sm:$0xff]
                  %697 = vst [vmem:[%s509 + $0x2e8] sm:$0xff] %v696
                  %v698 = vld [vmem:[%s508 + $0x5e0] sm:$0xff]
                  %699 = vst [vmem:[%s509 + $0x2f0] sm:$0xff] %v698
                  %v700 = vld [vmem:[%s508 + $0x5f0] sm:$0xff]
                  %701 = vst [vmem:[%s509 + $0x2f8] sm:$0xff] %v700
                  %v702 = vld [vmem:[%s508 + $0x600] sm:$0xff]
                  %703 = vst [vmem:[%s509 + $0x300] sm:$0xff] %v702
                  %v704 = vld [vmem:[%s508 + $0x610] sm:$0xff]
                  %705 = vst [vmem:[%s509 + $0x308] sm:$0xff] %v704
                  %v706 = vld [vmem:[%s508 + $0x620] sm:$0xff]
                  %707 = vst [vmem:[%s509 + $0x310] sm:$0xff] %v706
                  %v708 = vld [vmem:[%s508 + $0x630] sm:$0xff]
                  %709 = vst [vmem:[%s509 + $0x318] sm:$0xff] %v708
                  %v710 = vld [vmem:[%s508 + $0x640] sm:$0xff]
                  %711 = vst [vmem:[%s509 + $0x320] sm:$0xff] %v710
                  %v712 = vld [vmem:[%s508 + $0x650] sm:$0xff]
                  %713 = vst [vmem:[%s509 + $0x328] sm:$0xff] %v712
                  %v714 = vld [vmem:[%s508 + $0x660] sm:$0xff]
                  %715 = vst [vmem:[%s509 + $0x330] sm:$0xff] %v714
                  %v716 = vld [vmem:[%s508 + $0x670] sm:$0xff]
                  %717 = vst [vmem:[%s509 + $0x338] sm:$0xff] %v716
                  %v718 = vld [vmem:[%s508 + $0x680] sm:$0xff]
                  %719 = vst [vmem:[%s509 + $0x340] sm:$0xff] %v718
                  %v720 = vld [vmem:[%s508 + $0x690] sm:$0xff]
                  %721 = vst [vmem:[%s509 + $0x348] sm:$0xff] %v720
                  %v722 = vld [vmem:[%s508 + $0x6a0] sm:$0xff]
                  %723 = vst [vmem:[%s509 + $0x350] sm:$0xff] %v722
                  %v724 = vld [vmem:[%s508 + $0x6b0] sm:$0xff]
                  %725 = vst [vmem:[%s509 + $0x358] sm:$0xff] %v724
                  %v726 = vld [vmem:[%s508 + $0x6c0] sm:$0xff]
                  %727 = vst [vmem:[%s509 + $0x360] sm:$0xff] %v726
                  %v728 = vld [vmem:[%s508 + $0x6d0] sm:$0xff]
                  %729 = vst [vmem:[%s509 + $0x368] sm:$0xff] %v728
                  %v730 = vld [vmem:[%s508 + $0x6e0] sm:$0xff]
                  %731 = vst [vmem:[%s509 + $0x370] sm:$0xff] %v730
                  %v732 = vld [vmem:[%s508 + $0x6f0] sm:$0xff]
                  %733 = vst [vmem:[%s509 + $0x378] sm:$0xff] %v732
                  %v734 = vld [vmem:[%s508 + $0x700] sm:$0xff]
                  %735 = vst [vmem:[%s509 + $0x380] sm:$0xff] %v734
                  %v736 = vld [vmem:[%s508 + $0x710] sm:$0xff]
                  %737 = vst [vmem:[%s509 + $0x388] sm:$0xff] %v736
                  %v738 = vld [vmem:[%s508 + $0x720] sm:$0xff]
                  %739 = vst [vmem:[%s509 + $0x390] sm:$0xff] %v738
                  %v740 = vld [vmem:[%s508 + $0x730] sm:$0xff]
                  %741 = vst [vmem:[%s509 + $0x398] sm:$0xff] %v740
                  %v742 = vld [vmem:[%s508 + $0x740] sm:$0xff]
                  %743 = vst [vmem:[%s509 + $0x3a0] sm:$0xff] %v742
                  %v744 = vld [vmem:[%s508 + $0x750] sm:$0xff]
                  %745 = vst [vmem:[%s509 + $0x3a8] sm:$0xff] %v744
                  %v746 = vld [vmem:[%s508 + $0x760] sm:$0xff]
                  %747 = vst [vmem:[%s509 + $0x3b0] sm:$0xff] %v746
                  %v748 = vld [vmem:[%s508 + $0x770] sm:$0xff]
                  %749 = vst [vmem:[%s509 + $0x3b8] sm:$0xff] %v748
                  %v750 = vld [vmem:[%s508 + $0x780] sm:$0xff]
                  %751 = vst [vmem:[%s509 + $0x3c0] sm:$0xff] %v750
                  %v752 = vld [vmem:[%s508 + $0x790] sm:$0xff]
                  %753 = vst [vmem:[%s509 + $0x3c8] sm:$0xff] %v752
                  %v754 = vld [vmem:[%s508 + $0x7a0] sm:$0xff]
                  %755 = vst [vmem:[%s509 + $0x3d0] sm:$0xff] %v754
                  %v756 = vld [vmem:[%s508 + $0x7b0] sm:$0xff]
                  %757 = vst [vmem:[%s509 + $0x3d8] sm:$0xff] %v756
                  %v758 = vld [vmem:[%s508 + $0x7c0] sm:$0xff]
                  %759 = vst [vmem:[%s509 + $0x3e0] sm:$0xff] %v758
                  %v760 = vld [vmem:[%s508 + $0x7d0] sm:$0xff]
                  %761 = vst [vmem:[%s509 + $0x3e8] sm:$0xff] %v760
                  %v762 = vld [vmem:[%s508 + $0x7e0] sm:$0xff]
                  %763 = vst [vmem:[%s509 + $0x3f0] sm:$0xff] %v762
                  %v764 = vld [vmem:[%s508 + $0x7f0] sm:$0xff]
                  %765 = vst [vmem:[%s509 + $0x3f8] sm:$0xff] %v764
                $region56: #{ms_layer_forward.1} parent=50 // loop_footer
                  %s507 = sadd.s32 1, %s503
                $region57: #{ms_layer_forward.1} parent=50 // loop_footer_branch
                  %502 = sbr.rel target = $region53
                $region58: #{ms_layer_forward.1} parent=50 // loop_exit
                  _
              $region51: #{ms_layer_forward.1} parent=35 // pred_fallthru
                _
              // Predicated region
              $region59: #{ms_layer_forward.1} parent=35 // pred_check
                _
              $region60: #{ms_layer_forward.1} parent=35 // pred_check_branch
                %767 = sbr.rel target = $region62
              $region61: #{ms_layer_forward.1} parent=35 // pred_region
                _
              $region62: #{ms_layer_forward.1} parent=35 // pred_fallthru
                _
            $region36: #{ms_layer_forward.1} parent=31 // pred_fallthru
              _
            // Predicated region
            $region37: #{ms_layer_forward.1} parent=31 // pred_check
              _
            $region38: #{ms_layer_forward.1} parent=31 // pred_check_branch
              %233 = sbr.rel target = $region40
            $region39: #{ms_layer_forward.1} parent=31 // pred_region
              %s235 = ssub.s32 256, 1
              loop: start=0, step=1, limit=1
              $region41: #{ms_layer_forward.1} parent=39 // loop_pre_header
                _
              $region42: #{ms_layer_forward.1} parent=39 // loop_header
                %s237 = sphi 0, %s241
                %p238 = scmp.ge.s32.totalorder %s237, 1
                %s242 = sphi %s227, %s227
                %s243 = sphi %s225, %s225
              $region43: #{ms_layer_forward.1} parent=39 // loop_header_branch
                %240 = sbr.rel (%p238) target = $region47
              $region44: #{ms_layer_forward.1} parent=39 // loop_body
                %v244 = vld [vmem:[%s242] sm:%s235]
                %245 = vst [vmem:[%s243] sm:%s235] %v244
                %v246 = vld [vmem:[%s242 + $0x10] sm:%s235]
                %247 = vst [vmem:[%s243 + $0x8] sm:%s235] %v246
                %v248 = vld [vmem:[%s242 + $0x20] sm:%s235]
                %249 = vst [vmem:[%s243 + $0x10] sm:%s235] %v248
                %v250 = vld [vmem:[%s242 + $0x30] sm:%s235]
                %251 = vst [vmem:[%s243 + $0x18] sm:%s235] %v250
                %v252 = vld [vmem:[%s242 + $0x40] sm:%s235]
                %253 = vst [vmem:[%s243 + $0x20] sm:%s235] %v252
                %v254 = vld [vmem:[%s242 + $0x50] sm:%s235]
                %255 = vst [vmem:[%s243 + $0x28] sm:%s235] %v254
                %v256 = vld [vmem:[%s242 + $0x60] sm:%s235]
                %257 = vst [vmem:[%s243 + $0x30] sm:%s235] %v256
                %v258 = vld [vmem:[%s242 + $0x70] sm:%s235]
                %259 = vst [vmem:[%s243 + $0x38] sm:%s235] %v258
                %v260 = vld [vmem:[%s242 + $0x80] sm:%s235]
                %261 = vst [vmem:[%s243 + $0x40] sm:%s235] %v260
                %v262 = vld [vmem:[%s242 + $0x90] sm:%s235]
                %263 = vst [vmem:[%s243 + $0x48] sm:%s235] %v262
                %v264 = vld [vmem:[%s242 + $0xa0] sm:%s235]
                %265 = vst [vmem:[%s243 + $0x50] sm:%s235] %v264
                %v266 = vld [vmem:[%s242 + $0xb0] sm:%s235]
                %267 = vst [vmem:[%s243 + $0x58] sm:%s235] %v266
                %v268 = vld [vmem:[%s242 + $0xc0] sm:%s235]
                %269 = vst [vmem:[%s243 + $0x60] sm:%s235] %v268
                %v270 = vld [vmem:[%s242 + $0xd0] sm:%s235]
                %271 = vst [vmem:[%s243 + $0x68] sm:%s235] %v270
                %v272 = vld [vmem:[%s242 + $0xe0] sm:%s235]
                %273 = vst [vmem:[%s243 + $0x70] sm:%s235] %v272
                %v274 = vld [vmem:[%s242 + $0xf0] sm:%s235]
                %275 = vst [vmem:[%s243 + $0x78] sm:%s235] %v274
                %v276 = vld [vmem:[%s242 + $0x100] sm:%s235]
                %277 = vst [vmem:[%s243 + $0x80] sm:%s235] %v276
                %v278 = vld [vmem:[%s242 + $0x110] sm:%s235]
                %279 = vst [vmem:[%s243 + $0x88] sm:%s235] %v278
                %v280 = vld [vmem:[%s242 + $0x120] sm:%s235]
                %281 = vst [vmem:[%s243 + $0x90] sm:%s235] %v280
                %v282 = vld [vmem:[%s242 + $0x130] sm:%s235]
                %283 = vst [vmem:[%s243 + $0x98] sm:%s235] %v282
                %v284 = vld [vmem:[%s242 + $0x140] sm:%s235]
                %285 = vst [vmem:[%s243 + $0xa0] sm:%s235] %v284
                %v286 = vld [vmem:[%s242 + $0x150] sm:%s235]
                %287 = vst [vmem:[%s243 + $0xa8] sm:%s235] %v286
                %v288 = vld [vmem:[%s242 + $0x160] sm:%s235]
                %289 = vst [vmem:[%s243 + $0xb0] sm:%s235] %v288
                %v290 = vld [vmem:[%s242 + $0x170] sm:%s235]
                %291 = vst [vmem:[%s243 + $0xb8] sm:%s235] %v290
                %v292 = vld [vmem:[%s242 + $0x180] sm:%s235]
                %293 = vst [vmem:[%s243 + $0xc0] sm:%s235] %v292
                %v294 = vld [vmem:[%s242 + $0x190] sm:%s235]
                %295 = vst [vmem:[%s243 + $0xc8] sm:%s235] %v294
                %v296 = vld [vmem:[%s242 + $0x1a0] sm:%s235]
                %297 = vst [vmem:[%s243 + $0xd0] sm:%s235] %v296
                %v298 = vld [vmem:[%s242 + $0x1b0] sm:%s235]
                %299 = vst [vmem:[%s243 + $0xd8] sm:%s235] %v298
                %v300 = vld [vmem:[%s242 + $0x1c0] sm:%s235]
                %301 = vst [vmem:[%s243 + $0xe0] sm:%s235] %v300
                %v302 = vld [vmem:[%s242 + $0x1d0] sm:%s235]
                %303 = vst [vmem:[%s243 + $0xe8] sm:%s235] %v302
                %v304 = vld [vmem:[%s242 + $0x1e0] sm:%s235]
                %305 = vst [vmem:[%s243 + $0xf0] sm:%s235] %v304
                %v306 = vld [vmem:[%s242 + $0x1f0] sm:%s235]
                %307 = vst [vmem:[%s243 + $0xf8] sm:%s235] %v306
                %v308 = vld [vmem:[%s242 + $0x200] sm:%s235]
                %309 = vst [vmem:[%s243 + $0x100] sm:%s235] %v308
                %v310 = vld [vmem:[%s242 + $0x210] sm:%s235]
                %311 = vst [vmem:[%s243 + $0x108] sm:%s235] %v310
                %v312 = vld [vmem:[%s242 + $0x220] sm:%s235]
                %313 = vst [vmem:[%s243 + $0x110] sm:%s235] %v312
                %v314 = vld [vmem:[%s242 + $0x230] sm:%s235]
                %315 = vst [vmem:[%s243 + $0x118] sm:%s235] %v314
                %v316 = vld [vmem:[%s242 + $0x240] sm:%s235]
                %317 = vst [vmem:[%s243 + $0x120] sm:%s235] %v316
                %v318 = vld [vmem:[%s242 + $0x250] sm:%s235]
                %319 = vst [vmem:[%s243 + $0x128] sm:%s235] %v318
                %v320 = vld [vmem:[%s242 + $0x260] sm:%s235]
                %321 = vst [vmem:[%s243 + $0x130] sm:%s235] %v320
                %v322 = vld [vmem:[%s242 + $0x270] sm:%s235]
                %323 = vst [vmem:[%s243 + $0x138] sm:%s235] %v322
                %v324 = vld [vmem:[%s242 + $0x280] sm:%s235]
                %325 = vst [vmem:[%s243 + $0x140] sm:%s235] %v324
                %v326 = vld [vmem:[%s242 + $0x290] sm:%s235]
                %327 = vst [vmem:[%s243 + $0x148] sm:%s235] %v326
                %v328 = vld [vmem:[%s242 + $0x2a0] sm:%s235]
                %329 = vst [vmem:[%s243 + $0x150] sm:%s235] %v328
                %v330 = vld [vmem:[%s242 + $0x2b0] sm:%s235]
                %331 = vst [vmem:[%s243 + $0x158] sm:%s235] %v330
                %v332 = vld [vmem:[%s242 + $0x2c0] sm:%s235]
                %333 = vst [vmem:[%s243 + $0x160] sm:%s235] %v332
                %v334 = vld [vmem:[%s242 + $0x2d0] sm:%s235]
                %335 = vst [vmem:[%s243 + $0x168] sm:%s235] %v334
                %v336 = vld [vmem:[%s242 + $0x2e0] sm:%s235]
                %337 = vst [vmem:[%s243 + $0x170] sm:%s235] %v336
                %v338 = vld [vmem:[%s242 + $0x2f0] sm:%s235]
                %339 = vst [vmem:[%s243 + $0x178] sm:%s235] %v338
                %v340 = vld [vmem:[%s242 + $0x300] sm:%s235]
                %341 = vst [vmem:[%s243 + $0x180] sm:%s235] %v340
                %v342 = vld [vmem:[%s242 + $0x310] sm:%s235]
                %343 = vst [vmem:[%s243 + $0x188] sm:%s235] %v342
                %v344 = vld [vmem:[%s242 + $0x320] sm:%s235]
                %345 = vst [vmem:[%s243 + $0x190] sm:%s235] %v344
                %v346 = vld [vmem:[%s242 + $0x330] sm:%s235]
                %347 = vst [vmem:[%s243 + $0x198] sm:%s235] %v346
                %v348 = vld [vmem:[%s242 + $0x340] sm:%s235]
                %349 = vst [vmem:[%s243 + $0x1a0] sm:%s235] %v348
                %v350 = vld [vmem:[%s242 + $0x350] sm:%s235]
                %351 = vst [vmem:[%s243 + $0x1a8] sm:%s235] %v350
                %v352 = vld [vmem:[%s242 + $0x360] sm:%s235]
                %353 = vst [vmem:[%s243 + $0x1b0] sm:%s235] %v352
                %v354 = vld [vmem:[%s242 + $0x370] sm:%s235]
                %355 = vst [vmem:[%s243 + $0x1b8] sm:%s235] %v354
                %v356 = vld [vmem:[%s242 + $0x380] sm:%s235]
                %357 = vst [vmem:[%s243 + $0x1c0] sm:%s235] %v356
                %v358 = vld [vmem:[%s242 + $0x390] sm:%s235]
                %359 = vst [vmem:[%s243 + $0x1c8] sm:%s235] %v358
                %v360 = vld [vmem:[%s242 + $0x3a0] sm:%s235]
                %361 = vst [vmem:[%s243 + $0x1d0] sm:%s235] %v360
                %v362 = vld [vmem:[%s242 + $0x3b0] sm:%s235]
                %363 = vst [vmem:[%s243 + $0x1d8] sm:%s235] %v362
                %v364 = vld [vmem:[%s242 + $0x3c0] sm:%s235]
                %365 = vst [vmem:[%s243 + $0x1e0] sm:%s235] %v364
                %v366 = vld [vmem:[%s242 + $0x3d0] sm:%s235]
                %367 = vst [vmem:[%s243 + $0x1e8] sm:%s235] %v366
                %v368 = vld [vmem:[%s242 + $0x3e0] sm:%s235]
                %369 = vst [vmem:[%s243 + $0x1f0] sm:%s235] %v368
                %v370 = vld [vmem:[%s242 + $0x3f0] sm:%s235]
                %371 = vst [vmem:[%s243 + $0x1f8] sm:%s235] %v370
                %v372 = vld [vmem:[%s242 + $0x400] sm:%s235]
                %373 = vst [vmem:[%s243 + $0x200] sm:%s235] %v372
                %v374 = vld [vmem:[%s242 + $0x410] sm:%s235]
                %375 = vst [vmem:[%s243 + $0x208] sm:%s235] %v374
                %v376 = vld [vmem:[%s242 + $0x420] sm:%s235]
                %377 = vst [vmem:[%s243 + $0x210] sm:%s235] %v376
                %v378 = vld [vmem:[%s242 + $0x430] sm:%s235]
                %379 = vst [vmem:[%s243 + $0x218] sm:%s235] %v378
                %v380 = vld [vmem:[%s242 + $0x440] sm:%s235]
                %381 = vst [vmem:[%s243 + $0x220] sm:%s235] %v380
                %v382 = vld [vmem:[%s242 + $0x450] sm:%s235]
                %383 = vst [vmem:[%s243 + $0x228] sm:%s235] %v382
                %v384 = vld [vmem:[%s242 + $0x460] sm:%s235]
                %385 = vst [vmem:[%s243 + $0x230] sm:%s235] %v384
                %v386 = vld [vmem:[%s242 + $0x470] sm:%s235]
                %387 = vst [vmem:[%s243 + $0x238] sm:%s235] %v386
                %v388 = vld [vmem:[%s242 + $0x480] sm:%s235]
                %389 = vst [vmem:[%s243 + $0x240] sm:%s235] %v388
                %v390 = vld [vmem:[%s242 + $0x490] sm:%s235]
                %391 = vst [vmem:[%s243 + $0x248] sm:%s235] %v390
                %v392 = vld [vmem:[%s242 + $0x4a0] sm:%s235]
                %393 = vst [vmem:[%s243 + $0x250] sm:%s235] %v392
                %v394 = vld [vmem:[%s242 + $0x4b0] sm:%s235]
                %395 = vst [vmem:[%s243 + $0x258] sm:%s235] %v394
                %v396 = vld [vmem:[%s242 + $0x4c0] sm:%s235]
                %397 = vst [vmem:[%s243 + $0x260] sm:%s235] %v396
                %v398 = vld [vmem:[%s242 + $0x4d0] sm:%s235]
                %399 = vst [vmem:[%s243 + $0x268] sm:%s235] %v398
                %v400 = vld [vmem:[%s242 + $0x4e0] sm:%s235]
                %401 = vst [vmem:[%s243 + $0x270] sm:%s235] %v400
                %v402 = vld [vmem:[%s242 + $0x4f0] sm:%s235]
                %403 = vst [vmem:[%s243 + $0x278] sm:%s235] %v402
                %v404 = vld [vmem:[%s242 + $0x500] sm:%s235]
                %405 = vst [vmem:[%s243 + $0x280] sm:%s235] %v404
                %v406 = vld [vmem:[%s242 + $0x510] sm:%s235]
                %407 = vst [vmem:[%s243 + $0x288] sm:%s235] %v406
                %v408 = vld [vmem:[%s242 + $0x520] sm:%s235]
                %409 = vst [vmem:[%s243 + $0x290] sm:%s235] %v408
                %v410 = vld [vmem:[%s242 + $0x530] sm:%s235]
                %411 = vst [vmem:[%s243 + $0x298] sm:%s235] %v410
                %v412 = vld [vmem:[%s242 + $0x540] sm:%s235]
                %413 = vst [vmem:[%s243 + $0x2a0] sm:%s235] %v412
                %v414 = vld [vmem:[%s242 + $0x550] sm:%s235]
                %415 = vst [vmem:[%s243 + $0x2a8] sm:%s235] %v414
                %v416 = vld [vmem:[%s242 + $0x560] sm:%s235]
                %417 = vst [vmem:[%s243 + $0x2b0] sm:%s235] %v416
                %v418 = vld [vmem:[%s242 + $0x570] sm:%s235]
                %419 = vst [vmem:[%s243 + $0x2b8] sm:%s235] %v418
                %v420 = vld [vmem:[%s242 + $0x580] sm:%s235]
                %421 = vst [vmem:[%s243 + $0x2c0] sm:%s235] %v420
                %v422 = vld [vmem:[%s242 + $0x590] sm:%s235]
                %423 = vst [vmem:[%s243 + $0x2c8] sm:%s235] %v422
                %v424 = vld [vmem:[%s242 + $0x5a0] sm:%s235]
                %425 = vst [vmem:[%s243 + $0x2d0] sm:%s235] %v424
                %v426 = vld [vmem:[%s242 + $0x5b0] sm:%s235]
                %427 = vst [vmem:[%s243 + $0x2d8] sm:%s235] %v426
                %v428 = vld [vmem:[%s242 + $0x5c0] sm:%s235]
                %429 = vst [vmem:[%s243 + $0x2e0] sm:%s235] %v428
                %v430 = vld [vmem:[%s242 + $0x5d0] sm:%s235]
                %431 = vst [vmem:[%s243 + $0x2e8] sm:%s235] %v430
                %v432 = vld [vmem:[%s242 + $0x5e0] sm:%s235]
                %433 = vst [vmem:[%s243 + $0x2f0] sm:%s235] %v432
                %v434 = vld [vmem:[%s242 + $0x5f0] sm:%s235]
                %435 = vst [vmem:[%s243 + $0x2f8] sm:%s235] %v434
                %v436 = vld [vmem:[%s242 + $0x600] sm:%s235]
                %437 = vst [vmem:[%s243 + $0x300] sm:%s235] %v436
                %v438 = vld [vmem:[%s242 + $0x610] sm:%s235]
                %439 = vst [vmem:[%s243 + $0x308] sm:%s235] %v438
                %v440 = vld [vmem:[%s242 + $0x620] sm:%s235]
                %441 = vst [vmem:[%s243 + $0x310] sm:%s235] %v440
                %v442 = vld [vmem:[%s242 + $0x630] sm:%s235]
                %443 = vst [vmem:[%s243 + $0x318] sm:%s235] %v442
                %v444 = vld [vmem:[%s242 + $0x640] sm:%s235]
                %445 = vst [vmem:[%s243 + $0x320] sm:%s235] %v444
                %v446 = vld [vmem:[%s242 + $0x650] sm:%s235]
                %447 = vst [vmem:[%s243 + $0x328] sm:%s235] %v446
                %v448 = vld [vmem:[%s242 + $0x660] sm:%s235]
                %449 = vst [vmem:[%s243 + $0x330] sm:%s235] %v448
                %v450 = vld [vmem:[%s242 + $0x670] sm:%s235]
                %451 = vst [vmem:[%s243 + $0x338] sm:%s235] %v450
                %v452 = vld [vmem:[%s242 + $0x680] sm:%s235]
                %453 = vst [vmem:[%s243 + $0x340] sm:%s235] %v452
                %v454 = vld [vmem:[%s242 + $0x690] sm:%s235]
                %455 = vst [vmem:[%s243 + $0x348] sm:%s235] %v454
                %v456 = vld [vmem:[%s242 + $0x6a0] sm:%s235]
                %457 = vst [vmem:[%s243 + $0x350] sm:%s235] %v456
                %v458 = vld [vmem:[%s242 + $0x6b0] sm:%s235]
                %459 = vst [vmem:[%s243 + $0x358] sm:%s235] %v458
                %v460 = vld [vmem:[%s242 + $0x6c0] sm:%s235]
                %461 = vst [vmem:[%s243 + $0x360] sm:%s235] %v460
                %v462 = vld [vmem:[%s242 + $0x6d0] sm:%s235]
                %463 = vst [vmem:[%s243 + $0x368] sm:%s235] %v462
                %v464 = vld [vmem:[%s242 + $0x6e0] sm:%s235]
                %465 = vst [vmem:[%s243 + $0x370] sm:%s235] %v464
                %v466 = vld [vmem:[%s242 + $0x6f0] sm:%s235]
                %467 = vst [vmem:[%s243 + $0x378] sm:%s235] %v466
                %v468 = vld [vmem:[%s242 + $0x700] sm:%s235]
                %469 = vst [vmem:[%s243 + $0x380] sm:%s235] %v468
                %v470 = vld [vmem:[%s242 + $0x710] sm:%s235]
                %471 = vst [vmem:[%s243 + $0x388] sm:%s235] %v470
                %v472 = vld [vmem:[%s242 + $0x720] sm:%s235]
                %473 = vst [vmem:[%s243 + $0x390] sm:%s235] %v472
                %v474 = vld [vmem:[%s242 + $0x730] sm:%s235]
                %475 = vst [vmem:[%s243 + $0x398] sm:%s235] %v474
                %v476 = vld [vmem:[%s242 + $0x740] sm:%s235]
                %477 = vst [vmem:[%s243 + $0x3a0] sm:%s235] %v476
                %v478 = vld [vmem:[%s242 + $0x750] sm:%s235]
                %479 = vst [vmem:[%s243 + $0x3a8] sm:%s235] %v478
                %v480 = vld [vmem:[%s242 + $0x760] sm:%s235]
                %481 = vst [vmem:[%s243 + $0x3b0] sm:%s235] %v480
                %v482 = vld [vmem:[%s242 + $0x770] sm:%s235]
                %483 = vst [vmem:[%s243 + $0x3b8] sm:%s235] %v482
                %v484 = vld [vmem:[%s242 + $0x780] sm:%s235]
                %485 = vst [vmem:[%s243 + $0x3c0] sm:%s235] %v484
                %v486 = vld [vmem:[%s242 + $0x790] sm:%s235]
                %487 = vst [vmem:[%s243 + $0x3c8] sm:%s235] %v486
                %v488 = vld [vmem:[%s242 + $0x7a0] sm:%s235]
                %489 = vst [vmem:[%s243 + $0x3d0] sm:%s235] %v488
                %v490 = vld [vmem:[%s242 + $0x7b0] sm:%s235]
                %491 = vst [vmem:[%s243 + $0x3d8] sm:%s235] %v490
                %v492 = vld [vmem:[%s242 + $0x7c0] sm:%s235]
                %493 = vst [vmem:[%s243 + $0x3e0] sm:%s235] %v492
                %v494 = vld [vmem:[%s242 + $0x7d0] sm:%s235]
                %495 = vst [vmem:[%s243 + $0x3e8] sm:%s235] %v494
                %v496 = vld [vmem:[%s242 + $0x7e0] sm:%s235]
                %497 = vst [vmem:[%s243 + $0x3f0] sm:%s235] %v496
                %v498 = vld [vmem:[%s242 + $0x7f0] sm:%s235]
                %499 = vst [vmem:[%s243 + $0x3f8] sm:%s235] %v498
              $region45: #{ms_layer_forward.1} parent=39 // loop_footer
                %s241 = sadd.s32 1, %s237
              $region46: #{ms_layer_forward.1} parent=39 // loop_footer_branch
                %236 = sbr.rel target = $region42
              $region47: #{ms_layer_forward.1} parent=39 // loop_exit
                _
            $region40: #{ms_layer_forward.1} parent=31 // pred_fallthru
              _
          $region32: #{ms_layer_forward.1} parent=27 // pred_fallthru
            _
          %768 = vnop
        $region28: #{ms_layer_forward.1} parent=23 // pred_fallthru
          _
        // Predicated region
        $region63: #{ms_layer_forward.1} parent=23 // pred_check
          %p769 = pneg %p60
        $region64: #{ms_layer_forward.1} parent=23 // pred_check_branch
          %771 = sbr.rel (%p769) target = $region66
        $region65: #{ms_layer_forward.1} parent=23 // pred_region
          %s772 = sand.u32 %s50, 1
          %s773 = sand.u32 %s50, 1
          %s774 = smul.addr %s773, 256
          %s775 = scalar_lea.vmem [#allocation3], %s774
          %s776 = smul.addr %s14, 8
          %s777 = scalar_lea.vmem %s1, %s776
          // Predicated region
          $region67: #{ms_layer_forward.1} parent=65 // pred_check
            _
          $region68: #{ms_layer_forward.1} parent=65 // pred_check_branch
            %779 = sbr.rel (0) target = $region70
          $region69: #{ms_layer_forward.1} parent=65 // pred_region
            // Predicated region
            $region71: #{ms_layer_forward.1} parent=69 // pred_check
              _
            $region72: #{ms_layer_forward.1} parent=69 // pred_check_branch
              %781 = sbr.rel (0) target = $region74
            $region73: #{ms_layer_forward.1} parent=69 // pred_region
              // Predicated region
              $region86: #{ms_layer_forward.1} parent=73 // pred_check
                _
              $region87: #{ms_layer_forward.1} parent=73 // pred_check_branch
                %859 = sbr.rel (0) target = $region89
              $region88: #{ms_layer_forward.1} parent=73 // pred_region
                loop: start=0, step=1, limit=1
                $region90: #{ms_layer_forward.1} parent=88 // loop_pre_header
                  _
                $region91: #{ms_layer_forward.1} parent=88 // loop_header
                  %s861 = sphi 0, %s865
                  %p862 = scmp.ge.s32.totalorder %s861, 1
                  %s866 = sphi %s777, %s777
                  %s867 = sphi %s775, %s775
                $region92: #{ms_layer_forward.1} parent=88 // loop_header_branch
                  %864 = sbr.rel (%p862) target = $region96
                $region93: #{ms_layer_forward.1} parent=88 // loop_body
                  %v868 = vld [vmem:[%s866] sm:$0xff]
                  %869 = vst [vmem:[%s867] sm:$0xff] %v868
                  %v870 = vld [vmem:[%s866 + $0x10] sm:$0xff]
                  %871 = vst [vmem:[%s867 + $0x8] sm:$0xff] %v870
                  %v872 = vld [vmem:[%s866 + $0x20] sm:$0xff]
                  %873 = vst [vmem:[%s867 + $0x10] sm:$0xff] %v872
                  %v874 = vld [vmem:[%s866 + $0x30] sm:$0xff]
                  %875 = vst [vmem:[%s867 + $0x18] sm:$0xff] %v874
                  %v876 = vld [vmem:[%s866 + $0x40] sm:$0xff]
                  %877 = vst [vmem:[%s867 + $0x20] sm:$0xff] %v876
                  %v878 = vld [vmem:[%s866 + $0x50] sm:$0xff]
                  %879 = vst [vmem:[%s867 + $0x28] sm:$0xff] %v878
                  %v880 = vld [vmem:[%s866 + $0x60] sm:$0xff]
                  %881 = vst [vmem:[%s867 + $0x30] sm:$0xff] %v880
                  %v882 = vld [vmem:[%s866 + $0x70] sm:$0xff]
                  %883 = vst [vmem:[%s867 + $0x38] sm:$0xff] %v882
                  %v884 = vld [vmem:[%s866 + $0x80] sm:$0xff]
                  %885 = vst [vmem:[%s867 + $0x40] sm:$0xff] %v884
                  %v886 = vld [vmem:[%s866 + $0x90] sm:$0xff]
                  %887 = vst [vmem:[%s867 + $0x48] sm:$0xff] %v886
                  %v888 = vld [vmem:[%s866 + $0xa0] sm:$0xff]
                  %889 = vst [vmem:[%s867 + $0x50] sm:$0xff] %v888
                  %v890 = vld [vmem:[%s866 + $0xb0] sm:$0xff]
                  %891 = vst [vmem:[%s867 + $0x58] sm:$0xff] %v890
                  %v892 = vld [vmem:[%s866 + $0xc0] sm:$0xff]
                  %893 = vst [vmem:[%s867 + $0x60] sm:$0xff] %v892
                  %v894 = vld [vmem:[%s866 + $0xd0] sm:$0xff]
                  %895 = vst [vmem:[%s867 + $0x68] sm:$0xff] %v894
                  %v896 = vld [vmem:[%s866 + $0xe0] sm:$0xff]
                  %897 = vst [vmem:[%s867 + $0x70] sm:$0xff] %v896
                  %v898 = vld [vmem:[%s866 + $0xf0] sm:$0xff]
                  %899 = vst [vmem:[%s867 + $0x78] sm:$0xff] %v898
                  %v900 = vld [vmem:[%s866 + $0x100] sm:$0xff]
                  %901 = vst [vmem:[%s867 + $0x80] sm:$0xff] %v900
                  %v902 = vld [vmem:[%s866 + $0x110] sm:$0xff]
                  %903 = vst [vmem:[%s867 + $0x88] sm:$0xff] %v902
                  %v904 = vld [vmem:[%s866 + $0x120] sm:$0xff]
                  %905 = vst [vmem:[%s867 + $0x90] sm:$0xff] %v904
                  %v906 = vld [vmem:[%s866 + $0x130] sm:$0xff]
                  %907 = vst [vmem:[%s867 + $0x98] sm:$0xff] %v906
                  %v908 = vld [vmem:[%s866 + $0x140] sm:$0xff]
                  %909 = vst [vmem:[%s867 + $0xa0] sm:$0xff] %v908
                  %v910 = vld [vmem:[%s866 + $0x150] sm:$0xff]
                  %911 = vst [vmem:[%s867 + $0xa8] sm:$0xff] %v910
                  %v912 = vld [vmem:[%s866 + $0x160] sm:$0xff]
                  %913 = vst [vmem:[%s867 + $0xb0] sm:$0xff] %v912
                  %v914 = vld [vmem:[%s866 + $0x170] sm:$0xff]
                  %915 = vst [vmem:[%s867 + $0xb8] sm:$0xff] %v914
                  %v916 = vld [vmem:[%s866 + $0x180] sm:$0xff]
                  %917 = vst [vmem:[%s867 + $0xc0] sm:$0xff] %v916
                  %v918 = vld [vmem:[%s866 + $0x190] sm:$0xff]
                  %919 = vst [vmem:[%s867 + $0xc8] sm:$0xff] %v918
                  %v920 = vld [vmem:[%s866 + $0x1a0] sm:$0xff]
                  %921 = vst [vmem:[%s867 + $0xd0] sm:$0xff] %v920
                  %v922 = vld [vmem:[%s866 + $0x1b0] sm:$0xff]
                  %923 = vst [vmem:[%s867 + $0xd8] sm:$0xff] %v922
                  %v924 = vld [vmem:[%s866 + $0x1c0] sm:$0xff]
                  %925 = vst [vmem:[%s867 + $0xe0] sm:$0xff] %v924
                  %v926 = vld [vmem:[%s866 + $0x1d0] sm:$0xff]
                  %927 = vst [vmem:[%s867 + $0xe8] sm:$0xff] %v926
                  %v928 = vld [vmem:[%s866 + $0x1e0] sm:$0xff]
                  %929 = vst [vmem:[%s867 + $0xf0] sm:$0xff] %v928
                  %v930 = vld [vmem:[%s866 + $0x1f0] sm:$0xff]
                  %931 = vst [vmem:[%s867 + $0xf8] sm:$0xff] %v930
                $region94: #{ms_layer_forward.1} parent=88 // loop_footer
                  %s865 = sadd.s32 1, %s861
                $region95: #{ms_layer_forward.1} parent=88 // loop_footer_branch
                  %860 = sbr.rel target = $region91
                $region96: #{ms_layer_forward.1} parent=88 // loop_exit
                  _
              $region89: #{ms_layer_forward.1} parent=73 // pred_fallthru
                _
              // Predicated region
              $region97: #{ms_layer_forward.1} parent=73 // pred_check
                _
              $region98: #{ms_layer_forward.1} parent=73 // pred_check_branch
                %933 = sbr.rel target = $region100
              $region99: #{ms_layer_forward.1} parent=73 // pred_region
                _
              $region100: #{ms_layer_forward.1} parent=73 // pred_fallthru
                _
            $region74: #{ms_layer_forward.1} parent=69 // pred_fallthru
              _
            // Predicated region
            $region75: #{ms_layer_forward.1} parent=69 // pred_check
              _
            $region76: #{ms_layer_forward.1} parent=69 // pred_check_branch
              %783 = sbr.rel target = $region78
            $region77: #{ms_layer_forward.1} parent=69 // pred_region
              %s785 = ssub.s32 256, 1
              loop: start=0, step=1, limit=1
              $region79: #{ms_layer_forward.1} parent=77 // loop_pre_header
                _
              $region80: #{ms_layer_forward.1} parent=77 // loop_header
                %s787 = sphi 0, %s791
                %p788 = scmp.ge.s32.totalorder %s787, 1
                %s792 = sphi %s777, %s777
                %s793 = sphi %s775, %s775
              $region81: #{ms_layer_forward.1} parent=77 // loop_header_branch
                %790 = sbr.rel (%p788) target = $region85
              $region82: #{ms_layer_forward.1} parent=77 // loop_body
                %v794 = vld [vmem:[%s792] sm:%s785]
                %795 = vst [vmem:[%s793] sm:%s785] %v794
                %v796 = vld [vmem:[%s792 + $0x10] sm:%s785]
                %797 = vst [vmem:[%s793 + $0x8] sm:%s785] %v796
                %v798 = vld [vmem:[%s792 + $0x20] sm:%s785]
                %799 = vst [vmem:[%s793 + $0x10] sm:%s785] %v798
                %v800 = vld [vmem:[%s792 + $0x30] sm:%s785]
                %801 = vst [vmem:[%s793 + $0x18] sm:%s785] %v800
                %v802 = vld [vmem:[%s792 + $0x40] sm:%s785]
                %803 = vst [vmem:[%s793 + $0x20] sm:%s785] %v802
                %v804 = vld [vmem:[%s792 + $0x50] sm:%s785]
                %805 = vst [vmem:[%s793 + $0x28] sm:%s785] %v804
                %v806 = vld [vmem:[%s792 + $0x60] sm:%s785]
                %807 = vst [vmem:[%s793 + $0x30] sm:%s785] %v806
                %v808 = vld [vmem:[%s792 + $0x70] sm:%s785]
                %809 = vst [vmem:[%s793 + $0x38] sm:%s785] %v808
                %v810 = vld [vmem:[%s792 + $0x80] sm:%s785]
                %811 = vst [vmem:[%s793 + $0x40] sm:%s785] %v810
                %v812 = vld [vmem:[%s792 + $0x90] sm:%s785]
                %813 = vst [vmem:[%s793 + $0x48] sm:%s785] %v812
                %v814 = vld [vmem:[%s792 + $0xa0] sm:%s785]
                %815 = vst [vmem:[%s793 + $0x50] sm:%s785] %v814
                %v816 = vld [vmem:[%s792 + $0xb0] sm:%s785]
                %817 = vst [vmem:[%s793 + $0x58] sm:%s785] %v816
                %v818 = vld [vmem:[%s792 + $0xc0] sm:%s785]
                %819 = vst [vmem:[%s793 + $0x60] sm:%s785] %v818
                %v820 = vld [vmem:[%s792 + $0xd0] sm:%s785]
                %821 = vst [vmem:[%s793 + $0x68] sm:%s785] %v820
                %v822 = vld [vmem:[%s792 + $0xe0] sm:%s785]
                %823 = vst [vmem:[%s793 + $0x70] sm:%s785] %v822
                %v824 = vld [vmem:[%s792 + $0xf0] sm:%s785]
                %825 = vst [vmem:[%s793 + $0x78] sm:%s785] %v824
                %v826 = vld [vmem:[%s792 + $0x100] sm:%s785]
                %827 = vst [vmem:[%s793 + $0x80] sm:%s785] %v826
                %v828 = vld [vmem:[%s792 + $0x110] sm:%s785]
                %829 = vst [vmem:[%s793 + $0x88] sm:%s785] %v828
                %v830 = vld [vmem:[%s792 + $0x120] sm:%s785]
                %831 = vst [vmem:[%s793 + $0x90] sm:%s785] %v830
                %v832 = vld [vmem:[%s792 + $0x130] sm:%s785]
                %833 = vst [vmem:[%s793 + $0x98] sm:%s785] %v832
                %v834 = vld [vmem:[%s792 + $0x140] sm:%s785]
                %835 = vst [vmem:[%s793 + $0xa0] sm:%s785] %v834
                %v836 = vld [vmem:[%s792 + $0x150] sm:%s785]
                %837 = vst [vmem:[%s793 + $0xa8] sm:%s785] %v836
                %v838 = vld [vmem:[%s792 + $0x160] sm:%s785]
                %839 = vst [vmem:[%s793 + $0xb0] sm:%s785] %v838
                %v840 = vld [vmem:[%s792 + $0x170] sm:%s785]
                %841 = vst [vmem:[%s793 + $0xb8] sm:%s785] %v840
                %v842 = vld [vmem:[%s792 + $0x180] sm:%s785]
                %843 = vst [vmem:[%s793 + $0xc0] sm:%s785] %v842
                %v844 = vld [vmem:[%s792 + $0x190] sm:%s785]
                %845 = vst [vmem:[%s793 + $0xc8] sm:%s785] %v844
                %v846 = vld [vmem:[%s792 + $0x1a0] sm:%s785]
                %847 = vst [vmem:[%s793 + $0xd0] sm:%s785] %v846
                %v848 = vld [vmem:[%s792 + $0x1b0] sm:%s785]
                %849 = vst [vmem:[%s793 + $0xd8] sm:%s785] %v848
                %v850 = vld [vmem:[%s792 + $0x1c0] sm:%s785]
                %851 = vst [vmem:[%s793 + $0xe0] sm:%s785] %v850
                %v852 = vld [vmem:[%s792 + $0x1d0] sm:%s785]
                %853 = vst [vmem:[%s793 + $0xe8] sm:%s785] %v852
                %v854 = vld [vmem:[%s792 + $0x1e0] sm:%s785]
                %855 = vst [vmem:[%s793 + $0xf0] sm:%s785] %v854
                %v856 = vld [vmem:[%s792 + $0x1f0] sm:%s785]
                %857 = vst [vmem:[%s793 + $0xf8] sm:%s785] %v856
              $region83: #{ms_layer_forward.1} parent=77 // loop_footer
                %s791 = sadd.s32 1, %s787
              $region84: #{ms_layer_forward.1} parent=77 // loop_footer_branch
                %786 = sbr.rel target = $region80
              $region85: #{ms_layer_forward.1} parent=77 // loop_exit
                _
            $region78: #{ms_layer_forward.1} parent=69 // pred_fallthru
              _
          $region70: #{ms_layer_forward.1} parent=65 // pred_fallthru
            _
          %934 = vnop
        $region66: #{ms_layer_forward.1} parent=23 // pred_fallthru
          _
        // Predicated region
        $region101: #{ms_layer_forward.1} parent=23 // pred_check
          %p935 = pneg %p86
        $region102: #{ms_layer_forward.1} parent=23 // pred_check_branch
          %937 = sbr.rel (%p935) target = $region104
        $region103: #{ms_layer_forward.1} parent=23 // pred_region
          %s938 = sand.u32 %s76, 1
          %s939 = sand.u32 %s76, 1
          %s940 = smul.addr %s939, 16
          %s941 = scalar_lea.vmem [#allocation4], %s940
          %s942 = scalar_lea.vmem %s2, %s14
          // Predicated region
          $region105: #{ms_layer_forward.1} parent=103 // pred_check
            _
          $region106: #{ms_layer_forward.1} parent=103 // pred_check_branch
            %944 = sbr.rel (0) target = $region108
          $region107: #{ms_layer_forward.1} parent=103 // pred_region
            // Predicated region
            $region109: #{ms_layer_forward.1} parent=107 // pred_check
              _
            $region110: #{ms_layer_forward.1} parent=107 // pred_check_branch
              %946 = sbr.rel target = $region112
            $region111: #{ms_layer_forward.1} parent=107 // pred_region
              // Predicated region
              $region124: #{ms_layer_forward.1} parent=111 // pred_check
                _
              $region125: #{ms_layer_forward.1} parent=111 // pred_check_branch
                %992 = sbr.rel (0) target = $region127
              $region126: #{ms_layer_forward.1} parent=111 // pred_region
                loop: start=0, step=1, limit=1
                $region128: #{ms_layer_forward.1} parent=126 // loop_pre_header
                  _
                $region129: #{ms_layer_forward.1} parent=126 // loop_header
                  %s994 = sphi 0, %s998
                  %p995 = scmp.ge.s32.totalorder %s994, 1
                  %s999 = sphi %s942, %s942
                  %s1000 = sphi %s941, %s941
                $region130: #{ms_layer_forward.1} parent=126 // loop_header_branch
                  %997 = sbr.rel (%p995) target = $region134
                $region131: #{ms_layer_forward.1} parent=126 // loop_body
                  _
                $region132: #{ms_layer_forward.1} parent=126 // loop_footer
                  %s998 = sadd.s32 1, %s994
                $region133: #{ms_layer_forward.1} parent=126 // loop_footer_branch
                  %993 = sbr.rel target = $region129
                $region134: #{ms_layer_forward.1} parent=126 // loop_exit
                  _
                %s1002 = ssub.s32 2, 1
                loop: start=0, step=1, limit=1
                $region135: #{ms_layer_forward.1} parent=126 // loop_pre_header
                  _
                $region136: #{ms_layer_forward.1} parent=126 // loop_header
                  %s1004 = sphi 0, %s1008
                  %p1005 = scmp.ge.s32.totalorder %s1004, 1
                  %s1009 = sphi %s942, %s942
                  %s1010 = sphi %s941, %s941
                $region137: #{ms_layer_forward.1} parent=126 // loop_header_branch
                  %1007 = sbr.rel (%p1005) target = $region141
                $region138: #{ms_layer_forward.1} parent=126 // loop_body
                  %v1011 = vld [vmem:[%s1009] sm:%s1002]
                  %1012 = vst [vmem:[%s1010] sm:%s1002] %v1011
                  %v1013 = vld [vmem:[%s1009 + $0x2] sm:%s1002]
                  %1014 = vst [vmem:[%s1010 + $0x1] sm:%s1002] %v1013
                  %v1015 = vld [vmem:[%s1009 + $0x4] sm:%s1002]
                  %1016 = vst [vmem:[%s1010 + $0x2] sm:%s1002] %v1015
                  %v1017 = vld [vmem:[%s1009 + $0x6] sm:%s1002]
                  %1018 = vst [vmem:[%s1010 + $0x3] sm:%s1002] %v1017
                  %v1019 = vld [vmem:[%s1009 + $0x8] sm:%s1002]
                  %1020 = vst [vmem:[%s1010 + $0x4] sm:%s1002] %v1019
                  %v1021 = vld [vmem:[%s1009 + $0xa] sm:%s1002]
                  %1022 = vst [vmem:[%s1010 + $0x5] sm:%s1002] %v1021
                  %v1023 = vld [vmem:[%s1009 + $0xc] sm:%s1002]
                  %1024 = vst [vmem:[%s1010 + $0x6] sm:%s1002] %v1023
                  %v1025 = vld [vmem:[%s1009 + $0xe] sm:%s1002]
                  %1026 = vst [vmem:[%s1010 + $0x7] sm:%s1002] %v1025
                  %v1027 = vld [vmem:[%s1009 + $0x10] sm:%s1002]
                  %1028 = vst [vmem:[%s1010 + $0x8] sm:%s1002] %v1027
                  %v1029 = vld [vmem:[%s1009 + $0x12] sm:%s1002]
                  %1030 = vst [vmem:[%s1010 + $0x9] sm:%s1002] %v1029
                  %v1031 = vld [vmem:[%s1009 + $0x14] sm:%s1002]
                  %1032 = vst [vmem:[%s1010 + $0xa] sm:%s1002] %v1031
                  %v1033 = vld [vmem:[%s1009 + $0x16] sm:%s1002]
                  %1034 = vst [vmem:[%s1010 + $0xb] sm:%s1002] %v1033
                  %v1035 = vld [vmem:[%s1009 + $0x18] sm:%s1002]
                  %1036 = vst [vmem:[%s1010 + $0xc] sm:%s1002] %v1035
                  %v1037 = vld [vmem:[%s1009 + $0x1a] sm:%s1002]
                  %1038 = vst [vmem:[%s1010 + $0xd] sm:%s1002] %v1037
                  %v1039 = vld [vmem:[%s1009 + $0x1c] sm:%s1002]
                  %1040 = vst [vmem:[%s1010 + $0xe] sm:%s1002] %v1039
                  %v1041 = vld [vmem:[%s1009 + $0x1e] sm:%s1002]
                  %1042 = vst [vmem:[%s1010 + $0xf] sm:%s1002] %v1041
                $region139: #{ms_layer_forward.1} parent=126 // loop_footer
                  %s1008 = sadd.s32 1, %s1004
                $region140: #{ms_layer_forward.1} parent=126 // loop_footer_branch
                  %1003 = sbr.rel target = $region136
                $region141: #{ms_layer_forward.1} parent=126 // loop_exit
                  _
              $region127: #{ms_layer_forward.1} parent=111 // pred_fallthru
                _
            $region112: #{ms_layer_forward.1} parent=107 // pred_fallthru
              _
            // Predicated region
            $region113: #{ms_layer_forward.1} parent=107 // pred_check
              _
            $region114: #{ms_layer_forward.1} parent=107 // pred_check_branch
              %948 = sbr.rel (0) target = $region116
            $region115: #{ms_layer_forward.1} parent=107 // pred_region
              %s950 = ssub.s32 2, 1
              loop: start=0, step=1, limit=1
              $region117: #{ms_layer_forward.1} parent=115 // loop_pre_header
                _
              $region118: #{ms_layer_forward.1} parent=115 // loop_header
                %s952 = sphi 0, %s956
                %p953 = scmp.ge.s32.totalorder %s952, 1
                %s957 = sphi %s942, %s942
                %s958 = sphi %s941, %s941
              $region119: #{ms_layer_forward.1} parent=115 // loop_header_branch
                %955 = sbr.rel (%p953) target = $region123
              $region120: #{ms_layer_forward.1} parent=115 // loop_body
                %v959 = vld [vmem:[%s957] sm:%s950]
                %960 = vst [vmem:[%s958] sm:%s950] %v959
                %v961 = vld [vmem:[%s957 + $0x2] sm:%s950]
                %962 = vst [vmem:[%s958 + $0x1] sm:%s950] %v961
                %v963 = vld [vmem:[%s957 + $0x4] sm:%s950]
                %964 = vst [vmem:[%s958 + $0x2] sm:%s950] %v963
                %v965 = vld [vmem:[%s957 + $0x6] sm:%s950]
                %966 = vst [vmem:[%s958 + $0x3] sm:%s950] %v965
                %v967 = vld [vmem:[%s957 + $0x8] sm:%s950]
                %968 = vst [vmem:[%s958 + $0x4] sm:%s950] %v967
                %v969 = vld [vmem:[%s957 + $0xa] sm:%s950]
                %970 = vst [vmem:[%s958 + $0x5] sm:%s950] %v969
                %v971 = vld [vmem:[%s957 + $0xc] sm:%s950]
                %972 = vst [vmem:[%s958 + $0x6] sm:%s950] %v971
                %v973 = vld [vmem:[%s957 + $0xe] sm:%s950]
                %974 = vst [vmem:[%s958 + $0x7] sm:%s950] %v973
                %v975 = vld [vmem:[%s957 + $0x10] sm:%s950]
                %976 = vst [vmem:[%s958 + $0x8] sm:%s950] %v975
                %v977 = vld [vmem:[%s957 + $0x12] sm:%s950]
                %978 = vst [vmem:[%s958 + $0x9] sm:%s950] %v977
                %v979 = vld [vmem:[%s957 + $0x14] sm:%s950]
                %980 = vst [vmem:[%s958 + $0xa] sm:%s950] %v979
                %v981 = vld [vmem:[%s957 + $0x16] sm:%s950]
                %982 = vst [vmem:[%s958 + $0xb] sm:%s950] %v981
                %v983 = vld [vmem:[%s957 + $0x18] sm:%s950]
                %984 = vst [vmem:[%s958 + $0xc] sm:%s950] %v983
                %v985 = vld [vmem:[%s957 + $0x1a] sm:%s950]
                %986 = vst [vmem:[%s958 + $0xd] sm:%s950] %v985
                %v987 = vld [vmem:[%s957 + $0x1c] sm:%s950]
                %988 = vst [vmem:[%s958 + $0xe] sm:%s950] %v987
                %v989 = vld [vmem:[%s957 + $0x1e] sm:%s950]
                %990 = vst [vmem:[%s958 + $0xf] sm:%s950] %v989
              $region121: #{ms_layer_forward.1} parent=115 // loop_footer
                %s956 = sadd.s32 1, %s952
              $region122: #{ms_layer_forward.1} parent=115 // loop_footer_branch
                %951 = sbr.rel target = $region118
              $region123: #{ms_layer_forward.1} parent=115 // loop_exit
                _
            $region116: #{ms_layer_forward.1} parent=107 // pred_fallthru
              _
          $region108: #{ms_layer_forward.1} parent=103 // pred_fallthru
            _
          %1043 = vnop
        $region104: #{ms_layer_forward.1} parent=23 // pred_fallthru
          _
      $region24: #{ms_layer_forward.1} parent=5 // pred_fallthru
        _
      %p1044 = scmp.le.s32.totalorder 1, %s14
      %p1045 = scmp.lt.s32.totalorder %s14, 3
      %p1046 = pnand %p1044, %p1045
      %p1047 = pneg %p1046
      // Predicated region
      $region142: #{ms_layer_forward.1} parent=5 // pred_check
        _
      $region143: #{ms_layer_forward.1} parent=5 // pred_check_branch
        %1049 = sbr.rel (%p1046) target = $region145
      $region144: #{ms_layer_forward.1} parent=5 // pred_region
        %s1050 = ssub.s32 %s14, 1
        %s1051 = sand.u32 %s27, 1
        %s1052 = sand.u32 %s27, 1
        %s1053 = smul.addr %s1052, 1024
        %s1054 = scalar_lea.vmem [#allocation2], %s1053
        // Predicated region
        $region146: #{ms_layer_forward.1} parent=144 // pred_check
          %p1055 = pneg %p40
        $region147: #{ms_layer_forward.1} parent=144 // pred_check_branch
          %1057 = sbr.rel (%p1055) target = $region149
        $region148: #{ms_layer_forward.1} parent=144 // pred_region
          _
        $region149: #{ms_layer_forward.1} parent=144 // pred_fallthru
          _
        %s1058 = sand.u32 %s53, 1
        %s1059 = sand.u32 %s53, 1
        %s1060 = smul.addr %s1059, 256
        %s1061 = scalar_lea.vmem [#allocation3], %s1060
        // Predicated region
        $region150: #{ms_layer_forward.1} parent=144 // pred_check
          %p1062 = pneg %p66
        $region151: #{ms_layer_forward.1} parent=144 // pred_check_branch
          %1064 = sbr.rel (%p1062) target = $region153
        $region152: #{ms_layer_forward.1} parent=144 // pred_region
          _
        $region153: #{ms_layer_forward.1} parent=144 // pred_fallthru
          _
        %s1065 = sand.u32 %s79, 1
        %s1066 = sand.u32 %s79, 1
        %s1067 = smul.addr %s1066, 16
        %s1068 = scalar_lea.vmem [#allocation4], %s1067
        // Predicated region
        $region154: #{ms_layer_forward.1} parent=144 // pred_check
          %p1069 = pneg %p92
        $region155: #{ms_layer_forward.1} parent=144 // pred_check_branch
          %1071 = sbr.rel (%p1069) target = $region157
        $region156: #{ms_layer_forward.1} parent=144 // pred_region
          _
        $region157: #{ms_layer_forward.1} parent=144 // pred_fallthru
          _
        // Predicated region
        $region158: #{ms_layer_forward.1} parent=144 // pred_check
          %p1072 = pneg %p134
        $region159: #{ms_layer_forward.1} parent=144 // pred_check_branch
          %1074 = sbr.rel (%p1072) target = $region161
        $region160: #{ms_layer_forward.1} parent=144 // pred_region
          %1075 = dma.done [#allocation6], 16
        $region161: #{ms_layer_forward.1} parent=144 // pred_fallthru
          _
        %1076 = sfence
        %s1077 = sand.u32 %s27, 1
        %s1078 = sand.u32 %s27, 1
        %s1079 = smul.addr %s1078, 1024
        %s1080 = scalar_lea.vmem [#allocation2], %s1079
        %p1081 = pneg %p40
        %p1082 = pneg %p37
        %s1083 = sand.u32 %s53, 1
        %s1084 = sand.u32 %s53, 1
        %s1085 = smul.addr %s1084, 256
        %s1086 = scalar_lea.vmem [#allocation3], %s1085
        %p1087 = pneg %p66
        %p1088 = pneg %p63
        %s1089 = sand.u32 %s79, 1
        %s1090 = sand.u32 %s79, 1
        %s1091 = smul.addr %s1090, 16
        %s1092 = scalar_lea.vmem [#allocation4], %s1091
        %p1093 = pneg %p92
        %p1094 = pneg %p89
        %p1095 = pneg %p113
        %p1096 = pneg %p110
        %p1097 = pneg %p134
        %p1098 = pneg %p131
        %p1099 = pneg %p160
        %p1100 = pneg %p157
        %s1101 = sand.u32 %s147, 1
        %s1102 = sand.u32 %s147, 1
        %s1103 = smul.addr %s1102, 1024
        %s1104 = scalar_lea.vmem [#allocation7], %s1103
        %p1105 = pneg %p186
        %p1106 = pneg %p183
        %s1107 = sand.u32 %s173, 1
        %s1108 = sand.u32 %s173, 1
        %s1109 = smul.addr %s1108, 48
        %s1110 = scalar_lea.vmem [#allocation8], %s1109
        %s1111 = sld [smem:[#allocation5]]
        %s1112 = sld [smem:[#allocation5 + $0x1]]
        %v1113 = vld [vmem:[%s1061] sm:$0xff]
        %v1114 = vld [vmem:[%s1061 + $0x8] sm:$0xff]
        %v1115 = vld [vmem:[%s1061 + $0x10] sm:$0xff]
        %v1116 = vld [vmem:[%s1061 + $0x18] sm:$0xff]
        %v1117 = vld [vmem:[%s1061 + $0x20] sm:$0xff]
        %v1118 = vld [vmem:[%s1061 + $0x28] sm:$0xff]
        %v1119 = vld [vmem:[%s1061 + $0x30] sm:$0xff]
        %v1120 = vld [vmem:[%s1061 + $0x38] sm:$0xff]
        %v1121 = vld [vmem:[%s1061 + $0x40] sm:$0xff]
        %v1122 = vld [vmem:[%s1061 + $0x48] sm:$0xff]
        %v1123 = vld [vmem:[%s1061 + $0x50] sm:$0xff]
        %v1124 = vld [vmem:[%s1061 + $0x58] sm:$0xff]
        %v1125 = vld [vmem:[%s1061 + $0x60] sm:$0xff]
        %v1126 = vld [vmem:[%s1061 + $0x68] sm:$0xff]
        %v1127 = vld [vmem:[%s1061 + $0x70] sm:$0xff]
        %v1128 = vld [vmem:[%s1061 + $0x78] sm:$0xff]
        %v1129 = vld [vmem:[%s1061 + $0x80] sm:$0xff]
        %v1130 = vld [vmem:[%s1061 + $0x88] sm:$0xff]
        %v1131 = vld [vmem:[%s1061 + $0x90] sm:$0xff]
        %v1132 = vld [vmem:[%s1061 + $0x98] sm:$0xff]
        %v1133 = vld [vmem:[%s1061 + $0xa0] sm:$0xff]
        %v1134 = vld [vmem:[%s1061 + $0xa8] sm:$0xff]
        %v1135 = vld [vmem:[%s1061 + $0xb0] sm:$0xff]
        %v1136 = vld [vmem:[%s1061 + $0xb8] sm:$0xff]
        %v1137 = vld [vmem:[%s1061 + $0xc0] sm:$0xff]
        %v1138 = vld [vmem:[%s1061 + $0xc8] sm:$0xff]
        %v1139 = vld [vmem:[%s1061 + $0xd0] sm:$0xff]
        %v1140 = vld [vmem:[%s1061 + $0xd8] sm:$0xff]
        %v1141 = vld [vmem:[%s1061 + $0xe0] sm:$0xff]
        %v1142 = vld [vmem:[%s1061 + $0xe8] sm:$0xff]
        %v1143 = vld [vmem:[%s1061 + $0xf0] sm:$0xff]
        %v1144 = vld [vmem:[%s1061 + $0xf8] sm:$0xff]
        %v1145 = vld [vmem:[%s1068] sm:$0x1]
        %v1146 = vld [vmem:[%s1068 + $0x1] sm:$0x1]
        %v1147 = vld [vmem:[%s1068 + $0x2] sm:$0x1]
        %v1148 = vld [vmem:[%s1068 + $0x3] sm:$0x1]
        %v1149 = vld [vmem:[%s1068 + $0x4] sm:$0x1]
        %v1150 = vld [vmem:[%s1068 + $0x5] sm:$0x1]
        %v1151 = vld [vmem:[%s1068 + $0x6] sm:$0x1]
        %v1152 = vld [vmem:[%s1068 + $0x7] sm:$0x1]
        %v1153 = vld [vmem:[%s1068 + $0x8] sm:$0x1]
        %v1154 = vld [vmem:[%s1068 + $0x9] sm:$0x1]
        %v1155 = vld [vmem:[%s1068 + $0xa] sm:$0x1]
        %v1156 = vld [vmem:[%s1068 + $0xb] sm:$0x1]
        %v1157 = vld [vmem:[%s1068 + $0xc] sm:$0x1]
        %v1158 = vld [vmem:[%s1068 + $0xd] sm:$0x1]
        %v1159 = vld [vmem:[%s1068 + $0xe] sm:$0x1]
        %v1160 = vld [vmem:[%s1068 + $0xf] sm:$0x1]
        %v1161 = vld [vmem:[%s3] sm:$0xff]
        %v1162 = vld [vmem:[%s3 + $0x8] sm:$0xff]
        %v1163 = vld [vmem:[%s3 + $0x10] sm:$0xff]
        %v1164 = vld [vmem:[%s3 + $0x18] sm:$0xff]
        %v1165 = vld [vmem:[%s3 + $0x20] sm:$0xff]
        %v1166 = vld [vmem:[%s3 + $0x28] sm:$0xff]
        %v1167 = vld [vmem:[%s3 + $0x30] sm:$0xff]
        %v1168 = vld [vmem:[%s3 + $0x38] sm:$0xff]
        %v1169 = vld [vmem:[%s3 + $0x40] sm:$0xff]
        %v1170 = vld [vmem:[%s3 + $0x48] sm:$0xff]
        %v1171 = vld [vmem:[%s3 + $0x50] sm:$0xff]
        %v1172 = vld [vmem:[%s3 + $0x58] sm:$0xff]
        %v1173 = vld [vmem:[%s3 + $0x60] sm:$0xff]
        %v1174 = vld [vmem:[%s3 + $0x68] sm:$0xff]
        %v1175 = vld [vmem:[%s3 + $0x70] sm:$0xff]
        %v1176 = vld [vmem:[%s3 + $0x78] sm:$0xff]
        %v1177 = vld [vmem:[%s3 + $0x80] sm:$0xff]
        %v1178 = vld [vmem:[%s3 + $0x88] sm:$0xff]
        %v1179 = vld [vmem:[%s3 + $0x90] sm:$0xff]
        %v1180 = vld [vmem:[%s3 + $0x98] sm:$0xff]
        %v1181 = vld [vmem:[%s3 + $0xa0] sm:$0xff]
        %v1182 = vld [vmem:[%s3 + $0xa8] sm:$0xff]
        %v1183 = vld [vmem:[%s3 + $0xb0] sm:$0xff]
        %v1184 = vld [vmem:[%s3 + $0xb8] sm:$0xff]
        %v1185 = vld [vmem:[%s3 + $0xc0] sm:$0xff]
        %v1186 = vld [vmem:[%s3 + $0xc8] sm:$0xff]
        %v1187 = vld [vmem:[%s3 + $0xd0] sm:$0xff]
        %v1188 = vld [vmem:[%s3 + $0xd8] sm:$0xff]
        %v1189 = vld [vmem:[%s3 + $0xe0] sm:$0xff]
        %v1190 = vld [vmem:[%s3 + $0xe8] sm:$0xff]
        %v1191 = vld [vmem:[%s3 + $0xf0] sm:$0xff]
        %v1192 = vld [vmem:[%s3 + $0xf8] sm:$0xff]
        %1194 = vset.pattern.permute.xlu0 0
        %1195 = vperm.xlu0 %1194, %v1161
        %v1196 = vpop.permute.xlu0 %1195
        %1199 = vset.pattern.permute.xlu0 0
        %1200 = vperm.xlu0 %1199, %v1162
        %v1201 = vpop.permute.xlu0 %1200
        %1204 = vset.pattern.permute.xlu0 0
        %1205 = vperm.xlu0 %1204, %v1163
        %v1206 = vpop.permute.xlu0 %1205
        %1209 = vset.pattern.permute.xlu0 0
        %1210 = vperm.xlu0 %1209, %v1164
        %v1211 = vpop.permute.xlu0 %1210
        %1214 = vset.pattern.permute.xlu0 0
        %1215 = vperm.xlu0 %1214, %v1165
        %v1216 = vpop.permute.xlu0 %1215
        %1219 = vset.pattern.permute.xlu0 0
        %1220 = vperm.xlu0 %1219, %v1166
        %v1221 = vpop.permute.xlu0 %1220
        %1224 = vset.pattern.permute.xlu0 0
        %1225 = vperm.xlu0 %1224, %v1167
        %v1226 = vpop.permute.xlu0 %1225
        %1229 = vset.pattern.permute.xlu0 0
        %1230 = vperm.xlu0 %1229, %v1168
        %v1231 = vpop.permute.xlu0 %1230
        %1234 = vset.pattern.permute.xlu0 0
        %1235 = vperm.xlu0 %1234, %v1169
        %v1236 = vpop.permute.xlu0 %1235
        %1239 = vset.pattern.permute.xlu0 0
        %1240 = vperm.xlu0 %1239, %v1170
        %v1241 = vpop.permute.xlu0 %1240
        %1244 = vset.pattern.permute.xlu0 0
        %1245 = vperm.xlu0 %1244, %v1171
        %v1246 = vpop.permute.xlu0 %1245
        %1249 = vset.pattern.permute.xlu0 0
        %1250 = vperm.xlu0 %1249, %v1172
        %v1251 = vpop.permute.xlu0 %1250
        %1254 = vset.pattern.permute.xlu0 0
        %1255 = vperm.xlu0 %1254, %v1173
        %v1256 = vpop.permute.xlu0 %1255
        %1259 = vset.pattern.permute.xlu0 0
        %1260 = vperm.xlu0 %1259, %v1174
        %v1261 = vpop.permute.xlu0 %1260
        %1264 = vset.pattern.permute.xlu0 0
        %1265 = vperm.xlu0 %1264, %v1175
        %v1266 = vpop.permute.xlu0 %1265
        %1269 = vset.pattern.permute.xlu0 0
        %1270 = vperm.xlu0 %1269, %v1176
        %v1271 = vpop.permute.xlu0 %1270
        %1274 = vset.pattern.permute.xlu0 0
        %1275 = vperm.xlu0 %1274, %v1177
        %v1276 = vpop.permute.xlu0 %1275
        %1279 = vset.pattern.permute.xlu0 0
        %1280 = vperm.xlu0 %1279, %v1178
        %v1281 = vpop.permute.xlu0 %1280
        %1284 = vset.pattern.permute.xlu0 0
        %1285 = vperm.xlu0 %1284, %v1179
        %v1286 = vpop.permute.xlu0 %1285
        %1289 = vset.pattern.permute.xlu0 0
        %1290 = vperm.xlu0 %1289, %v1180
        %v1291 = vpop.permute.xlu0 %1290
        %1294 = vset.pattern.permute.xlu0 0
        %1295 = vperm.xlu0 %1294, %v1181
        %v1296 = vpop.permute.xlu0 %1295
        %1299 = vset.pattern.permute.xlu0 0
        %1300 = vperm.xlu0 %1299, %v1182
        %v1301 = vpop.permute.xlu0 %1300
        %1304 = vset.pattern.permute.xlu0 0
        %1305 = vperm.xlu0 %1304, %v1183
        %v1306 = vpop.permute.xlu0 %1305
        %1309 = vset.pattern.permute.xlu0 0
        %1310 = vperm.xlu0 %1309, %v1184
        %v1311 = vpop.permute.xlu0 %1310
        %1314 = vset.pattern.permute.xlu0 0
        %1315 = vperm.xlu0 %1314, %v1185
        %v1316 = vpop.permute.xlu0 %1315
        %1319 = vset.pattern.permute.xlu0 0
        %1320 = vperm.xlu0 %1319, %v1186
        %v1321 = vpop.permute.xlu0 %1320
        %1324 = vset.pattern.permute.xlu0 0
        %1325 = vperm.xlu0 %1324, %v1187
        %v1326 = vpop.permute.xlu0 %1325
        %1329 = vset.pattern.permute.xlu0 0
        %1330 = vperm.xlu0 %1329, %v1188
        %v1331 = vpop.permute.xlu0 %1330
        %1334 = vset.pattern.permute.xlu0 0
        %1335 = vperm.xlu0 %1334, %v1189
        %v1336 = vpop.permute.xlu0 %1335
        %1339 = vset.pattern.permute.xlu0 0
        %1340 = vperm.xlu0 %1339, %v1190
        %v1341 = vpop.permute.xlu0 %1340
        %1344 = vset.pattern.permute.xlu0 0
        %1345 = vperm.xlu0 %1344, %v1191
        %v1346 = vpop.permute.xlu0 %1345
        %1349 = vset.pattern.permute.xlu0 0
        %1350 = vperm.xlu0 %1349, %v1192
        %v1351 = vpop.permute.xlu0 %1350
        %v1353 = vld [vmem:[%s1054] sm:$0xff]
        %v1354 = vld [vmem:[%s1054 + $0x8] sm:$0xff]
        %v1355 = vld [vmem:[%s1054 + $0x10] sm:$0xff]
        %v1356 = vld [vmem:[%s1054 + $0x18] sm:$0xff]
        %v1357 = vld [vmem:[%s1054 + $0x20] sm:$0xff]
        %v1358 = vld [vmem:[%s1054 + $0x28] sm:$0xff]
        %v1359 = vld [vmem:[%s1054 + $0x30] sm:$0xff]
        %v1360 = vld [vmem:[%s1054 + $0x38] sm:$0xff]
        %v1361 = vld [vmem:[%s1054 + $0x40] sm:$0xff]
        %v1362 = vld [vmem:[%s1054 + $0x48] sm:$0xff]
        %v1363 = vld [vmem:[%s1054 + $0x50] sm:$0xff]
        %v1364 = vld [vmem:[%s1054 + $0x58] sm:$0xff]
        %v1365 = vld [vmem:[%s1054 + $0x60] sm:$0xff]
        %v1366 = vld [vmem:[%s1054 + $0x68] sm:$0xff]
        %v1367 = vld [vmem:[%s1054 + $0x70] sm:$0xff]
        %v1368 = vld [vmem:[%s1054 + $0x78] sm:$0xff]
        %v1369 = vld [vmem:[%s1054 + $0x80] sm:$0xff]
        %v1370 = vld [vmem:[%s1054 + $0x88] sm:$0xff]
        %v1371 = vld [vmem:[%s1054 + $0x90] sm:$0xff]
        %v1372 = vld [vmem:[%s1054 + $0x98] sm:$0xff]
        %v1373 = vld [vmem:[%s1054 + $0xa0] sm:$0xff]
        %v1374 = vld [vmem:[%s1054 + $0xa8] sm:$0xff]
        %v1375 = vld [vmem:[%s1054 + $0xb0] sm:$0xff]
        %v1376 = vld [vmem:[%s1054 + $0xb8] sm:$0xff]
        %v1377 = vld [vmem:[%s1054 + $0xc0] sm:$0xff]
        %v1378 = vld [vmem:[%s1054 + $0xc8] sm:$0xff]
        %v1379 = vld [vmem:[%s1054 + $0xd0] sm:$0xff]
        %v1380 = vld [vmem:[%s1054 + $0xd8] sm:$0xff]
        %v1381 = vld [vmem:[%s1054 + $0xe0] sm:$0xff]
        %v1382 = vld [vmem:[%s1054 + $0xe8] sm:$0xff]
        %v1383 = vld [vmem:[%s1054 + $0xf0] sm:$0xff]
        %v1384 = vld [vmem:[%s1054 + $0xf8] sm:$0xff]
        %s1385 = scalar_lea.vmem %s1054, 256 [#allocation2]
        %v1386 = vld [vmem:[%s1385] sm:$0xff]
        %v1387 = vld [vmem:[%s1385 + $0x8] sm:$0xff]
        %v1388 = vld [vmem:[%s1385 + $0x10] sm:$0xff]
        %v1389 = vld [vmem:[%s1385 + $0x18] sm:$0xff]
        %v1390 = vld [vmem:[%s1385 + $0x20] sm:$0xff]
        %v1391 = vld [vmem:[%s1385 + $0x28] sm:$0xff]
        %v1392 = vld [vmem:[%s1385 + $0x30] sm:$0xff]
        %v1393 = vld [vmem:[%s1385 + $0x38] sm:$0xff]
        %v1394 = vld [vmem:[%s1385 + $0x40] sm:$0xff]
        %v1395 = vld [vmem:[%s1385 + $0x48] sm:$0xff]
        %v1396 = vld [vmem:[%s1385 + $0x50] sm:$0xff]
        %v1397 = vld [vmem:[%s1385 + $0x58] sm:$0xff]
        %v1398 = vld [vmem:[%s1385 + $0x60] sm:$0xff]
        %v1399 = vld [vmem:[%s1385 + $0x68] sm:$0xff]
        %v1400 = vld [vmem:[%s1385 + $0x70] sm:$0xff]
        %v1401 = vld [vmem:[%s1385 + $0x78] sm:$0xff]
        %v1402 = vld [vmem:[%s1385 + $0x80] sm:$0xff]
        %v1403 = vld [vmem:[%s1385 + $0x88] sm:$0xff]
        %v1404 = vld [vmem:[%s1385 + $0x90] sm:$0xff]
        %v1405 = vld [vmem:[%s1385 + $0x98] sm:$0xff]
        %v1406 = vld [vmem:[%s1385 + $0xa0] sm:$0xff]
        %v1407 = vld [vmem:[%s1385 + $0xa8] sm:$0xff]
        %v1408 = vld [vmem:[%s1385 + $0xb0] sm:$0xff]
        %v1409 = vld [vmem:[%s1385 + $0xb8] sm:$0xff]
        %v1410 = vld [vmem:[%s1385 + $0xc0] sm:$0xff]
        %v1411 = vld [vmem:[%s1385 + $0xc8] sm:$0xff]
        %v1412 = vld [vmem:[%s1385 + $0xd0] sm:$0xff]
        %v1413 = vld [vmem:[%s1385 + $0xd8] sm:$0xff]
        %v1414 = vld [vmem:[%s1385 + $0xe0] sm:$0xff]
        %v1415 = vld [vmem:[%s1385 + $0xe8] sm:$0xff]
        %v1416 = vld [vmem:[%s1385 + $0xf0] sm:$0xff]
        %v1417 = vld [vmem:[%s1385 + $0xf8] sm:$0xff]
        %s1418 = scalar_lea.vmem %s1054, 512 [#allocation2]
        %v1419 = vld [vmem:[%s1418] sm:$0xff]
        %v1420 = vld [vmem:[%s1418 + $0x8] sm:$0xff]
        %v1421 = vld [vmem:[%s1418 + $0x10] sm:$0xff]
        %v1422 = vld [vmem:[%s1418 + $0x18] sm:$0xff]
        %v1423 = vld [vmem:[%s1418 + $0x20] sm:$0xff]
        %v1424 = vld [vmem:[%s1418 + $0x28] sm:$0xff]
        %v1425 = vld [vmem:[%s1418 + $0x30] sm:$0xff]
        %v1426 = vld [vmem:[%s1418 + $0x38] sm:$0xff]
        %v1427 = vld [vmem:[%s1418 + $0x40] sm:$0xff]
        %v1428 = vld [vmem:[%s1418 + $0x48] sm:$0xff]
        %v1429 = vld [vmem:[%s1418 + $0x50] sm:$0xff]
        %v1430 = vld [vmem:[%s1418 + $0x58] sm:$0xff]
        %v1431 = vld [vmem:[%s1418 + $0x60] sm:$0xff]
        %v1432 = vld [vmem:[%s1418 + $0x68] sm:$0xff]
        %v1433 = vld [vmem:[%s1418 + $0x70] sm:$0xff]
        %v1434 = vld [vmem:[%s1418 + $0x78] sm:$0xff]
        %v1435 = vld [vmem:[%s1418 + $0x80] sm:$0xff]
        %v1436 = vld [vmem:[%s1418 + $0x88] sm:$0xff]
        %v1437 = vld [vmem:[%s1418 + $0x90] sm:$0xff]
        %v1438 = vld [vmem:[%s1418 + $0x98] sm:$0xff]
        %v1439 = vld [vmem:[%s1418 + $0xa0] sm:$0xff]
        %v1440 = vld [vmem:[%s1418 + $0xa8] sm:$0xff]
        %v1441 = vld [vmem:[%s1418 + $0xb0] sm:$0xff]
        %v1442 = vld [vmem:[%s1418 + $0xb8] sm:$0xff]
        %v1443 = vld [vmem:[%s1418 + $0xc0] sm:$0xff]
        %v1444 = vld [vmem:[%s1418 + $0xc8] sm:$0xff]
        %v1445 = vld [vmem:[%s1418 + $0xd0] sm:$0xff]
        %v1446 = vld [vmem:[%s1418 + $0xd8] sm:$0xff]
        %v1447 = vld [vmem:[%s1418 + $0xe0] sm:$0xff]
        %v1448 = vld [vmem:[%s1418 + $0xe8] sm:$0xff]
        %v1449 = vld [vmem:[%s1418 + $0xf0] sm:$0xff]
        %v1450 = vld [vmem:[%s1418 + $0xf8] sm:$0xff]
        %s1451 = scalar_lea.vmem %s1054, 768 [#allocation2]
        %v1452 = vld [vmem:[%s1451] sm:$0xff]
        %v1453 = vld [vmem:[%s1451 + $0x8] sm:$0xff]
        %v1454 = vld [vmem:[%s1451 + $0x10] sm:$0xff]
        %v1455 = vld [vmem:[%s1451 + $0x18] sm:$0xff]
        %v1456 = vld [vmem:[%s1451 + $0x20] sm:$0xff]
        %v1457 = vld [vmem:[%s1451 + $0x28] sm:$0xff]
        %v1458 = vld [vmem:[%s1451 + $0x30] sm:$0xff]
        %v1459 = vld [vmem:[%s1451 + $0x38] sm:$0xff]
        %v1460 = vld [vmem:[%s1451 + $0x40] sm:$0xff]
        %v1461 = vld [vmem:[%s1451 + $0x48] sm:$0xff]
        %v1462 = vld [vmem:[%s1451 + $0x50] sm:$0xff]
        %v1463 = vld [vmem:[%s1451 + $0x58] sm:$0xff]
        %v1464 = vld [vmem:[%s1451 + $0x60] sm:$0xff]
        %v1465 = vld [vmem:[%s1451 + $0x68] sm:$0xff]
        %v1466 = vld [vmem:[%s1451 + $0x70] sm:$0xff]
        %v1467 = vld [vmem:[%s1451 + $0x78] sm:$0xff]
        %v1468 = vld [vmem:[%s1451 + $0x80] sm:$0xff]
        %v1469 = vld [vmem:[%s1451 + $0x88] sm:$0xff]
        %v1470 = vld [vmem:[%s1451 + $0x90] sm:$0xff]
        %v1471 = vld [vmem:[%s1451 + $0x98] sm:$0xff]
        %v1472 = vld [vmem:[%s1451 + $0xa0] sm:$0xff]
        %v1473 = vld [vmem:[%s1451 + $0xa8] sm:$0xff]
        %v1474 = vld [vmem:[%s1451 + $0xb0] sm:$0xff]
        %v1475 = vld [vmem:[%s1451 + $0xb8] sm:$0xff]
        %v1476 = vld [vmem:[%s1451 + $0xc0] sm:$0xff]
        %v1477 = vld [vmem:[%s1451 + $0xc8] sm:$0xff]
        %v1478 = vld [vmem:[%s1451 + $0xd0] sm:$0xff]
        %v1479 = vld [vmem:[%s1451 + $0xd8] sm:$0xff]
        %v1480 = vld [vmem:[%s1451 + $0xe0] sm:$0xff]
        %v1481 = vld [vmem:[%s1451 + $0xe8] sm:$0xff]
        %v1482 = vld [vmem:[%s1451 + $0xf0] sm:$0xff]
        %v1483 = vld [vmem:[%s1451 + $0xf8] sm:$0xff]
        %v1484 = vand.u32 2147483647, %v1353
        %v1485 = vand.u32 2147483647, %v1354
        %v1486 = vand.u32 2147483647, %v1355
        %v1487 = vand.u32 2147483647, %v1356
        %v1488 = vand.u32 2147483647, %v1357
        %v1489 = vand.u32 2147483647, %v1358
        %v1490 = vand.u32 2147483647, %v1359
        %v1491 = vand.u32 2147483647, %v1360
        %v1492 = vand.u32 2147483647, %v1361
        %v1493 = vand.u32 2147483647, %v1362
        %v1494 = vand.u32 2147483647, %v1363
        %v1495 = vand.u32 2147483647, %v1364
        %v1496 = vand.u32 2147483647, %v1365
        %v1497 = vand.u32 2147483647, %v1366
        %v1498 = vand.u32 2147483647, %v1367
        %v1499 = vand.u32 2147483647, %v1368
        %v1500 = vand.u32 2147483647, %v1369
        %v1501 = vand.u32 2147483647, %v1370
        %v1502 = vand.u32 2147483647, %v1371
        %v1503 = vand.u32 2147483647, %v1372
        %v1504 = vand.u32 2147483647, %v1373
        %v1505 = vand.u32 2147483647, %v1374
        %v1506 = vand.u32 2147483647, %v1375
        %v1507 = vand.u32 2147483647, %v1376
        %v1508 = vand.u32 2147483647, %v1377
        %v1509 = vand.u32 2147483647, %v1378
        %v1510 = vand.u32 2147483647, %v1379
        %v1511 = vand.u32 2147483647, %v1380
        %v1512 = vand.u32 2147483647, %v1381
        %v1513 = vand.u32 2147483647, %v1382
        %v1514 = vand.u32 2147483647, %v1383
        %v1515 = vand.u32 2147483647, %v1384
        %v1516 = vand.u32 2147483647, %v1386
        %v1517 = vand.u32 2147483647, %v1387
        %v1518 = vand.u32 2147483647, %v1388
        %v1519 = vand.u32 2147483647, %v1389
        %v1520 = vand.u32 2147483647, %v1390
        %v1521 = vand.u32 2147483647, %v1391
        %v1522 = vand.u32 2147483647, %v1392
        %v1523 = vand.u32 2147483647, %v1393
        %v1524 = vand.u32 2147483647, %v1394
        %v1525 = vand.u32 2147483647, %v1395
        %v1526 = vand.u32 2147483647, %v1396
        %v1527 = vand.u32 2147483647, %v1397
        %v1528 = vand.u32 2147483647, %v1398
        %v1529 = vand.u32 2147483647, %v1399
        %v1530 = vand.u32 2147483647, %v1400
        %v1531 = vand.u32 2147483647, %v1401
        %v1532 = vand.u32 2147483647, %v1402
        %v1533 = vand.u32 2147483647, %v1403
        %v1534 = vand.u32 2147483647, %v1404
        %v1535 = vand.u32 2147483647, %v1405
        %v1536 = vand.u32 2147483647, %v1406
        %v1537 = vand.u32 2147483647, %v1407
        %v1538 = vand.u32 2147483647, %v1408
        %v1539 = vand.u32 2147483647, %v1409
        %v1540 = vand.u32 2147483647, %v1410
        %v1541 = vand.u32 2147483647, %v1411
        %v1542 = vand.u32 2147483647, %v1412
        %v1543 = vand.u32 2147483647, %v1413
        %v1544 = vand.u32 2147483647, %v1414
        %v1545 = vand.u32 2147483647, %v1415
        %v1546 = vand.u32 2147483647, %v1416
        %v1547 = vand.u32 2147483647, %v1417
        %v1548 = vadd.f32 %v1484, %v1516
        %v1549 = vadd.f32 %v1485, %v1517
        %v1550 = vadd.f32 %v1486, %v1518
        %v1551 = vadd.f32 %v1487, %v1519
        %v1552 = vadd.f32 %v1488, %v1520
        %v1553 = vadd.f32 %v1489, %v1521
        %v1554 = vadd.f32 %v1490, %v1522
        %v1555 = vadd.f32 %v1491, %v1523
        %v1556 = vadd.f32 %v1492, %v1524
        %v1557 = vadd.f32 %v1493, %v1525
        %v1558 = vadd.f32 %v1494, %v1526
        %v1559 = vadd.f32 %v1495, %v1527
        %v1560 = vadd.f32 %v1496, %v1528
        %v1561 = vadd.f32 %v1497, %v1529
        %v1562 = vadd.f32 %v1498, %v1530
        %v1563 = vadd.f32 %v1499, %v1531
        %v1564 = vadd.f32 %v1500, %v1532
        %v1565 = vadd.f32 %v1501, %v1533
        %v1566 = vadd.f32 %v1502, %v1534
        %v1567 = vadd.f32 %v1503, %v1535
        %v1568 = vadd.f32 %v1504, %v1536
        %v1569 = vadd.f32 %v1505, %v1537
        %v1570 = vadd.f32 %v1506, %v1538
        %v1571 = vadd.f32 %v1507, %v1539
        %v1572 = vadd.f32 %v1508, %v1540
        %v1573 = vadd.f32 %v1509, %v1541
        %v1574 = vadd.f32 %v1510, %v1542
        %v1575 = vadd.f32 %v1511, %v1543
        %v1576 = vadd.f32 %v1512, %v1544
        %v1577 = vadd.f32 %v1513, %v1545
        %v1578 = vadd.f32 %v1514, %v1546
        %v1579 = vadd.f32 %v1515, %v1547
        %v1580 = vand.u32 2147483647, %v1419
        %v1581 = vand.u32 2147483647, %v1420
        %v1582 = vand.u32 2147483647, %v1421
        %v1583 = vand.u32 2147483647, %v1422
        %v1584 = vand.u32 2147483647, %v1423
        %v1585 = vand.u32 2147483647, %v1424
        %v1586 = vand.u32 2147483647, %v1425
        %v1587 = vand.u32 2147483647, %v1426
        %v1588 = vand.u32 2147483647, %v1427
        %v1589 = vand.u32 2147483647, %v1428
        %v1590 = vand.u32 2147483647, %v1429
        %v1591 = vand.u32 2147483647, %v1430
        %v1592 = vand.u32 2147483647, %v1431
        %v1593 = vand.u32 2147483647, %v1432
        %v1594 = vand.u32 2147483647, %v1433
        %v1595 = vand.u32 2147483647, %v1434
        %v1596 = vand.u32 2147483647, %v1435
        %v1597 = vand.u32 2147483647, %v1436
        %v1598 = vand.u32 2147483647, %v1437
        %v1599 = vand.u32 2147483647, %v1438
        %v1600 = vand.u32 2147483647, %v1439
        %v1601 = vand.u32 2147483647, %v1440
        %v1602 = vand.u32 2147483647, %v1441
        %v1603 = vand.u32 2147483647, %v1442
        %v1604 = vand.u32 2147483647, %v1443
        %v1605 = vand.u32 2147483647, %v1444
        %v1606 = vand.u32 2147483647, %v1445
        %v1607 = vand.u32 2147483647, %v1446
        %v1608 = vand.u32 2147483647, %v1447
        %v1609 = vand.u32 2147483647, %v1448
        %v1610 = vand.u32 2147483647, %v1449
        %v1611 = vand.u32 2147483647, %v1450
        %v1612 = vadd.f32 %v1548, %v1580
        %v1613 = vadd.f32 %v1549, %v1581
        %v1614 = vadd.f32 %v1550, %v1582
        %v1615 = vadd.f32 %v1551, %v1583
        %v1616 = vadd.f32 %v1552, %v1584
        %v1617 = vadd.f32 %v1553, %v1585
        %v1618 = vadd.f32 %v1554, %v1586
        %v1619 = vadd.f32 %v1555, %v1587
        %v1620 = vadd.f32 %v1556, %v1588
        %v1621 = vadd.f32 %v1557, %v1589
        %v1622 = vadd.f32 %v1558, %v1590
        %v1623 = vadd.f32 %v1559, %v1591
        %v1624 = vadd.f32 %v1560, %v1592
        %v1625 = vadd.f32 %v1561, %v1593
        %v1626 = vadd.f32 %v1562, %v1594
        %v1627 = vadd.f32 %v1563, %v1595
        %v1628 = vadd.f32 %v1564, %v1596
        %v1629 = vadd.f32 %v1565, %v1597
        %v1630 = vadd.f32 %v1566, %v1598
        %v1631 = vadd.f32 %v1567, %v1599
        %v1632 = vadd.f32 %v1568, %v1600
        %v1633 = vadd.f32 %v1569, %v1601
        %v1634 = vadd.f32 %v1570, %v1602
        %v1635 = vadd.f32 %v1571, %v1603
        %v1636 = vadd.f32 %v1572, %v1604
        %v1637 = vadd.f32 %v1573, %v1605
        %v1638 = vadd.f32 %v1574, %v1606
        %v1639 = vadd.f32 %v1575, %v1607
        %v1640 = vadd.f32 %v1576, %v1608
        %v1641 = vadd.f32 %v1577, %v1609
        %v1642 = vadd.f32 %v1578, %v1610
        %v1643 = vadd.f32 %v1579, %v1611
        %v1644 = vand.u32 2147483647, %v1452
        %v1645 = vand.u32 2147483647, %v1453
        %v1646 = vand.u32 2147483647, %v1454
        %v1647 = vand.u32 2147483647, %v1455
        %v1648 = vand.u32 2147483647, %v1456
        %v1649 = vand.u32 2147483647, %v1457
        %v1650 = vand.u32 2147483647, %v1458
        %v1651 = vand.u32 2147483647, %v1459
        %v1652 = vand.u32 2147483647, %v1460
        %v1653 = vand.u32 2147483647, %v1461
        %v1654 = vand.u32 2147483647, %v1462
        %v1655 = vand.u32 2147483647, %v1463
        %v1656 = vand.u32 2147483647, %v1464
        %v1657 = vand.u32 2147483647, %v1465
        %v1658 = vand.u32 2147483647, %v1466
        %v1659 = vand.u32 2147483647, %v1467
        %v1660 = vand.u32 2147483647, %v1468
        %v1661 = vand.u32 2147483647, %v1469
        %v1662 = vand.u32 2147483647, %v1470
        %v1663 = vand.u32 2147483647, %v1471
        %v1664 = vand.u32 2147483647, %v1472
        %v1665 = vand.u32 2147483647, %v1473
        %v1666 = vand.u32 2147483647, %v1474
        %v1667 = vand.u32 2147483647, %v1475
        %v1668 = vand.u32 2147483647, %v1476
        %v1669 = vand.u32 2147483647, %v1477
        %v1670 = vand.u32 2147483647, %v1478
        %v1671 = vand.u32 2147483647, %v1479
        %v1672 = vand.u32 2147483647, %v1480
        %v1673 = vand.u32 2147483647, %v1481
        %v1674 = vand.u32 2147483647, %v1482
        %v1675 = vand.u32 2147483647, %v1483
        %v1676 = vadd.f32 %v1612, %v1644
        %v1677 = vadd.f32 %v1613, %v1645
        %v1678 = vadd.f32 %v1614, %v1646
        %v1679 = vadd.f32 %v1615, %v1647
        %v1680 = vadd.f32 %v1616, %v1648
        %v1681 = vadd.f32 %v1617, %v1649
        %v1682 = vadd.f32 %v1618, %v1650
        %v1683 = vadd.f32 %v1619, %v1651
        %v1684 = vadd.f32 %v1620, %v1652
        %v1685 = vadd.f32 %v1621, %v1653
        %v1686 = vadd.f32 %v1622, %v1654
        %v1687 = vadd.f32 %v1623, %v1655
        %v1688 = vadd.f32 %v1624, %v1656
        %v1689 = vadd.f32 %v1625, %v1657
        %v1690 = vadd.f32 %v1626, %v1658
        %v1691 = vadd.f32 %v1627, %v1659
        %v1692 = vadd.f32 %v1628, %v1660
        %v1693 = vadd.f32 %v1629, %v1661
        %v1694 = vadd.f32 %v1630, %v1662
        %v1695 = vadd.f32 %v1631, %v1663
        %v1696 = vadd.f32 %v1632, %v1664
        %v1697 = vadd.f32 %v1633, %v1665
        %v1698 = vadd.f32 %v1634, %v1666
        %v1699 = vadd.f32 %v1635, %v1667
        %v1700 = vadd.f32 %v1636, %v1668
        %v1701 = vadd.f32 %v1637, %v1669
        %v1702 = vadd.f32 %v1638, %v1670
        %v1703 = vadd.f32 %v1639, %v1671
        %v1704 = vadd.f32 %v1640, %v1672
        %v1705 = vadd.f32 %v1641, %v1673
        %v1706 = vadd.f32 %v1642, %v1674
        %v1707 = vadd.f32 %v1643, %v1675
        %v1708 = vmax.f32 %v1676, 1e-12
        %v1709 = vmax.f32 %v1677, 1e-12
        %v1710 = vmax.f32 %v1678, 1e-12
        %v1711 = vmax.f32 %v1679, 1e-12
        %v1712 = vmax.f32 %v1680, 1e-12
        %v1713 = vmax.f32 %v1681, 1e-12
        %v1714 = vmax.f32 %v1682, 1e-12
        %v1715 = vmax.f32 %v1683, 1e-12
        %v1716 = vmax.f32 %v1684, 1e-12
        %v1717 = vmax.f32 %v1685, 1e-12
        %v1718 = vmax.f32 %v1686, 1e-12
        %v1719 = vmax.f32 %v1687, 1e-12
        %v1720 = vmax.f32 %v1688, 1e-12
        %v1721 = vmax.f32 %v1689, 1e-12
        %v1722 = vmax.f32 %v1690, 1e-12
        %v1723 = vmax.f32 %v1691, 1e-12
        %v1724 = vmax.f32 %v1692, 1e-12
        %v1725 = vmax.f32 %v1693, 1e-12
        %v1726 = vmax.f32 %v1694, 1e-12
        %v1727 = vmax.f32 %v1695, 1e-12
        %v1728 = vmax.f32 %v1696, 1e-12
        %v1729 = vmax.f32 %v1697, 1e-12
        %v1730 = vmax.f32 %v1698, 1e-12
        %v1731 = vmax.f32 %v1699, 1e-12
        %v1732 = vmax.f32 %v1700, 1e-12
        %v1733 = vmax.f32 %v1701, 1e-12
        %v1734 = vmax.f32 %v1702, 1e-12
        %v1735 = vmax.f32 %v1703, 1e-12
        %v1736 = vmax.f32 %v1704, 1e-12
        %v1737 = vmax.f32 %v1705, 1e-12
        %v1738 = vmax.f32 %v1706, 1e-12
        %v1739 = vmax.f32 %v1707, 1e-12
        %v1740 = vrcp.pop %v1708
        %v1741 = vrcp.pop %v1709
        %v1742 = vrcp.pop %v1710
        %v1743 = vrcp.pop %v1711
        %v1744 = vrcp.pop %v1712
        %v1745 = vrcp.pop %v1713
        %v1746 = vrcp.pop %v1714
        %v1747 = vrcp.pop %v1715
        %v1748 = vrcp.pop %v1716
        %v1749 = vrcp.pop %v1717
        %v1750 = vrcp.pop %v1718
        %v1751 = vrcp.pop %v1719
        %v1752 = vrcp.pop %v1720
        %v1753 = vrcp.pop %v1721
        %v1754 = vrcp.pop %v1722
        %v1755 = vrcp.pop %v1723
        %v1756 = vrcp.pop %v1724
        %v1757 = vrcp.pop %v1725
        %v1758 = vrcp.pop %v1726
        %v1759 = vrcp.pop %v1727
        %v1760 = vrcp.pop %v1728
        %v1761 = vrcp.pop %v1729
        %v1762 = vrcp.pop %v1730
        %v1763 = vrcp.pop %v1731
        %v1764 = vrcp.pop %v1732
        %v1765 = vrcp.pop %v1733
        %v1766 = vrcp.pop %v1734
        %v1767 = vrcp.pop %v1735
        %v1768 = vrcp.pop %v1736
        %v1769 = vrcp.pop %v1737
        %v1770 = vrcp.pop %v1738
        %v1771 = vrcp.pop %v1739
        %v1772 = vmul.f32 %v1353, %v1740
        %v1773 = vmul.f32 %v1354, %v1741
        %v1774 = vmul.f32 %v1355, %v1742
        %v1775 = vmul.f32 %v1356, %v1743
        %v1776 = vmul.f32 %v1357, %v1744
        %v1777 = vmul.f32 %v1358, %v1745
        %v1778 = vmul.f32 %v1359, %v1746
        %v1779 = vmul.f32 %v1360, %v1747
        %v1780 = vmul.f32 %v1361, %v1748
        %v1781 = vmul.f32 %v1362, %v1749
        %v1782 = vmul.f32 %v1363, %v1750
        %v1783 = vmul.f32 %v1364, %v1751
        %v1784 = vmul.f32 %v1365, %v1752
        %v1785 = vmul.f32 %v1366, %v1753
        %v1786 = vmul.f32 %v1367, %v1754
        %v1787 = vmul.f32 %v1368, %v1755
        %v1788 = vmul.f32 %v1369, %v1756
        %v1789 = vmul.f32 %v1370, %v1757
        %v1790 = vmul.f32 %v1371, %v1758
        %v1791 = vmul.f32 %v1372, %v1759
        %v1792 = vmul.f32 %v1373, %v1760
        %v1793 = vmul.f32 %v1374, %v1761
        %v1794 = vmul.f32 %v1375, %v1762
        %v1795 = vmul.f32 %v1376, %v1763
        %v1796 = vmul.f32 %v1377, %v1764
        %v1797 = vmul.f32 %v1378, %v1765
        %v1798 = vmul.f32 %v1379, %v1766
        %v1799 = vmul.f32 %v1380, %v1767
        %v1800 = vmul.f32 %v1381, %v1768
        %v1801 = vmul.f32 %v1382, %v1769
        %v1802 = vmul.f32 %v1383, %v1770
        %v1803 = vmul.f32 %v1384, %v1771
        %v1804 = vmul.f32 %v1386, %v1740
        %v1805 = vmul.f32 %v1387, %v1741
        %v1806 = vmul.f32 %v1388, %v1742
        %v1807 = vmul.f32 %v1389, %v1743
        %v1808 = vmul.f32 %v1390, %v1744
        %v1809 = vmul.f32 %v1391, %v1745
        %v1810 = vmul.f32 %v1392, %v1746
        %v1811 = vmul.f32 %v1393, %v1747
        %v1812 = vmul.f32 %v1394, %v1748
        %v1813 = vmul.f32 %v1395, %v1749
        %v1814 = vmul.f32 %v1396, %v1750
        %v1815 = vmul.f32 %v1397, %v1751
        %v1816 = vmul.f32 %v1398, %v1752
        %v1817 = vmul.f32 %v1399, %v1753
        %v1818 = vmul.f32 %v1400, %v1754
        %v1819 = vmul.f32 %v1401, %v1755
        %v1820 = vmul.f32 %v1402, %v1756
        %v1821 = vmul.f32 %v1403, %v1757
        %v1822 = vmul.f32 %v1404, %v1758
        %v1823 = vmul.f32 %v1405, %v1759
        %v1824 = vmul.f32 %v1406, %v1760
        %v1825 = vmul.f32 %v1407, %v1761
        %v1826 = vmul.f32 %v1408, %v1762
        %v1827 = vmul.f32 %v1409, %v1763
        %v1828 = vmul.f32 %v1410, %v1764
        %v1829 = vmul.f32 %v1411, %v1765
        %v1830 = vmul.f32 %v1412, %v1766
        %v1831 = vmul.f32 %v1413, %v1767
        %v1832 = vmul.f32 %v1414, %v1768
        %v1833 = vmul.f32 %v1415, %v1769
        %v1834 = vmul.f32 %v1416, %v1770
        %v1835 = vmul.f32 %v1417, %v1771
        %v1836 = vmul.f32 %v1419, %v1740
        %v1837 = vmul.f32 %v1420, %v1741
        %v1838 = vmul.f32 %v1421, %v1742
        %v1839 = vmul.f32 %v1422, %v1743
        %v1840 = vmul.f32 %v1423, %v1744
        %v1841 = vmul.f32 %v1424, %v1745
        %v1842 = vmul.f32 %v1425, %v1746
        %v1843 = vmul.f32 %v1426, %v1747
        %v1844 = vmul.f32 %v1427, %v1748
        %v1845 = vmul.f32 %v1428, %v1749
        %v1846 = vmul.f32 %v1429, %v1750
        %v1847 = vmul.f32 %v1430, %v1751
        %v1848 = vmul.f32 %v1431, %v1752
        %v1849 = vmul.f32 %v1432, %v1753
        %v1850 = vmul.f32 %v1433, %v1754
        %v1851 = vmul.f32 %v1434, %v1755
        %v1852 = vmul.f32 %v1435, %v1756
        %v1853 = vmul.f32 %v1436, %v1757
        %v1854 = vmul.f32 %v1437, %v1758
        %v1855 = vmul.f32 %v1438, %v1759
        %v1856 = vmul.f32 %v1439, %v1760
        %v1857 = vmul.f32 %v1440, %v1761
        %v1858 = vmul.f32 %v1441, %v1762
        %v1859 = vmul.f32 %v1442, %v1763
        %v1860 = vmul.f32 %v1443, %v1764
        %v1861 = vmul.f32 %v1444, %v1765
        %v1862 = vmul.f32 %v1445, %v1766
        %v1863 = vmul.f32 %v1446, %v1767
        %v1864 = vmul.f32 %v1447, %v1768
        %v1865 = vmul.f32 %v1448, %v1769
        %v1866 = vmul.f32 %v1449, %v1770
        %v1867 = vmul.f32 %v1450, %v1771
        %v1868 = vmul.f32 %v1452, %v1740
        %v1869 = vmul.f32 %v1453, %v1741
        %v1870 = vmul.f32 %v1454, %v1742
        %v1871 = vmul.f32 %v1455, %v1743
        %v1872 = vmul.f32 %v1456, %v1744
        %v1873 = vmul.f32 %v1457, %v1745
        %v1874 = vmul.f32 %v1458, %v1746
        %v1875 = vmul.f32 %v1459, %v1747
        %v1876 = vmul.f32 %v1460, %v1748
        %v1877 = vmul.f32 %v1461, %v1749
        %v1878 = vmul.f32 %v1462, %v1750
        %v1879 = vmul.f32 %v1463, %v1751
        %v1880 = vmul.f32 %v1464, %v1752
        %v1881 = vmul.f32 %v1465, %v1753
        %v1882 = vmul.f32 %v1466, %v1754
        %v1883 = vmul.f32 %v1467, %v1755
        %v1884 = vmul.f32 %v1468, %v1756
        %v1885 = vmul.f32 %v1469, %v1757
        %v1886 = vmul.f32 %v1470, %v1758
        %v1887 = vmul.f32 %v1471, %v1759
        %v1888 = vmul.f32 %v1472, %v1760
        %v1889 = vmul.f32 %v1473, %v1761
        %v1890 = vmul.f32 %v1474, %v1762
        %v1891 = vmul.f32 %v1475, %v1763
        %v1892 = vmul.f32 %v1476, %v1764
        %v1893 = vmul.f32 %v1477, %v1765
        %v1894 = vmul.f32 %v1478, %v1766
        %v1895 = vmul.f32 %v1479, %v1767
        %v1896 = vmul.f32 %v1480, %v1768
        %v1897 = vmul.f32 %v1481, %v1769
        %v1898 = vmul.f32 %v1482, %v1770
        %v1899 = vmul.f32 %v1483, %v1771
        %v1900 = vsub.f32 %v1868, %v1772
        %v1901 = vsub.f32 %v1869, %v1773
        %v1902 = vsub.f32 %v1870, %v1774
        %v1903 = vsub.f32 %v1871, %v1775
        %v1904 = vsub.f32 %v1872, %v1776
        %v1905 = vsub.f32 %v1873, %v1777
        %v1906 = vsub.f32 %v1874, %v1778
        %v1907 = vsub.f32 %v1875, %v1779
        %v1908 = vsub.f32 %v1876, %v1780
        %v1909 = vsub.f32 %v1877, %v1781
        %v1910 = vsub.f32 %v1878, %v1782
        %v1911 = vsub.f32 %v1879, %v1783
        %v1912 = vsub.f32 %v1880, %v1784
        %v1913 = vsub.f32 %v1881, %v1785
        %v1914 = vsub.f32 %v1882, %v1786
        %v1915 = vsub.f32 %v1883, %v1787
        %v1916 = vsub.f32 %v1884, %v1788
        %v1917 = vsub.f32 %v1885, %v1789
        %v1918 = vsub.f32 %v1886, %v1790
        %v1919 = vsub.f32 %v1887, %v1791
        %v1920 = vsub.f32 %v1888, %v1792
        %v1921 = vsub.f32 %v1889, %v1793
        %v1922 = vsub.f32 %v1890, %v1794
        %v1923 = vsub.f32 %v1891, %v1795
        %v1924 = vsub.f32 %v1892, %v1796
        %v1925 = vsub.f32 %v1893, %v1797
        %v1926 = vsub.f32 %v1894, %v1798
        %v1927 = vsub.f32 %v1895, %v1799
        %v1928 = vsub.f32 %v1896, %v1800
        %v1929 = vsub.f32 %v1897, %v1801
        %v1930 = vsub.f32 %v1898, %v1802
        %v1931 = vsub.f32 %v1899, %v1803
        %v1932 = vmul.f32 %v1900, 3.0
        %v1933 = vmul.f32 %v1901, 3.0
        %v1934 = vmul.f32 %v1902, 3.0
        %v1935 = vmul.f32 %v1903, 3.0
        %v1936 = vmul.f32 %v1904, 3.0
        %v1937 = vmul.f32 %v1905, 3.0
        %v1938 = vmul.f32 %v1906, 3.0
        %v1939 = vmul.f32 %v1907, 3.0
        %v1940 = vmul.f32 %v1908, 3.0
        %v1941 = vmul.f32 %v1909, 3.0
        %v1942 = vmul.f32 %v1910, 3.0
        %v1943 = vmul.f32 %v1911, 3.0
        %v1944 = vmul.f32 %v1912, 3.0
        %v1945 = vmul.f32 %v1913, 3.0
        %v1946 = vmul.f32 %v1914, 3.0
        %v1947 = vmul.f32 %v1915, 3.0
        %v1948 = vmul.f32 %v1916, 3.0
        %v1949 = vmul.f32 %v1917, 3.0
        %v1950 = vmul.f32 %v1918, 3.0
        %v1951 = vmul.f32 %v1919, 3.0
        %v1952 = vmul.f32 %v1920, 3.0
        %v1953 = vmul.f32 %v1921, 3.0
        %v1954 = vmul.f32 %v1922, 3.0
        %v1955 = vmul.f32 %v1923, 3.0
        %v1956 = vmul.f32 %v1924, 3.0
        %v1957 = vmul.f32 %v1925, 3.0
        %v1958 = vmul.f32 %v1926, 3.0
        %v1959 = vmul.f32 %v1927, 3.0
        %v1960 = vmul.f32 %v1928, 3.0
        %v1961 = vmul.f32 %v1929, 3.0
        %v1962 = vmul.f32 %v1930, 3.0
        %v1963 = vmul.f32 %v1931, 3.0
        %v1964 = vsub.f32 %v1836, %v1804
        %v1965 = vsub.f32 %v1837, %v1805
        %v1966 = vsub.f32 %v1838, %v1806
        %v1967 = vsub.f32 %v1839, %v1807
        %v1968 = vsub.f32 %v1840, %v1808
        %v1969 = vsub.f32 %v1841, %v1809
        %v1970 = vsub.f32 %v1842, %v1810
        %v1971 = vsub.f32 %v1843, %v1811
        %v1972 = vsub.f32 %v1844, %v1812
        %v1973 = vsub.f32 %v1845, %v1813
        %v1974 = vsub.f32 %v1846, %v1814
        %v1975 = vsub.f32 %v1847, %v1815
        %v1976 = vsub.f32 %v1848, %v1816
        %v1977 = vsub.f32 %v1849, %v1817
        %v1978 = vsub.f32 %v1850, %v1818
        %v1979 = vsub.f32 %v1851, %v1819
        %v1980 = vsub.f32 %v1852, %v1820
        %v1981 = vsub.f32 %v1853, %v1821
        %v1982 = vsub.f32 %v1854, %v1822
        %v1983 = vsub.f32 %v1855, %v1823
        %v1984 = vsub.f32 %v1856, %v1824
        %v1985 = vsub.f32 %v1857, %v1825
        %v1986 = vsub.f32 %v1858, %v1826
        %v1987 = vsub.f32 %v1859, %v1827
        %v1988 = vsub.f32 %v1860, %v1828
        %v1989 = vsub.f32 %v1861, %v1829
        %v1990 = vsub.f32 %v1862, %v1830
        %v1991 = vsub.f32 %v1863, %v1831
        %v1992 = vsub.f32 %v1864, %v1832
        %v1993 = vsub.f32 %v1865, %v1833
        %v1994 = vsub.f32 %v1866, %v1834
        %v1995 = vsub.f32 %v1867, %v1835
        %v1996 = vadd.f32 %v1932, %v1964
        %v1997 = vadd.f32 %v1933, %v1965
        %v1998 = vadd.f32 %v1934, %v1966
        %v1999 = vadd.f32 %v1935, %v1967
        %v2000 = vadd.f32 %v1936, %v1968
        %v2001 = vadd.f32 %v1937, %v1969
        %v2002 = vadd.f32 %v1938, %v1970
        %v2003 = vadd.f32 %v1939, %v1971
        %v2004 = vadd.f32 %v1940, %v1972
        %v2005 = vadd.f32 %v1941, %v1973
        %v2006 = vadd.f32 %v1942, %v1974
        %v2007 = vadd.f32 %v1943, %v1975
        %v2008 = vadd.f32 %v1944, %v1976
        %v2009 = vadd.f32 %v1945, %v1977
        %v2010 = vadd.f32 %v1946, %v1978
        %v2011 = vadd.f32 %v1947, %v1979
        %v2012 = vadd.f32 %v1948, %v1980
        %v2013 = vadd.f32 %v1949, %v1981
        %v2014 = vadd.f32 %v1950, %v1982
        %v2015 = vadd.f32 %v1951, %v1983
        %v2016 = vadd.f32 %v1952, %v1984
        %v2017 = vadd.f32 %v1953, %v1985
        %v2018 = vadd.f32 %v1954, %v1986
        %v2019 = vadd.f32 %v1955, %v1987
        %v2020 = vadd.f32 %v1956, %v1988
        %v2021 = vadd.f32 %v1957, %v1989
        %v2022 = vadd.f32 %v1958, %v1990
        %v2023 = vadd.f32 %v1959, %v1991
        %v2024 = vadd.f32 %v1960, %v1992
        %v2025 = vadd.f32 %v1961, %v1993
        %v2026 = vadd.f32 %v1962, %v1994
        %v2027 = vadd.f32 %v1963, %v1995
        %v2028 = vadd.f32 %v1772, %v1868
        %v2029 = vadd.f32 %v1773, %v1869
        %v2030 = vadd.f32 %v1774, %v1870
        %v2031 = vadd.f32 %v1775, %v1871
        %v2032 = vadd.f32 %v1776, %v1872
        %v2033 = vadd.f32 %v1777, %v1873
        %v2034 = vadd.f32 %v1778, %v1874
        %v2035 = vadd.f32 %v1779, %v1875
        %v2036 = vadd.f32 %v1780, %v1876
        %v2037 = vadd.f32 %v1781, %v1877
        %v2038 = vadd.f32 %v1782, %v1878
        %v2039 = vadd.f32 %v1783, %v1879
        %v2040 = vadd.f32 %v1784, %v1880
        %v2041 = vadd.f32 %v1785, %v1881
        %v2042 = vadd.f32 %v1786, %v1882
        %v2043 = vadd.f32 %v1787, %v1883
        %v2044 = vadd.f32 %v1788, %v1884
        %v2045 = vadd.f32 %v1789, %v1885
        %v2046 = vadd.f32 %v1790, %v1886
        %v2047 = vadd.f32 %v1791, %v1887
        %v2048 = vadd.f32 %v1792, %v1888
        %v2049 = vadd.f32 %v1793, %v1889
        %v2050 = vadd.f32 %v1794, %v1890
        %v2051 = vadd.f32 %v1795, %v1891
        %v2052 = vadd.f32 %v1796, %v1892
        %v2053 = vadd.f32 %v1797, %v1893
        %v2054 = vadd.f32 %v1798, %v1894
        %v2055 = vadd.f32 %v1799, %v1895
        %v2056 = vadd.f32 %v1800, %v1896
        %v2057 = vadd.f32 %v1801, %v1897
        %v2058 = vadd.f32 %v1802, %v1898
        %v2059 = vadd.f32 %v1803, %v1899
        %v2060 = vmul.f32 %v2028, 9.0
        %v2061 = vmul.f32 %v2029, 9.0
        %v2062 = vmul.f32 %v2030, 9.0
        %v2063 = vmul.f32 %v2031, 9.0
        %v2064 = vmul.f32 %v2032, 9.0
        %v2065 = vmul.f32 %v2033, 9.0
        %v2066 = vmul.f32 %v2034, 9.0
        %v2067 = vmul.f32 %v2035, 9.0
        %v2068 = vmul.f32 %v2036, 9.0
        %v2069 = vmul.f32 %v2037, 9.0
        %v2070 = vmul.f32 %v2038, 9.0
        %v2071 = vmul.f32 %v2039, 9.0
        %v2072 = vmul.f32 %v2040, 9.0
        %v2073 = vmul.f32 %v2041, 9.0
        %v2074 = vmul.f32 %v2042, 9.0
        %v2075 = vmul.f32 %v2043, 9.0
        %v2076 = vmul.f32 %v2044, 9.0
        %v2077 = vmul.f32 %v2045, 9.0
        %v2078 = vmul.f32 %v2046, 9.0
        %v2079 = vmul.f32 %v2047, 9.0
        %v2080 = vmul.f32 %v2048, 9.0
        %v2081 = vmul.f32 %v2049, 9.0
        %v2082 = vmul.f32 %v2050, 9.0
        %v2083 = vmul.f32 %v2051, 9.0
        %v2084 = vmul.f32 %v2052, 9.0
        %v2085 = vmul.f32 %v2053, 9.0
        %v2086 = vmul.f32 %v2054, 9.0
        %v2087 = vmul.f32 %v2055, 9.0
        %v2088 = vmul.f32 %v2056, 9.0
        %v2089 = vmul.f32 %v2057, 9.0
        %v2090 = vmul.f32 %v2058, 9.0
        %v2091 = vmul.f32 %v2059, 9.0
        %v2092 = vadd.f32 %v1804, %v1836
        %v2093 = vadd.f32 %v1805, %v1837
        %v2094 = vadd.f32 %v1806, %v1838
        %v2095 = vadd.f32 %v1807, %v1839
        %v2096 = vadd.f32 %v1808, %v1840
        %v2097 = vadd.f32 %v1809, %v1841
        %v2098 = vadd.f32 %v1810, %v1842
        %v2099 = vadd.f32 %v1811, %v1843
        %v2100 = vadd.f32 %v1812, %v1844
        %v2101 = vadd.f32 %v1813, %v1845
        %v2102 = vadd.f32 %v1814, %v1846
        %v2103 = vadd.f32 %v1815, %v1847
        %v2104 = vadd.f32 %v1816, %v1848
        %v2105 = vadd.f32 %v1817, %v1849
        %v2106 = vadd.f32 %v1818, %v1850
        %v2107 = vadd.f32 %v1819, %v1851
        %v2108 = vadd.f32 %v1820, %v1852
        %v2109 = vadd.f32 %v1821, %v1853
        %v2110 = vadd.f32 %v1822, %v1854
        %v2111 = vadd.f32 %v1823, %v1855
        %v2112 = vadd.f32 %v1824, %v1856
        %v2113 = vadd.f32 %v1825, %v1857
        %v2114 = vadd.f32 %v1826, %v1858
        %v2115 = vadd.f32 %v1827, %v1859
        %v2116 = vadd.f32 %v1828, %v1860
        %v2117 = vadd.f32 %v1829, %v1861
        %v2118 = vadd.f32 %v1830, %v1862
        %v2119 = vadd.f32 %v1831, %v1863
        %v2120 = vadd.f32 %v1832, %v1864
        %v2121 = vadd.f32 %v1833, %v1865
        %v2122 = vadd.f32 %v1834, %v1866
        %v2123 = vadd.f32 %v1835, %v1867
        %v2124 = vadd.f32 %v2060, %v2092
        %v2125 = vadd.f32 %v2061, %v2093
        %v2126 = vadd.f32 %v2062, %v2094
        %v2127 = vadd.f32 %v2063, %v2095
        %v2128 = vadd.f32 %v2064, %v2096
        %v2129 = vadd.f32 %v2065, %v2097
        %v2130 = vadd.f32 %v2066, %v2098
        %v2131 = vadd.f32 %v2067, %v2099
        %v2132 = vadd.f32 %v2068, %v2100
        %v2133 = vadd.f32 %v2069, %v2101
        %v2134 = vadd.f32 %v2070, %v2102
        %v2135 = vadd.f32 %v2071, %v2103
        %v2136 = vadd.f32 %v2072, %v2104
        %v2137 = vadd.f32 %v2073, %v2105
        %v2138 = vadd.f32 %v2074, %v2106
        %v2139 = vadd.f32 %v2075, %v2107
        %v2140 = vadd.f32 %v2076, %v2108
        %v2141 = vadd.f32 %v2077, %v2109
        %v2142 = vadd.f32 %v2078, %v2110
        %v2143 = vadd.f32 %v2079, %v2111
        %v2144 = vadd.f32 %v2080, %v2112
        %v2145 = vadd.f32 %v2081, %v2113
        %v2146 = vadd.f32 %v2082, %v2114
        %v2147 = vadd.f32 %v2083, %v2115
        %v2148 = vadd.f32 %v2084, %v2116
        %v2149 = vadd.f32 %v2085, %v2117
        %v2150 = vadd.f32 %v2086, %v2118
        %v2151 = vadd.f32 %v2087, %v2119
        %v2152 = vadd.f32 %v2088, %v2120
        %v2153 = vadd.f32 %v2089, %v2121
        %v2154 = vadd.f32 %v2090, %v2122
        %v2155 = vadd.f32 %v2091, %v2123
        %v2156 = vmul.f32 %v1113, %v1996
        %v2157 = vmul.f32 %v1114, %v1997
        %v2158 = vmul.f32 %v1115, %v1998
        %v2159 = vmul.f32 %v1116, %v1999
        %v2160 = vmul.f32 %v1117, %v2000
        %v2161 = vmul.f32 %v1118, %v2001
        %v2162 = vmul.f32 %v1119, %v2002
        %v2163 = vmul.f32 %v1120, %v2003
        %v2164 = vmul.f32 %v1121, %v2004
        %v2165 = vmul.f32 %v1122, %v2005
        %v2166 = vmul.f32 %v1123, %v2006
        %v2167 = vmul.f32 %v1124, %v2007
        %v2168 = vmul.f32 %v1125, %v2008
        %v2169 = vmul.f32 %v1126, %v2009
        %v2170 = vmul.f32 %v1127, %v2010
        %v2171 = vmul.f32 %v1128, %v2011
        %v2172 = vmul.f32 %v1129, %v2012
        %v2173 = vmul.f32 %v1130, %v2013
        %v2174 = vmul.f32 %v1131, %v2014
        %v2175 = vmul.f32 %v1132, %v2015
        %v2176 = vmul.f32 %v1133, %v2016
        %v2177 = vmul.f32 %v1134, %v2017
        %v2178 = vmul.f32 %v1135, %v2018
        %v2179 = vmul.f32 %v1136, %v2019
        %v2180 = vmul.f32 %v1137, %v2020
        %v2181 = vmul.f32 %v1138, %v2021
        %v2182 = vmul.f32 %v1139, %v2022
        %v2183 = vmul.f32 %v1140, %v2023
        %v2184 = vmul.f32 %v1141, %v2024
        %v2185 = vmul.f32 %v1142, %v2025
        %v2186 = vmul.f32 %v1143, %v2026
        %v2187 = vmul.f32 %v1144, %v2027
        %v2188 = vadd.f32 %v2156, %v2157
        %v2189 = vrot.slane %v2188, 4
        %v2190 = vadd.f32 %v2188, %v2189
        %v2191 = vrot.slane %v2190, 2
        %v2192 = vadd.f32 %v2190, %v2191
        %v2193 = vrot.slane %v2192, 1
        %v2194 = vadd.f32 %v2192, %v2193
        %v2195 = vadd.f32 %v2158, %v2159
        %v2196 = vrot.slane %v2195, 4
        %v2197 = vadd.f32 %v2195, %v2196
        %v2198 = vrot.slane %v2197, 2
        %v2199 = vadd.f32 %v2197, %v2198
        %v2200 = vrot.slane %v2199, 1
        %v2201 = vadd.f32 %v2199, %v2200
        %v2202 = vadd.f32 %v2160, %v2161
        %v2203 = vrot.slane %v2202, 4
        %v2204 = vadd.f32 %v2202, %v2203
        %v2205 = vrot.slane %v2204, 2
        %v2206 = vadd.f32 %v2204, %v2205
        %v2207 = vrot.slane %v2206, 1
        %v2208 = vadd.f32 %v2206, %v2207
        %v2209 = vadd.f32 %v2162, %v2163
        %v2210 = vrot.slane %v2209, 4
        %v2211 = vadd.f32 %v2209, %v2210
        %v2212 = vrot.slane %v2211, 2
        %v2213 = vadd.f32 %v2211, %v2212
        %v2214 = vrot.slane %v2213, 1
        %v2215 = vadd.f32 %v2213, %v2214
        %v2216 = vadd.f32 %v2164, %v2165
        %v2217 = vrot.slane %v2216, 4
        %v2218 = vadd.f32 %v2216, %v2217
        %v2219 = vrot.slane %v2218, 2
        %v2220 = vadd.f32 %v2218, %v2219
        %v2221 = vrot.slane %v2220, 1
        %v2222 = vadd.f32 %v2220, %v2221
        %v2223 = vadd.f32 %v2166, %v2167
        %v2224 = vrot.slane %v2223, 4
        %v2225 = vadd.f32 %v2223, %v2224
        %v2226 = vrot.slane %v2225, 2
        %v2227 = vadd.f32 %v2225, %v2226
        %v2228 = vrot.slane %v2227, 1
        %v2229 = vadd.f32 %v2227, %v2228
        %v2230 = vadd.f32 %v2168, %v2169
        %v2231 = vrot.slane %v2230, 4
        %v2232 = vadd.f32 %v2230, %v2231
        %v2233 = vrot.slane %v2232, 2
        %v2234 = vadd.f32 %v2232, %v2233
        %v2235 = vrot.slane %v2234, 1
        %v2236 = vadd.f32 %v2234, %v2235
        %v2237 = vadd.f32 %v2170, %v2171
        %v2238 = vrot.slane %v2237, 4
        %v2239 = vadd.f32 %v2237, %v2238
        %v2240 = vrot.slane %v2239, 2
        %v2241 = vadd.f32 %v2239, %v2240
        %v2242 = vrot.slane %v2241, 1
        %v2243 = vadd.f32 %v2241, %v2242
        %v2244 = vadd.f32 %v2172, %v2173
        %v2245 = vrot.slane %v2244, 4
        %v2246 = vadd.f32 %v2244, %v2245
        %v2247 = vrot.slane %v2246, 2
        %v2248 = vadd.f32 %v2246, %v2247
        %v2249 = vrot.slane %v2248, 1
        %v2250 = vadd.f32 %v2248, %v2249
        %v2251 = vadd.f32 %v2174, %v2175
        %v2252 = vrot.slane %v2251, 4
        %v2253 = vadd.f32 %v2251, %v2252
        %v2254 = vrot.slane %v2253, 2
        %v2255 = vadd.f32 %v2253, %v2254
        %v2256 = vrot.slane %v2255, 1
        %v2257 = vadd.f32 %v2255, %v2256
        %v2258 = vadd.f32 %v2176, %v2177
        %v2259 = vrot.slane %v2258, 4
        %v2260 = vadd.f32 %v2258, %v2259
        %v2261 = vrot.slane %v2260, 2
        %v2262 = vadd.f32 %v2260, %v2261
        %v2263 = vrot.slane %v2262, 1
        %v2264 = vadd.f32 %v2262, %v2263
        %v2265 = vadd.f32 %v2178, %v2179
        %v2266 = vrot.slane %v2265, 4
        %v2267 = vadd.f32 %v2265, %v2266
        %v2268 = vrot.slane %v2267, 2
        %v2269 = vadd.f32 %v2267, %v2268
        %v2270 = vrot.slane %v2269, 1
        %v2271 = vadd.f32 %v2269, %v2270
        %v2272 = vadd.f32 %v2180, %v2181
        %v2273 = vrot.slane %v2272, 4
        %v2274 = vadd.f32 %v2272, %v2273
        %v2275 = vrot.slane %v2274, 2
        %v2276 = vadd.f32 %v2274, %v2275
        %v2277 = vrot.slane %v2276, 1
        %v2278 = vadd.f32 %v2276, %v2277
        %v2279 = vadd.f32 %v2182, %v2183
        %v2280 = vrot.slane %v2279, 4
        %v2281 = vadd.f32 %v2279, %v2280
        %v2282 = vrot.slane %v2281, 2
        %v2283 = vadd.f32 %v2281, %v2282
        %v2284 = vrot.slane %v2283, 1
        %v2285 = vadd.f32 %v2283, %v2284
        %v2286 = vadd.f32 %v2184, %v2185
        %v2287 = vrot.slane %v2286, 4
        %v2288 = vadd.f32 %v2286, %v2287
        %v2289 = vrot.slane %v2288, 2
        %v2290 = vadd.f32 %v2288, %v2289
        %v2291 = vrot.slane %v2290, 1
        %v2292 = vadd.f32 %v2290, %v2291
        %v2293 = vadd.f32 %v2186, %v2187
        %v2294 = vrot.slane %v2293, 4
        %v2295 = vadd.f32 %v2293, %v2294
        %v2296 = vrot.slane %v2295, 2
        %v2297 = vadd.f32 %v2295, %v2296
        %v2298 = vrot.slane %v2297, 1
        %v2299 = vadd.f32 %v2297, %v2298
        %v2300 = vsub.f32 %v2194, %v2156
        %v2301 = vsub.f32 %v2194, %v2157
        %v2302 = vsub.f32 %v2201, %v2158
        %v2303 = vsub.f32 %v2201, %v2159
        %v2304 = vsub.f32 %v2208, %v2160
        %v2305 = vsub.f32 %v2208, %v2161
        %v2306 = vsub.f32 %v2215, %v2162
        %v2307 = vsub.f32 %v2215, %v2163
        %v2308 = vsub.f32 %v2222, %v2164
        %v2309 = vsub.f32 %v2222, %v2165
        %v2310 = vsub.f32 %v2229, %v2166
        %v2311 = vsub.f32 %v2229, %v2167
        %v2312 = vsub.f32 %v2236, %v2168
        %v2313 = vsub.f32 %v2236, %v2169
        %v2314 = vsub.f32 %v2243, %v2170
        %v2315 = vsub.f32 %v2243, %v2171
        %v2316 = vsub.f32 %v2250, %v2172
        %v2317 = vsub.f32 %v2250, %v2173
        %v2318 = vsub.f32 %v2257, %v2174
        %v2319 = vsub.f32 %v2257, %v2175
        %v2320 = vsub.f32 %v2264, %v2176
        %v2321 = vsub.f32 %v2264, %v2177
        %v2322 = vsub.f32 %v2271, %v2178
        %v2323 = vsub.f32 %v2271, %v2179
        %v2324 = vsub.f32 %v2278, %v2180
        %v2325 = vsub.f32 %v2278, %v2181
        %v2326 = vsub.f32 %v2285, %v2182
        %v2327 = vsub.f32 %v2285, %v2183
        %v2328 = vsub.f32 %v2292, %v2184
        %v2329 = vsub.f32 %v2292, %v2185
        %v2330 = vsub.f32 %v2299, %v2186
        %v2331 = vsub.f32 %v2299, %v2187
        %v2332 = vmul.f32 %v1113, %v1113
        %v2333 = vmul.f32 %v1114, %v1114
        %v2334 = vmul.f32 %v1115, %v1115
        %v2335 = vmul.f32 %v1116, %v1116
        %v2336 = vmul.f32 %v1117, %v1117
        %v2337 = vmul.f32 %v1118, %v1118
        %v2338 = vmul.f32 %v1119, %v1119
        %v2339 = vmul.f32 %v1120, %v1120
        %v2340 = vmul.f32 %v1121, %v1121
        %v2341 = vmul.f32 %v1122, %v1122
        %v2342 = vmul.f32 %v1123, %v1123
        %v2343 = vmul.f32 %v1124, %v1124
        %v2344 = vmul.f32 %v1125, %v1125
        %v2345 = vmul.f32 %v1126, %v1126
        %v2346 = vmul.f32 %v1127, %v1127
        %v2347 = vmul.f32 %v1128, %v1128
        %v2348 = vmul.f32 %v1129, %v1129
        %v2349 = vmul.f32 %v1130, %v1130
        %v2350 = vmul.f32 %v1131, %v1131
        %v2351 = vmul.f32 %v1132, %v1132
        %v2352 = vmul.f32 %v1133, %v1133
        %v2353 = vmul.f32 %v1134, %v1134
        %v2354 = vmul.f32 %v1135, %v1135
        %v2355 = vmul.f32 %v1136, %v1136
        %v2356 = vmul.f32 %v1137, %v1137
        %v2357 = vmul.f32 %v1138, %v1138
        %v2358 = vmul.f32 %v1139, %v1139
        %v2359 = vmul.f32 %v1140, %v1140
        %v2360 = vmul.f32 %v1141, %v1141
        %v2361 = vmul.f32 %v1142, %v1142
        %v2362 = vmul.f32 %v1143, %v1143
        %v2363 = vmul.f32 %v1144, %v1144
        %v2364 = vmul.f32 %v1996, %v1996
        %v2365 = vmul.f32 %v1997, %v1997
        %v2366 = vmul.f32 %v1998, %v1998
        %v2367 = vmul.f32 %v1999, %v1999
        %v2368 = vmul.f32 %v2000, %v2000
        %v2369 = vmul.f32 %v2001, %v2001
        %v2370 = vmul.f32 %v2002, %v2002
        %v2371 = vmul.f32 %v2003, %v2003
        %v2372 = vmul.f32 %v2004, %v2004
        %v2373 = vmul.f32 %v2005, %v2005
        %v2374 = vmul.f32 %v2006, %v2006
        %v2375 = vmul.f32 %v2007, %v2007
        %v2376 = vmul.f32 %v2008, %v2008
        %v2377 = vmul.f32 %v2009, %v2009
        %v2378 = vmul.f32 %v2010, %v2010
        %v2379 = vmul.f32 %v2011, %v2011
        %v2380 = vmul.f32 %v2012, %v2012
        %v2381 = vmul.f32 %v2013, %v2013
        %v2382 = vmul.f32 %v2014, %v2014
        %v2383 = vmul.f32 %v2015, %v2015
        %v2384 = vmul.f32 %v2016, %v2016
        %v2385 = vmul.f32 %v2017, %v2017
        %v2386 = vmul.f32 %v2018, %v2018
        %v2387 = vmul.f32 %v2019, %v2019
        %v2388 = vmul.f32 %v2020, %v2020
        %v2389 = vmul.f32 %v2021, %v2021
        %v2390 = vmul.f32 %v2022, %v2022
        %v2391 = vmul.f32 %v2023, %v2023
        %v2392 = vmul.f32 %v2024, %v2024
        %v2393 = vmul.f32 %v2025, %v2025
        %v2394 = vmul.f32 %v2026, %v2026
        %v2395 = vmul.f32 %v2027, %v2027
        %v2396 = vsub.f32 %v2124, %v2364
        %v2397 = vsub.f32 %v2125, %v2365
        %v2398 = vsub.f32 %v2126, %v2366
        %v2399 = vsub.f32 %v2127, %v2367
        %v2400 = vsub.f32 %v2128, %v2368
        %v2401 = vsub.f32 %v2129, %v2369
        %v2402 = vsub.f32 %v2130, %v2370
        %v2403 = vsub.f32 %v2131, %v2371
        %v2404 = vsub.f32 %v2132, %v2372
        %v2405 = vsub.f32 %v2133, %v2373
        %v2406 = vsub.f32 %v2134, %v2374
        %v2407 = vsub.f32 %v2135, %v2375
        %v2408 = vsub.f32 %v2136, %v2376
        %v2409 = vsub.f32 %v2137, %v2377
        %v2410 = vsub.f32 %v2138, %v2378
        %v2411 = vsub.f32 %v2139, %v2379
        %v2412 = vsub.f32 %v2140, %v2380
        %v2413 = vsub.f32 %v2141, %v2381
        %v2414 = vsub.f32 %v2142, %v2382
        %v2415 = vsub.f32 %v2143, %v2383
        %v2416 = vsub.f32 %v2144, %v2384
        %v2417 = vsub.f32 %v2145, %v2385
        %v2418 = vsub.f32 %v2146, %v2386
        %v2419 = vsub.f32 %v2147, %v2387
        %v2420 = vsub.f32 %v2148, %v2388
        %v2421 = vsub.f32 %v2149, %v2389
        %v2422 = vsub.f32 %v2150, %v2390
        %v2423 = vsub.f32 %v2151, %v2391
        %v2424 = vsub.f32 %v2152, %v2392
        %v2425 = vsub.f32 %v2153, %v2393
        %v2426 = vsub.f32 %v2154, %v2394
        %v2427 = vsub.f32 %v2155, %v2395
        %v2428 = vmul.f32 %v2332, %v2396
        %v2429 = vmul.f32 %v2333, %v2397
        %v2430 = vmul.f32 %v2334, %v2398
        %v2431 = vmul.f32 %v2335, %v2399
        %v2432 = vmul.f32 %v2336, %v2400
        %v2433 = vmul.f32 %v2337, %v2401
        %v2434 = vmul.f32 %v2338, %v2402
        %v2435 = vmul.f32 %v2339, %v2403
        %v2436 = vmul.f32 %v2340, %v2404
        %v2437 = vmul.f32 %v2341, %v2405
        %v2438 = vmul.f32 %v2342, %v2406
        %v2439 = vmul.f32 %v2343, %v2407
        %v2440 = vmul.f32 %v2344, %v2408
        %v2441 = vmul.f32 %v2345, %v2409
        %v2442 = vmul.f32 %v2346, %v2410
        %v2443 = vmul.f32 %v2347, %v2411
        %v2444 = vmul.f32 %v2348, %v2412
        %v2445 = vmul.f32 %v2349, %v2413
        %v2446 = vmul.f32 %v2350, %v2414
        %v2447 = vmul.f32 %v2351, %v2415
        %v2448 = vmul.f32 %v2352, %v2416
        %v2449 = vmul.f32 %v2353, %v2417
        %v2450 = vmul.f32 %v2354, %v2418
        %v2451 = vmul.f32 %v2355, %v2419
        %v2452 = vmul.f32 %v2356, %v2420
        %v2453 = vmul.f32 %v2357, %v2421
        %v2454 = vmul.f32 %v2358, %v2422
        %v2455 = vmul.f32 %v2359, %v2423
        %v2456 = vmul.f32 %v2360, %v2424
        %v2457 = vmul.f32 %v2361, %v2425
        %v2458 = vmul.f32 %v2362, %v2426
        %v2459 = vmul.f32 %v2363, %v2427
        %v2460 = vadd.f32 %v2428, %v2429
        %v2461 = vrot.slane %v2460, 4
        %v2462 = vadd.f32 %v2460, %v2461
        %v2463 = vrot.slane %v2462, 2
        %v2464 = vadd.f32 %v2462, %v2463
        %v2465 = vrot.slane %v2464, 1
        %v2466 = vadd.f32 %v2464, %v2465
        %v2467 = vadd.f32 %v2430, %v2431
        %v2468 = vrot.slane %v2467, 4
        %v2469 = vadd.f32 %v2467, %v2468
        %v2470 = vrot.slane %v2469, 2
        %v2471 = vadd.f32 %v2469, %v2470
        %v2472 = vrot.slane %v2471, 1
        %v2473 = vadd.f32 %v2471, %v2472
        %v2474 = vadd.f32 %v2432, %v2433
        %v2475 = vrot.slane %v2474, 4
        %v2476 = vadd.f32 %v2474, %v2475
        %v2477 = vrot.slane %v2476, 2
        %v2478 = vadd.f32 %v2476, %v2477
        %v2479 = vrot.slane %v2478, 1
        %v2480 = vadd.f32 %v2478, %v2479
        %v2481 = vadd.f32 %v2434, %v2435
        %v2482 = vrot.slane %v2481, 4
        %v2483 = vadd.f32 %v2481, %v2482
        %v2484 = vrot.slane %v2483, 2
        %v2485 = vadd.f32 %v2483, %v2484
        %v2486 = vrot.slane %v2485, 1
        %v2487 = vadd.f32 %v2485, %v2486
        %v2488 = vadd.f32 %v2436, %v2437
        %v2489 = vrot.slane %v2488, 4
        %v2490 = vadd.f32 %v2488, %v2489
        %v2491 = vrot.slane %v2490, 2
        %v2492 = vadd.f32 %v2490, %v2491
        %v2493 = vrot.slane %v2492, 1
        %v2494 = vadd.f32 %v2492, %v2493
        %v2495 = vadd.f32 %v2438, %v2439
        %v2496 = vrot.slane %v2495, 4
        %v2497 = vadd.f32 %v2495, %v2496
        %v2498 = vrot.slane %v2497, 2
        %v2499 = vadd.f32 %v2497, %v2498
        %v2500 = vrot.slane %v2499, 1
        %v2501 = vadd.f32 %v2499, %v2500
        %v2502 = vadd.f32 %v2440, %v2441
        %v2503 = vrot.slane %v2502, 4
        %v2504 = vadd.f32 %v2502, %v2503
        %v2505 = vrot.slane %v2504, 2
        %v2506 = vadd.f32 %v2504, %v2505
        %v2507 = vrot.slane %v2506, 1
        %v2508 = vadd.f32 %v2506, %v2507
        %v2509 = vadd.f32 %v2442, %v2443
        %v2510 = vrot.slane %v2509, 4
        %v2511 = vadd.f32 %v2509, %v2510
        %v2512 = vrot.slane %v2511, 2
        %v2513 = vadd.f32 %v2511, %v2512
        %v2514 = vrot.slane %v2513, 1
        %v2515 = vadd.f32 %v2513, %v2514
        %v2516 = vadd.f32 %v2444, %v2445
        %v2517 = vrot.slane %v2516, 4
        %v2518 = vadd.f32 %v2516, %v2517
        %v2519 = vrot.slane %v2518, 2
        %v2520 = vadd.f32 %v2518, %v2519
        %v2521 = vrot.slane %v2520, 1
        %v2522 = vadd.f32 %v2520, %v2521
        %v2523 = vadd.f32 %v2446, %v2447
        %v2524 = vrot.slane %v2523, 4
        %v2525 = vadd.f32 %v2523, %v2524
        %v2526 = vrot.slane %v2525, 2
        %v2527 = vadd.f32 %v2525, %v2526
        %v2528 = vrot.slane %v2527, 1
        %v2529 = vadd.f32 %v2527, %v2528
        %v2530 = vadd.f32 %v2448, %v2449
        %v2531 = vrot.slane %v2530, 4
        %v2532 = vadd.f32 %v2530, %v2531
        %v2533 = vrot.slane %v2532, 2
        %v2534 = vadd.f32 %v2532, %v2533
        %v2535 = vrot.slane %v2534, 1
        %v2536 = vadd.f32 %v2534, %v2535
        %v2537 = vadd.f32 %v2450, %v2451
        %v2538 = vrot.slane %v2537, 4
        %v2539 = vadd.f32 %v2537, %v2538
        %v2540 = vrot.slane %v2539, 2
        %v2541 = vadd.f32 %v2539, %v2540
        %v2542 = vrot.slane %v2541, 1
        %v2543 = vadd.f32 %v2541, %v2542
        %v2544 = vadd.f32 %v2452, %v2453
        %v2545 = vrot.slane %v2544, 4
        %v2546 = vadd.f32 %v2544, %v2545
        %v2547 = vrot.slane %v2546, 2
        %v2548 = vadd.f32 %v2546, %v2547
        %v2549 = vrot.slane %v2548, 1
        %v2550 = vadd.f32 %v2548, %v2549
        %v2551 = vadd.f32 %v2454, %v2455
        %v2552 = vrot.slane %v2551, 4
        %v2553 = vadd.f32 %v2551, %v2552
        %v2554 = vrot.slane %v2553, 2
        %v2555 = vadd.f32 %v2553, %v2554
        %v2556 = vrot.slane %v2555, 1
        %v2557 = vadd.f32 %v2555, %v2556
        %v2558 = vadd.f32 %v2456, %v2457
        %v2559 = vrot.slane %v2558, 4
        %v2560 = vadd.f32 %v2558, %v2559
        %v2561 = vrot.slane %v2560, 2
        %v2562 = vadd.f32 %v2560, %v2561
        %v2563 = vrot.slane %v2562, 1
        %v2564 = vadd.f32 %v2562, %v2563
        %v2565 = vadd.f32 %v2458, %v2459
        %v2566 = vrot.slane %v2565, 4
        %v2567 = vadd.f32 %v2565, %v2566
        %v2568 = vrot.slane %v2567, 2
        %v2569 = vadd.f32 %v2567, %v2568
        %v2570 = vrot.slane %v2569, 1
        %v2571 = vadd.f32 %v2569, %v2570
        %v2572 = vsub.f32 %v2466, %v2428
        %v2573 = vsub.f32 %v2466, %v2429
        %v2574 = vsub.f32 %v2473, %v2430
        %v2575 = vsub.f32 %v2473, %v2431
        %v2576 = vsub.f32 %v2480, %v2432
        %v2577 = vsub.f32 %v2480, %v2433
        %v2578 = vsub.f32 %v2487, %v2434
        %v2579 = vsub.f32 %v2487, %v2435
        %v2580 = vsub.f32 %v2494, %v2436
        %v2581 = vsub.f32 %v2494, %v2437
        %v2582 = vsub.f32 %v2501, %v2438
        %v2583 = vsub.f32 %v2501, %v2439
        %v2584 = vsub.f32 %v2508, %v2440
        %v2585 = vsub.f32 %v2508, %v2441
        %v2586 = vsub.f32 %v2515, %v2442
        %v2587 = vsub.f32 %v2515, %v2443
        %v2588 = vsub.f32 %v2522, %v2444
        %v2589 = vsub.f32 %v2522, %v2445
        %v2590 = vsub.f32 %v2529, %v2446
        %v2591 = vsub.f32 %v2529, %v2447
        %v2592 = vsub.f32 %v2536, %v2448
        %v2593 = vsub.f32 %v2536, %v2449
        %v2594 = vsub.f32 %v2543, %v2450
        %v2595 = vsub.f32 %v2543, %v2451
        %v2596 = vsub.f32 %v2550, %v2452
        %v2597 = vsub.f32 %v2550, %v2453
        %v2598 = vsub.f32 %v2557, %v2454
        %v2599 = vsub.f32 %v2557, %v2455
        %v2600 = vsub.f32 %v2564, %v2456
        %v2601 = vsub.f32 %v2564, %v2457
        %v2602 = vsub.f32 %v2571, %v2458
        %v2603 = vsub.f32 %v2571, %v2459
        %v2604 = vstv %s1112
        %v2605 = vadd.f32 %v2572, %v2604
        %v2606 = vadd.f32 %v2573, %v2604
        %v2607 = vadd.f32 %v2574, %v2604
        %v2608 = vadd.f32 %v2575, %v2604
        %v2609 = vadd.f32 %v2576, %v2604
        %v2610 = vadd.f32 %v2577, %v2604
        %v2611 = vadd.f32 %v2578, %v2604
        %v2612 = vadd.f32 %v2579, %v2604
        %v2613 = vadd.f32 %v2580, %v2604
        %v2614 = vadd.f32 %v2581, %v2604
        %v2615 = vadd.f32 %v2582, %v2604
        %v2616 = vadd.f32 %v2583, %v2604
        %v2617 = vadd.f32 %v2584, %v2604
        %v2618 = vadd.f32 %v2585, %v2604
        %v2619 = vadd.f32 %v2586, %v2604
        %v2620 = vadd.f32 %v2587, %v2604
        %v2621 = vadd.f32 %v2588, %v2604
        %v2622 = vadd.f32 %v2589, %v2604
        %v2623 = vadd.f32 %v2590, %v2604
        %v2624 = vadd.f32 %v2591, %v2604
        %v2625 = vadd.f32 %v2592, %v2604
        %v2626 = vadd.f32 %v2593, %v2604
        %v2627 = vadd.f32 %v2594, %v2604
        %v2628 = vadd.f32 %v2595, %v2604
        %v2629 = vadd.f32 %v2596, %v2604
        %v2630 = vadd.f32 %v2597, %v2604
        %v2631 = vadd.f32 %v2598, %v2604
        %v2632 = vadd.f32 %v2599, %v2604
        %v2633 = vadd.f32 %v2600, %v2604
        %v2634 = vadd.f32 %v2601, %v2604
        %v2635 = vadd.f32 %v2602, %v2604
        %v2636 = vadd.f32 %v2603, %v2604
        %v2637 = vrcp.pop %v2605
        %v2638 = vrcp.pop %v2606
        %v2639 = vrcp.pop %v2607
        %v2640 = vrcp.pop %v2608
        %v2641 = vrcp.pop %v2609
        %v2642 = vrcp.pop %v2610
        %v2643 = vrcp.pop %v2611
        %v2644 = vrcp.pop %v2612
        %v2645 = vrcp.pop %v2613
        %v2646 = vrcp.pop %v2614
        %v2647 = vrcp.pop %v2615
        %v2648 = vrcp.pop %v2616
        %v2649 = vrcp.pop %v2617
        %v2650 = vrcp.pop %v2618
        %v2651 = vrcp.pop %v2619
        %v2652 = vrcp.pop %v2620
        %v2653 = vrcp.pop %v2621
        %v2654 = vrcp.pop %v2622
        %v2655 = vrcp.pop %v2623
        %v2656 = vrcp.pop %v2624
        %v2657 = vrcp.pop %v2625
        %v2658 = vrcp.pop %v2626
        %v2659 = vrcp.pop %v2627
        %v2660 = vrcp.pop %v2628
        %v2661 = vrcp.pop %v2629
        %v2662 = vrcp.pop %v2630
        %v2663 = vrcp.pop %v2631
        %v2664 = vrcp.pop %v2632
        %v2665 = vrcp.pop %v2633
        %v2666 = vrcp.pop %v2634
        %v2667 = vrcp.pop %v2635
        %v2668 = vrcp.pop %v2636
        %v2685 = vlaneseq
        %v2686 = vshrl.u32 %v2685, 7
        %v2687 = vsub.s32 0, %v2686
        %v2688 = vrot.slane %v1145, %v2687
        %v2689 = vlaneseq
        %v2690 = vshrl.u32 %v2689, 7
        %v2691 = vsub.s32 0, %v2690
        %v2692 = vrot.slane %v1146, %v2691
        %v2693 = vlaneseq
        %v2694 = vshrl.u32 %v2693, 7
        %v2695 = vsub.s32 0, %v2694
        %v2696 = vrot.slane %v1147, %v2695
        %v2697 = vlaneseq
        %v2698 = vshrl.u32 %v2697, 7
        %v2699 = vsub.s32 0, %v2698
        %v2700 = vrot.slane %v1148, %v2699
        %v2701 = vlaneseq
        %v2702 = vshrl.u32 %v2701, 7
        %v2703 = vsub.s32 0, %v2702
        %v2704 = vrot.slane %v1149, %v2703
        %v2705 = vlaneseq
        %v2706 = vshrl.u32 %v2705, 7
        %v2707 = vsub.s32 0, %v2706
        %v2708 = vrot.slane %v1150, %v2707
        %v2709 = vlaneseq
        %v2710 = vshrl.u32 %v2709, 7
        %v2711 = vsub.s32 0, %v2710
        %v2712 = vrot.slane %v1151, %v2711
        %v2713 = vlaneseq
        %v2714 = vshrl.u32 %v2713, 7
        %v2715 = vsub.s32 0, %v2714
        %v2716 = vrot.slane %v1152, %v2715
        %v2717 = vlaneseq
        %v2718 = vshrl.u32 %v2717, 7
        %v2719 = vsub.s32 0, %v2718
        %v2720 = vrot.slane %v1153, %v2719
        %v2721 = vlaneseq
        %v2722 = vshrl.u32 %v2721, 7
        %v2723 = vsub.s32 0, %v2722
        %v2724 = vrot.slane %v1154, %v2723
        %v2725 = vlaneseq
        %v2726 = vshrl.u32 %v2725, 7
        %v2727 = vsub.s32 0, %v2726
        %v2728 = vrot.slane %v1155, %v2727
        %v2729 = vlaneseq
        %v2730 = vshrl.u32 %v2729, 7
        %v2731 = vsub.s32 0, %v2730
        %v2732 = vrot.slane %v1156, %v2731
        %v2733 = vlaneseq
        %v2734 = vshrl.u32 %v2733, 7
        %v2735 = vsub.s32 0, %v2734
        %v2736 = vrot.slane %v1157, %v2735
        %v2737 = vlaneseq
        %v2738 = vshrl.u32 %v2737, 7
        %v2739 = vsub.s32 0, %v2738
        %v2740 = vrot.slane %v1158, %v2739
        %v2741 = vlaneseq
        %v2742 = vshrl.u32 %v2741, 7
        %v2743 = vsub.s32 0, %v2742
        %v2744 = vrot.slane %v1159, %v2743
        %v2745 = vlaneseq
        %v2746 = vshrl.u32 %v2745, 7
        %v2747 = vsub.s32 0, %v2746
        %v2748 = vrot.slane %v1160, %v2747
        %v2765 = vsub.f32 %v2688, %v2300
        %v2766 = vsub.f32 %v2688, %v2301
        %v2767 = vsub.f32 %v2692, %v2302
        %v2768 = vsub.f32 %v2692, %v2303
        %v2769 = vsub.f32 %v2696, %v2304
        %v2770 = vsub.f32 %v2696, %v2305
        %v2771 = vsub.f32 %v2700, %v2306
        %v2772 = vsub.f32 %v2700, %v2307
        %v2773 = vsub.f32 %v2704, %v2308
        %v2774 = vsub.f32 %v2704, %v2309
        %v2775 = vsub.f32 %v2708, %v2310
        %v2776 = vsub.f32 %v2708, %v2311
        %v2777 = vsub.f32 %v2712, %v2312
        %v2778 = vsub.f32 %v2712, %v2313
        %v2779 = vsub.f32 %v2716, %v2314
        %v2780 = vsub.f32 %v2716, %v2315
        %v2781 = vsub.f32 %v2720, %v2316
        %v2782 = vsub.f32 %v2720, %v2317
        %v2783 = vsub.f32 %v2724, %v2318
        %v2784 = vsub.f32 %v2724, %v2319
        %v2785 = vsub.f32 %v2728, %v2320
        %v2786 = vsub.f32 %v2728, %v2321
        %v2787 = vsub.f32 %v2732, %v2322
        %v2788 = vsub.f32 %v2732, %v2323
        %v2789 = vsub.f32 %v2736, %v2324
        %v2790 = vsub.f32 %v2736, %v2325
        %v2791 = vsub.f32 %v2740, %v2326
        %v2792 = vsub.f32 %v2740, %v2327
        %v2793 = vsub.f32 %v2744, %v2328
        %v2794 = vsub.f32 %v2744, %v2329
        %v2795 = vsub.f32 %v2748, %v2330
        %v2796 = vsub.f32 %v2748, %v2331
        %v2797 = vmul.f32 %v1113, %v2765
        %v2798 = vmul.f32 %v1114, %v2766
        %v2799 = vmul.f32 %v1115, %v2767
        %v2800 = vmul.f32 %v1116, %v2768
        %v2801 = vmul.f32 %v1117, %v2769
        %v2802 = vmul.f32 %v1118, %v2770
        %v2803 = vmul.f32 %v1119, %v2771
        %v2804 = vmul.f32 %v1120, %v2772
        %v2805 = vmul.f32 %v1121, %v2773
        %v2806 = vmul.f32 %v1122, %v2774
        %v2807 = vmul.f32 %v1123, %v2775
        %v2808 = vmul.f32 %v1124, %v2776
        %v2809 = vmul.f32 %v1125, %v2777
        %v2810 = vmul.f32 %v1126, %v2778
        %v2811 = vmul.f32 %v1127, %v2779
        %v2812 = vmul.f32 %v1128, %v2780
        %v2813 = vmul.f32 %v1129, %v2781
        %v2814 = vmul.f32 %v1130, %v2782
        %v2815 = vmul.f32 %v1131, %v2783
        %v2816 = vmul.f32 %v1132, %v2784
        %v2817 = vmul.f32 %v1133, %v2785
        %v2818 = vmul.f32 %v1134, %v2786
        %v2819 = vmul.f32 %v1135, %v2787
        %v2820 = vmul.f32 %v1136, %v2788
        %v2821 = vmul.f32 %v1137, %v2789
        %v2822 = vmul.f32 %v1138, %v2790
        %v2823 = vmul.f32 %v1139, %v2791
        %v2824 = vmul.f32 %v1140, %v2792
        %v2825 = vmul.f32 %v1141, %v2793
        %v2826 = vmul.f32 %v1142, %v2794
        %v2827 = vmul.f32 %v1143, %v2795
        %v2828 = vmul.f32 %v1144, %v2796
        %v2829 = vmul.f32 %v2797, 2.0
        %v2830 = vmul.f32 %v2798, 2.0
        %v2831 = vmul.f32 %v2799, 2.0
        %v2832 = vmul.f32 %v2800, 2.0
        %v2833 = vmul.f32 %v2801, 2.0
        %v2834 = vmul.f32 %v2802, 2.0
        %v2835 = vmul.f32 %v2803, 2.0
        %v2836 = vmul.f32 %v2804, 2.0
        %v2837 = vmul.f32 %v2805, 2.0
        %v2838 = vmul.f32 %v2806, 2.0
        %v2839 = vmul.f32 %v2807, 2.0
        %v2840 = vmul.f32 %v2808, 2.0
        %v2841 = vmul.f32 %v2809, 2.0
        %v2842 = vmul.f32 %v2810, 2.0
        %v2843 = vmul.f32 %v2811, 2.0
        %v2844 = vmul.f32 %v2812, 2.0
        %v2845 = vmul.f32 %v2813, 2.0
        %v2846 = vmul.f32 %v2814, 2.0
        %v2847 = vmul.f32 %v2815, 2.0
        %v2848 = vmul.f32 %v2816, 2.0
        %v2849 = vmul.f32 %v2817, 2.0
        %v2850 = vmul.f32 %v2818, 2.0
        %v2851 = vmul.f32 %v2819, 2.0
        %v2852 = vmul.f32 %v2820, 2.0
        %v2853 = vmul.f32 %v2821, 2.0
        %v2854 = vmul.f32 %v2822, 2.0
        %v2855 = vmul.f32 %v2823, 2.0
        %v2856 = vmul.f32 %v2824, 2.0
        %v2857 = vmul.f32 %v2825, 2.0
        %v2858 = vmul.f32 %v2826, 2.0
        %v2859 = vmul.f32 %v2827, 2.0
        %v2860 = vmul.f32 %v2828, 2.0
        %v2861 = vmul.f32 %v2829, %v2637
        %v2862 = vmul.f32 %v2830, %v2638
        %v2863 = vmul.f32 %v2831, %v2639
        %v2864 = vmul.f32 %v2832, %v2640
        %v2865 = vmul.f32 %v2833, %v2641
        %v2866 = vmul.f32 %v2834, %v2642
        %v2867 = vmul.f32 %v2835, %v2643
        %v2868 = vmul.f32 %v2836, %v2644
        %v2869 = vmul.f32 %v2837, %v2645
        %v2870 = vmul.f32 %v2838, %v2646
        %v2871 = vmul.f32 %v2839, %v2647
        %v2872 = vmul.f32 %v2840, %v2648
        %v2873 = vmul.f32 %v2841, %v2649
        %v2874 = vmul.f32 %v2842, %v2650
        %v2875 = vmul.f32 %v2843, %v2651
        %v2876 = vmul.f32 %v2844, %v2652
        %v2877 = vmul.f32 %v2845, %v2653
        %v2878 = vmul.f32 %v2846, %v2654
        %v2879 = vmul.f32 %v2847, %v2655
        %v2880 = vmul.f32 %v2848, %v2656
        %v2881 = vmul.f32 %v2849, %v2657
        %v2882 = vmul.f32 %v2850, %v2658
        %v2883 = vmul.f32 %v2851, %v2659
        %v2884 = vmul.f32 %v2852, %v2660
        %v2885 = vmul.f32 %v2853, %v2661
        %v2886 = vmul.f32 %v2854, %v2662
        %v2887 = vmul.f32 %v2855, %v2663
        %v2888 = vmul.f32 %v2856, %v2664
        %v2889 = vmul.f32 %v2857, %v2665
        %v2890 = vmul.f32 %v2858, %v2666
        %v2891 = vmul.f32 %v2859, %v2667
        %v2892 = vmul.f32 %v2860, %v2668
        %v2893 = vmul.f32 %v2332, 4.0
        %v2894 = vmul.f32 %v2333, 4.0
        %v2895 = vmul.f32 %v2334, 4.0
        %v2896 = vmul.f32 %v2335, 4.0
        %v2897 = vmul.f32 %v2336, 4.0
        %v2898 = vmul.f32 %v2337, 4.0
        %v2899 = vmul.f32 %v2338, 4.0
        %v2900 = vmul.f32 %v2339, 4.0
        %v2901 = vmul.f32 %v2340, 4.0
        %v2902 = vmul.f32 %v2341, 4.0
        %v2903 = vmul.f32 %v2342, 4.0
        %v2904 = vmul.f32 %v2343, 4.0
        %v2905 = vmul.f32 %v2344, 4.0
        %v2906 = vmul.f32 %v2345, 4.0
        %v2907 = vmul.f32 %v2346, 4.0
        %v2908 = vmul.f32 %v2347, 4.0
        %v2909 = vmul.f32 %v2348, 4.0
        %v2910 = vmul.f32 %v2349, 4.0
        %v2911 = vmul.f32 %v2350, 4.0
        %v2912 = vmul.f32 %v2351, 4.0
        %v2913 = vmul.f32 %v2352, 4.0
        %v2914 = vmul.f32 %v2353, 4.0
        %v2915 = vmul.f32 %v2354, 4.0
        %v2916 = vmul.f32 %v2355, 4.0
        %v2917 = vmul.f32 %v2356, 4.0
        %v2918 = vmul.f32 %v2357, 4.0
        %v2919 = vmul.f32 %v2358, 4.0
        %v2920 = vmul.f32 %v2359, 4.0
        %v2921 = vmul.f32 %v2360, 4.0
        %v2922 = vmul.f32 %v2361, 4.0
        %v2923 = vmul.f32 %v2362, 4.0
        %v2924 = vmul.f32 %v2363, 4.0
        %v2925 = vmul.f32 %v2893, %v2637
        %v2926 = vmul.f32 %v2894, %v2638
        %v2927 = vmul.f32 %v2895, %v2639
        %v2928 = vmul.f32 %v2896, %v2640
        %v2929 = vmul.f32 %v2897, %v2641
        %v2930 = vmul.f32 %v2898, %v2642
        %v2931 = vmul.f32 %v2899, %v2643
        %v2932 = vmul.f32 %v2900, %v2644
        %v2933 = vmul.f32 %v2901, %v2645
        %v2934 = vmul.f32 %v2902, %v2646
        %v2935 = vmul.f32 %v2903, %v2647
        %v2936 = vmul.f32 %v2904, %v2648
        %v2937 = vmul.f32 %v2905, %v2649
        %v2938 = vmul.f32 %v2906, %v2650
        %v2939 = vmul.f32 %v2907, %v2651
        %v2940 = vmul.f32 %v2908, %v2652
        %v2941 = vmul.f32 %v2909, %v2653
        %v2942 = vmul.f32 %v2910, %v2654
        %v2943 = vmul.f32 %v2911, %v2655
        %v2944 = vmul.f32 %v2912, %v2656
        %v2945 = vmul.f32 %v2913, %v2657
        %v2946 = vmul.f32 %v2914, %v2658
        %v2947 = vmul.f32 %v2915, %v2659
        %v2948 = vmul.f32 %v2916, %v2660
        %v2949 = vmul.f32 %v2917, %v2661
        %v2950 = vmul.f32 %v2918, %v2662
        %v2951 = vmul.f32 %v2919, %v2663
        %v2952 = vmul.f32 %v2920, %v2664
        %v2953 = vmul.f32 %v2921, %v2665
        %v2954 = vmul.f32 %v2922, %v2666
        %v2955 = vmul.f32 %v2923, %v2667
        %v2956 = vmul.f32 %v2924, %v2668
        %v2957 = vadd.f32 %v2861, %v2925
        %v2958 = vadd.f32 %v2862, %v2926
        %v2959 = vadd.f32 %v2863, %v2927
        %v2960 = vadd.f32 %v2864, %v2928
        %v2961 = vadd.f32 %v2865, %v2929
        %v2962 = vadd.f32 %v2866, %v2930
        %v2963 = vadd.f32 %v2867, %v2931
        %v2964 = vadd.f32 %v2868, %v2932
        %v2965 = vadd.f32 %v2869, %v2933
        %v2966 = vadd.f32 %v2870, %v2934
        %v2967 = vadd.f32 %v2871, %v2935
        %v2968 = vadd.f32 %v2872, %v2936
        %v2969 = vadd.f32 %v2873, %v2937
        %v2970 = vadd.f32 %v2874, %v2938
        %v2971 = vadd.f32 %v2875, %v2939
        %v2972 = vadd.f32 %v2876, %v2940
        %v2973 = vadd.f32 %v2877, %v2941
        %v2974 = vadd.f32 %v2878, %v2942
        %v2975 = vadd.f32 %v2879, %v2943
        %v2976 = vadd.f32 %v2880, %v2944
        %v2977 = vadd.f32 %v2881, %v2945
        %v2978 = vadd.f32 %v2882, %v2946
        %v2979 = vadd.f32 %v2883, %v2947
        %v2980 = vadd.f32 %v2884, %v2948
        %v2981 = vadd.f32 %v2885, %v2949
        %v2982 = vadd.f32 %v2886, %v2950
        %v2983 = vadd.f32 %v2887, %v2951
        %v2984 = vadd.f32 %v2888, %v2952
        %v2985 = vadd.f32 %v2889, %v2953
        %v2986 = vadd.f32 %v2890, %v2954
        %v2987 = vadd.f32 %v2891, %v2955
        %v2988 = vadd.f32 %v2892, %v2956
        %v2989 = vadd.f32 %v2957, %v2861
        %v2990 = vadd.f32 %v2958, %v2862
        %v2991 = vadd.f32 %v2959, %v2863
        %v2992 = vadd.f32 %v2960, %v2864
        %v2993 = vadd.f32 %v2961, %v2865
        %v2994 = vadd.f32 %v2962, %v2866
        %v2995 = vadd.f32 %v2963, %v2867
        %v2996 = vadd.f32 %v2964, %v2868
        %v2997 = vadd.f32 %v2965, %v2869
        %v2998 = vadd.f32 %v2966, %v2870
        %v2999 = vadd.f32 %v2967, %v2871
        %v3000 = vadd.f32 %v2968, %v2872
        %v3001 = vadd.f32 %v2969, %v2873
        %v3002 = vadd.f32 %v2970, %v2874
        %v3003 = vadd.f32 %v2971, %v2875
        %v3004 = vadd.f32 %v2972, %v2876
        %v3005 = vadd.f32 %v2973, %v2877
        %v3006 = vadd.f32 %v2974, %v2878
        %v3007 = vadd.f32 %v2975, %v2879
        %v3008 = vadd.f32 %v2976, %v2880
        %v3009 = vadd.f32 %v2977, %v2881
        %v3010 = vadd.f32 %v2978, %v2882
        %v3011 = vadd.f32 %v2979, %v2883
        %v3012 = vadd.f32 %v2980, %v2884
        %v3013 = vadd.f32 %v2981, %v2885
        %v3014 = vadd.f32 %v2982, %v2886
        %v3015 = vadd.f32 %v2983, %v2887
        %v3016 = vadd.f32 %v2984, %v2888
        %v3017 = vadd.f32 %v2985, %v2889
        %v3018 = vadd.f32 %v2986, %v2890
        %v3019 = vadd.f32 %v2987, %v2891
        %v3020 = vadd.f32 %v2988, %v2892
        %v3021 = vmul.f32 %v2861, 3.0
        %v3022 = vmul.f32 %v2862, 3.0
        %v3023 = vmul.f32 %v2863, 3.0
        %v3024 = vmul.f32 %v2864, 3.0
        %v3025 = vmul.f32 %v2865, 3.0
        %v3026 = vmul.f32 %v2866, 3.0
        %v3027 = vmul.f32 %v2867, 3.0
        %v3028 = vmul.f32 %v2868, 3.0
        %v3029 = vmul.f32 %v2869, 3.0
        %v3030 = vmul.f32 %v2870, 3.0
        %v3031 = vmul.f32 %v2871, 3.0
        %v3032 = vmul.f32 %v2872, 3.0
        %v3033 = vmul.f32 %v2873, 3.0
        %v3034 = vmul.f32 %v2874, 3.0
        %v3035 = vmul.f32 %v2875, 3.0
        %v3036 = vmul.f32 %v2876, 3.0
        %v3037 = vmul.f32 %v2877, 3.0
        %v3038 = vmul.f32 %v2878, 3.0
        %v3039 = vmul.f32 %v2879, 3.0
        %v3040 = vmul.f32 %v2880, 3.0
        %v3041 = vmul.f32 %v2881, 3.0
        %v3042 = vmul.f32 %v2882, 3.0
        %v3043 = vmul.f32 %v2883, 3.0
        %v3044 = vmul.f32 %v2884, 3.0
        %v3045 = vmul.f32 %v2885, 3.0
        %v3046 = vmul.f32 %v2886, 3.0
        %v3047 = vmul.f32 %v2887, 3.0
        %v3048 = vmul.f32 %v2888, 3.0
        %v3049 = vmul.f32 %v2889, 3.0
        %v3050 = vmul.f32 %v2890, 3.0
        %v3051 = vmul.f32 %v2891, 3.0
        %v3052 = vmul.f32 %v2892, 3.0
        %v3053 = vadd.f32 %v2957, %v2959
        %v3054 = vadd.f32 %v3053, %v2961
        %v3055 = vadd.f32 %v3054, %v2963
        %v3056 = vadd.f32 %v3055, %v2965
        %v3057 = vadd.f32 %v3056, %v2967
        %v3058 = vadd.f32 %v3057, %v2969
        %v3059 = vadd.f32 %v3058, %v2971
        %v3060 = vadd.f32 %v3059, %v2973
        %v3061 = vadd.f32 %v3060, %v2975
        %v3062 = vadd.f32 %v3061, %v2977
        %v3063 = vadd.f32 %v3062, %v2979
        %v3064 = vadd.f32 %v3063, %v2981
        %v3065 = vadd.f32 %v3064, %v2983
        %v3066 = vadd.f32 %v3065, %v2985
        %v3067 = vadd.f32 %v3066, %v2987
        %v3068 = vadd.f32 %v2958, %v2960
        %v3069 = vadd.f32 %v3068, %v2962
        %v3070 = vadd.f32 %v3069, %v2964
        %v3071 = vadd.f32 %v3070, %v2966
        %v3072 = vadd.f32 %v3071, %v2968
        %v3073 = vadd.f32 %v3072, %v2970
        %v3074 = vadd.f32 %v3073, %v2972
        %v3075 = vadd.f32 %v3074, %v2974
        %v3076 = vadd.f32 %v3075, %v2976
        %v3077 = vadd.f32 %v3076, %v2978
        %v3078 = vadd.f32 %v3077, %v2980
        %v3079 = vadd.f32 %v3078, %v2982
        %v3080 = vadd.f32 %v3079, %v2984
        %v3081 = vadd.f32 %v3080, %v2986
        %v3082 = vadd.f32 %v3081, %v2988
        %v3083 = vadd.f32 %v2989, %v2991
        %v3084 = vadd.f32 %v3083, %v2993
        %v3085 = vadd.f32 %v3084, %v2995
        %v3086 = vadd.f32 %v3085, %v2997
        %v3087 = vadd.f32 %v3086, %v2999
        %v3088 = vadd.f32 %v3087, %v3001
        %v3089 = vadd.f32 %v3088, %v3003
        %v3090 = vadd.f32 %v3089, %v3005
        %v3091 = vadd.f32 %v3090, %v3007
        %v3092 = vadd.f32 %v3091, %v3009
        %v3093 = vadd.f32 %v3092, %v3011
        %v3094 = vadd.f32 %v3093, %v3013
        %v3095 = vadd.f32 %v3094, %v3015
        %v3096 = vadd.f32 %v3095, %v3017
        %v3097 = vadd.f32 %v3096, %v3019
        %v3098 = vadd.f32 %v2990, %v2992
        %v3099 = vadd.f32 %v3098, %v2994
        %v3100 = vadd.f32 %v3099, %v2996
        %v3101 = vadd.f32 %v3100, %v2998
        %v3102 = vadd.f32 %v3101, %v3000
        %v3103 = vadd.f32 %v3102, %v3002
        %v3104 = vadd.f32 %v3103, %v3004
        %v3105 = vadd.f32 %v3104, %v3006
        %v3106 = vadd.f32 %v3105, %v3008
        %v3107 = vadd.f32 %v3106, %v3010
        %v3108 = vadd.f32 %v3107, %v3012
        %v3109 = vadd.f32 %v3108, %v3014
        %v3110 = vadd.f32 %v3109, %v3016
        %v3111 = vadd.f32 %v3110, %v3018
        %v3112 = vadd.f32 %v3111, %v3020
        %v3113 = vadd.f32 %v3021, %v3023
        %v3114 = vadd.f32 %v3113, %v3025
        %v3115 = vadd.f32 %v3114, %v3027
        %v3116 = vadd.f32 %v3115, %v3029
        %v3117 = vadd.f32 %v3116, %v3031
        %v3118 = vadd.f32 %v3117, %v3033
        %v3119 = vadd.f32 %v3118, %v3035
        %v3120 = vadd.f32 %v3119, %v3037
        %v3121 = vadd.f32 %v3120, %v3039
        %v3122 = vadd.f32 %v3121, %v3041
        %v3123 = vadd.f32 %v3122, %v3043
        %v3124 = vadd.f32 %v3123, %v3045
        %v3125 = vadd.f32 %v3124, %v3047
        %v3126 = vadd.f32 %v3125, %v3049
        %v3127 = vadd.f32 %v3126, %v3051
        %v3128 = vadd.f32 %v3022, %v3024
        %v3129 = vadd.f32 %v3128, %v3026
        %v3130 = vadd.f32 %v3129, %v3028
        %v3131 = vadd.f32 %v3130, %v3030
        %v3132 = vadd.f32 %v3131, %v3032
        %v3133 = vadd.f32 %v3132, %v3034
        %v3134 = vadd.f32 %v3133, %v3036
        %v3135 = vadd.f32 %v3134, %v3038
        %v3136 = vadd.f32 %v3135, %v3040
        %v3137 = vadd.f32 %v3136, %v3042
        %v3138 = vadd.f32 %v3137, %v3044
        %v3139 = vadd.f32 %v3138, %v3046
        %v3140 = vadd.f32 %v3139, %v3048
        %v3141 = vadd.f32 %v3140, %v3050
        %v3142 = vadd.f32 %v3141, %v3052
        %v3143 = vsub.f32 %v3067, %v2957
        %v3144 = vsub.f32 %v3082, %v2958
        %v3145 = vsub.f32 %v3067, %v2959
        %v3146 = vsub.f32 %v3082, %v2960
        %v3147 = vsub.f32 %v3067, %v2961
        %v3148 = vsub.f32 %v3082, %v2962
        %v3149 = vsub.f32 %v3067, %v2963
        %v3150 = vsub.f32 %v3082, %v2964
        %v3151 = vsub.f32 %v3067, %v2965
        %v3152 = vsub.f32 %v3082, %v2966
        %v3153 = vsub.f32 %v3067, %v2967
        %v3154 = vsub.f32 %v3082, %v2968
        %v3155 = vsub.f32 %v3067, %v2969
        %v3156 = vsub.f32 %v3082, %v2970
        %v3157 = vsub.f32 %v3067, %v2971
        %v3158 = vsub.f32 %v3082, %v2972
        %v3159 = vsub.f32 %v3067, %v2973
        %v3160 = vsub.f32 %v3082, %v2974
        %v3161 = vsub.f32 %v3067, %v2975
        %v3162 = vsub.f32 %v3082, %v2976
        %v3163 = vsub.f32 %v3067, %v2977
        %v3164 = vsub.f32 %v3082, %v2978
        %v3165 = vsub.f32 %v3067, %v2979
        %v3166 = vsub.f32 %v3082, %v2980
        %v3167 = vsub.f32 %v3067, %v2981
        %v3168 = vsub.f32 %v3082, %v2982
        %v3169 = vsub.f32 %v3067, %v2983
        %v3170 = vsub.f32 %v3082, %v2984
        %v3171 = vsub.f32 %v3067, %v2985
        %v3172 = vsub.f32 %v3082, %v2986
        %v3173 = vsub.f32 %v3067, %v2987
        %v3174 = vsub.f32 %v3082, %v2988
        %v3175 = vsub.f32 %v3097, %v2989
        %v3176 = vsub.f32 %v3112, %v2990
        %v3177 = vsub.f32 %v3097, %v2991
        %v3178 = vsub.f32 %v3112, %v2992
        %v3179 = vsub.f32 %v3097, %v2993
        %v3180 = vsub.f32 %v3112, %v2994
        %v3181 = vsub.f32 %v3097, %v2995
        %v3182 = vsub.f32 %v3112, %v2996
        %v3183 = vsub.f32 %v3097, %v2997
        %v3184 = vsub.f32 %v3112, %v2998
        %v3185 = vsub.f32 %v3097, %v2999
        %v3186 = vsub.f32 %v3112, %v3000
        %v3187 = vsub.f32 %v3097, %v3001
        %v3188 = vsub.f32 %v3112, %v3002
        %v3189 = vsub.f32 %v3097, %v3003
        %v3190 = vsub.f32 %v3112, %v3004
        %v3191 = vsub.f32 %v3097, %v3005
        %v3192 = vsub.f32 %v3112, %v3006
        %v3193 = vsub.f32 %v3097, %v3007
        %v3194 = vsub.f32 %v3112, %v3008
        %v3195 = vsub.f32 %v3097, %v3009
        %v3196 = vsub.f32 %v3112, %v3010
        %v3197 = vsub.f32 %v3097, %v3011
        %v3198 = vsub.f32 %v3112, %v3012
        %v3199 = vsub.f32 %v3097, %v3013
        %v3200 = vsub.f32 %v3112, %v3014
        %v3201 = vsub.f32 %v3097, %v3015
        %v3202 = vsub.f32 %v3112, %v3016
        %v3203 = vsub.f32 %v3097, %v3017
        %v3204 = vsub.f32 %v3112, %v3018
        %v3205 = vsub.f32 %v3097, %v3019
        %v3206 = vsub.f32 %v3112, %v3020
        %v3207 = vsub.f32 %v3127, %v3021
        %v3208 = vsub.f32 %v3142, %v3022
        %v3209 = vsub.f32 %v3127, %v3023
        %v3210 = vsub.f32 %v3142, %v3024
        %v3211 = vsub.f32 %v3127, %v3025
        %v3212 = vsub.f32 %v3142, %v3026
        %v3213 = vsub.f32 %v3127, %v3027
        %v3214 = vsub.f32 %v3142, %v3028
        %v3215 = vsub.f32 %v3127, %v3029
        %v3216 = vsub.f32 %v3142, %v3030
        %v3217 = vsub.f32 %v3127, %v3031
        %v3218 = vsub.f32 %v3142, %v3032
        %v3219 = vsub.f32 %v3127, %v3033
        %v3220 = vsub.f32 %v3142, %v3034
        %v3221 = vsub.f32 %v3127, %v3035
        %v3222 = vsub.f32 %v3142, %v3036
        %v3223 = vsub.f32 %v3127, %v3037
        %v3224 = vsub.f32 %v3142, %v3038
        %v3225 = vsub.f32 %v3127, %v3039
        %v3226 = vsub.f32 %v3142, %v3040
        %v3227 = vsub.f32 %v3127, %v3041
        %v3228 = vsub.f32 %v3142, %v3042
        %v3229 = vsub.f32 %v3127, %v3043
        %v3230 = vsub.f32 %v3142, %v3044
        %v3231 = vsub.f32 %v3127, %v3045
        %v3232 = vsub.f32 %v3142, %v3046
        %v3233 = vsub.f32 %v3127, %v3047
        %v3234 = vsub.f32 %v3142, %v3048
        %v3235 = vsub.f32 %v3127, %v3049
        %v3236 = vsub.f32 %v3142, %v3050
        %v3237 = vsub.f32 %v3127, %v3051
        %v3238 = vsub.f32 %v3142, %v3052
        %v3239 = vmax.f32 %v3143, %v3175
        %v3240 = vmax.f32 %v3144, %v3176
        %v3241 = vmax.f32 %v3145, %v3177
        %v3242 = vmax.f32 %v3146, %v3178
        %v3243 = vmax.f32 %v3147, %v3179
        %v3244 = vmax.f32 %v3148, %v3180
        %v3245 = vmax.f32 %v3149, %v3181
        %v3246 = vmax.f32 %v3150, %v3182
        %v3247 = vmax.f32 %v3151, %v3183
        %v3248 = vmax.f32 %v3152, %v3184
        %v3249 = vmax.f32 %v3153, %v3185
        %v3250 = vmax.f32 %v3154, %v3186
        %v3251 = vmax.f32 %v3155, %v3187
        %v3252 = vmax.f32 %v3156, %v3188
        %v3253 = vmax.f32 %v3157, %v3189
        %v3254 = vmax.f32 %v3158, %v3190
        %v3255 = vmax.f32 %v3159, %v3191
        %v3256 = vmax.f32 %v3160, %v3192
        %v3257 = vmax.f32 %v3161, %v3193
        %v3258 = vmax.f32 %v3162, %v3194
        %v3259 = vmax.f32 %v3163, %v3195
        %v3260 = vmax.f32 %v3164, %v3196
        %v3261 = vmax.f32 %v3165, %v3197
        %v3262 = vmax.f32 %v3166, %v3198
        %v3263 = vmax.f32 %v3167, %v3199
        %v3264 = vmax.f32 %v3168, %v3200
        %v3265 = vmax.f32 %v3169, %v3201
        %v3266 = vmax.f32 %v3170, %v3202
        %v3267 = vmax.f32 %v3171, %v3203
        %v3268 = vmax.f32 %v3172, %v3204
        %v3269 = vmax.f32 %v3173, %v3205
        %v3270 = vmax.f32 %v3174, %v3206
        %v3271 = vmax.f32 %v3207, 0.0
        %v3272 = vmax.f32 %v3208, 0.0
        %v3273 = vmax.f32 %v3209, 0.0
        %v3274 = vmax.f32 %v3210, 0.0
        %v3275 = vmax.f32 %v3211, 0.0
        %v3276 = vmax.f32 %v3212, 0.0
        %v3277 = vmax.f32 %v3213, 0.0
        %v3278 = vmax.f32 %v3214, 0.0
        %v3279 = vmax.f32 %v3215, 0.0
        %v3280 = vmax.f32 %v3216, 0.0
        %v3281 = vmax.f32 %v3217, 0.0
        %v3282 = vmax.f32 %v3218, 0.0
        %v3283 = vmax.f32 %v3219, 0.0
        %v3284 = vmax.f32 %v3220, 0.0
        %v3285 = vmax.f32 %v3221, 0.0
        %v3286 = vmax.f32 %v3222, 0.0
        %v3287 = vmax.f32 %v3223, 0.0
        %v3288 = vmax.f32 %v3224, 0.0
        %v3289 = vmax.f32 %v3225, 0.0
        %v3290 = vmax.f32 %v3226, 0.0
        %v3291 = vmax.f32 %v3227, 0.0
        %v3292 = vmax.f32 %v3228, 0.0
        %v3293 = vmax.f32 %v3229, 0.0
        %v3294 = vmax.f32 %v3230, 0.0
        %v3295 = vmax.f32 %v3231, 0.0
        %v3296 = vmax.f32 %v3232, 0.0
        %v3297 = vmax.f32 %v3233, 0.0
        %v3298 = vmax.f32 %v3234, 0.0
        %v3299 = vmax.f32 %v3235, 0.0
        %v3300 = vmax.f32 %v3236, 0.0
        %v3301 = vmax.f32 %v3237, 0.0
        %v3302 = vmax.f32 %v3238, 0.0
        %v3303 = vmax.f32 %v3239, %v3271
        %v3304 = vmax.f32 %v3240, %v3272
        %v3305 = vmax.f32 %v3241, %v3273
        %v3306 = vmax.f32 %v3242, %v3274
        %v3307 = vmax.f32 %v3243, %v3275
        %v3308 = vmax.f32 %v3244, %v3276
        %v3309 = vmax.f32 %v3245, %v3277
        %v3310 = vmax.f32 %v3246, %v3278
        %v3311 = vmax.f32 %v3247, %v3279
        %v3312 = vmax.f32 %v3248, %v3280
        %v3313 = vmax.f32 %v3249, %v3281
        %v3314 = vmax.f32 %v3250, %v3282
        %v3315 = vmax.f32 %v3251, %v3283
        %v3316 = vmax.f32 %v3252, %v3284
        %v3317 = vmax.f32 %v3253, %v3285
        %v3318 = vmax.f32 %v3254, %v3286
        %v3319 = vmax.f32 %v3255, %v3287
        %v3320 = vmax.f32 %v3256, %v3288
        %v3321 = vmax.f32 %v3257, %v3289
        %v3322 = vmax.f32 %v3258, %v3290
        %v3323 = vmax.f32 %v3259, %v3291
        %v3324 = vmax.f32 %v3260, %v3292
        %v3325 = vmax.f32 %v3261, %v3293
        %v3326 = vmax.f32 %v3262, %v3294
        %v3327 = vmax.f32 %v3263, %v3295
        %v3328 = vmax.f32 %v3264, %v3296
        %v3329 = vmax.f32 %v3265, %v3297
        %v3330 = vmax.f32 %v3266, %v3298
        %v3331 = vmax.f32 %v3267, %v3299
        %v3332 = vmax.f32 %v3268, %v3300
        %v3333 = vmax.f32 %v3269, %v3301
        %v3334 = vmax.f32 %v3270, %v3302
        %v3335 = vsub.f32 0.0, %v3303
        %v3336 = vsub.f32 0.0, %v3304
        %v3337 = vsub.f32 0.0, %v3305
        %v3338 = vsub.f32 0.0, %v3306
        %v3339 = vsub.f32 0.0, %v3307
        %v3340 = vsub.f32 0.0, %v3308
        %v3341 = vsub.f32 0.0, %v3309
        %v3342 = vsub.f32 0.0, %v3310
        %v3343 = vsub.f32 0.0, %v3311
        %v3344 = vsub.f32 0.0, %v3312
        %v3345 = vsub.f32 0.0, %v3313
        %v3346 = vsub.f32 0.0, %v3314
        %v3347 = vsub.f32 0.0, %v3315
        %v3348 = vsub.f32 0.0, %v3316
        %v3349 = vsub.f32 0.0, %v3317
        %v3350 = vsub.f32 0.0, %v3318
        %v3351 = vsub.f32 0.0, %v3319
        %v3352 = vsub.f32 0.0, %v3320
        %v3353 = vsub.f32 0.0, %v3321
        %v3354 = vsub.f32 0.0, %v3322
        %v3355 = vsub.f32 0.0, %v3323
        %v3356 = vsub.f32 0.0, %v3324
        %v3357 = vsub.f32 0.0, %v3325
        %v3358 = vsub.f32 0.0, %v3326
        %v3359 = vsub.f32 0.0, %v3327
        %v3360 = vsub.f32 0.0, %v3328
        %v3361 = vsub.f32 0.0, %v3329
        %v3362 = vsub.f32 0.0, %v3330
        %v3363 = vsub.f32 0.0, %v3331
        %v3364 = vsub.f32 0.0, %v3332
        %v3365 = vsub.f32 0.0, %v3333
        %v3366 = vsub.f32 0.0, %v3334
        %v3367 = vmul.f32 %v3335, 1.442695
        %v3368 = vpow.pop %v3367
        %v3369 = vmul.f32 %v3336, 1.442695
        %v3370 = vpow.pop %v3369
        %v3371 = vmul.f32 %v3337, 1.442695
        %v3372 = vpow.pop %v3371
        %v3373 = vmul.f32 %v3338, 1.442695
        %v3374 = vpow.pop %v3373
        %v3375 = vmul.f32 %v3339, 1.442695
        %v3376 = vpow.pop %v3375
        %v3377 = vmul.f32 %v3340, 1.442695
        %v3378 = vpow.pop %v3377
        %v3379 = vmul.f32 %v3341, 1.442695
        %v3380 = vpow.pop %v3379
        %v3381 = vmul.f32 %v3342, 1.442695
        %v3382 = vpow.pop %v3381
        %v3383 = vmul.f32 %v3343, 1.442695
        %v3384 = vpow.pop %v3383
        %v3385 = vmul.f32 %v3344, 1.442695
        %v3386 = vpow.pop %v3385
        %v3387 = vmul.f32 %v3345, 1.442695
        %v3388 = vpow.pop %v3387
        %v3389 = vmul.f32 %v3346, 1.442695
        %v3390 = vpow.pop %v3389
        %v3391 = vmul.f32 %v3347, 1.442695
        %v3392 = vpow.pop %v3391
        %v3393 = vmul.f32 %v3348, 1.442695
        %v3394 = vpow.pop %v3393
        %v3395 = vmul.f32 %v3349, 1.442695
        %v3396 = vpow.pop %v3395
        %v3397 = vmul.f32 %v3350, 1.442695
        %v3398 = vpow.pop %v3397
        %v3399 = vmul.f32 %v3351, 1.442695
        %v3400 = vpow.pop %v3399
        %v3401 = vmul.f32 %v3352, 1.442695
        %v3402 = vpow.pop %v3401
        %v3403 = vmul.f32 %v3353, 1.442695
        %v3404 = vpow.pop %v3403
        %v3405 = vmul.f32 %v3354, 1.442695
        %v3406 = vpow.pop %v3405
        %v3407 = vmul.f32 %v3355, 1.442695
        %v3408 = vpow.pop %v3407
        %v3409 = vmul.f32 %v3356, 1.442695
        %v3410 = vpow.pop %v3409
        %v3411 = vmul.f32 %v3357, 1.442695
        %v3412 = vpow.pop %v3411
        %v3413 = vmul.f32 %v3358, 1.442695
        %v3414 = vpow.pop %v3413
        %v3415 = vmul.f32 %v3359, 1.442695
        %v3416 = vpow.pop %v3415
        %v3417 = vmul.f32 %v3360, 1.442695
        %v3418 = vpow.pop %v3417
        %v3419 = vmul.f32 %v3361, 1.442695
        %v3420 = vpow.pop %v3419
        %v3421 = vmul.f32 %v3362, 1.442695
        %v3422 = vpow.pop %v3421
        %v3423 = vmul.f32 %v3363, 1.442695
        %v3424 = vpow.pop %v3423
        %v3425 = vmul.f32 %v3364, 1.442695
        %v3426 = vpow.pop %v3425
        %v3427 = vmul.f32 %v3365, 1.442695
        %v3428 = vpow.pop %v3427
        %v3429 = vmul.f32 %v3366, 1.442695
        %v3430 = vpow.pop %v3429
        %v3431 = vmul.f32 %v1196, %v3368
        %v3432 = vmul.f32 %v1201, %v3370
        %v3433 = vmul.f32 %v1206, %v3372
        %v3434 = vmul.f32 %v1211, %v3374
        %v3435 = vmul.f32 %v1216, %v3376
        %v3436 = vmul.f32 %v1221, %v3378
        %v3437 = vmul.f32 %v1226, %v3380
        %v3438 = vmul.f32 %v1231, %v3382
        %v3439 = vmul.f32 %v1236, %v3384
        %v3440 = vmul.f32 %v1241, %v3386
        %v3441 = vmul.f32 %v1246, %v3388
        %v3442 = vmul.f32 %v1251, %v3390
        %v3443 = vmul.f32 %v1256, %v3392
        %v3444 = vmul.f32 %v1261, %v3394
        %v3445 = vmul.f32 %v1266, %v3396
        %v3446 = vmul.f32 %v1271, %v3398
        %v3447 = vmul.f32 %v1276, %v3400
        %v3448 = vmul.f32 %v1281, %v3402
        %v3449 = vmul.f32 %v1286, %v3404
        %v3450 = vmul.f32 %v1291, %v3406
        %v3451 = vmul.f32 %v1296, %v3408
        %v3452 = vmul.f32 %v1301, %v3410
        %v3453 = vmul.f32 %v1306, %v3412
        %v3454 = vmul.f32 %v1311, %v3414
        %v3455 = vmul.f32 %v1316, %v3416
        %v3456 = vmul.f32 %v1321, %v3418
        %v3457 = vmul.f32 %v1326, %v3420
        %v3458 = vmul.f32 %v1331, %v3422
        %v3459 = vmul.f32 %v1336, %v3424
        %v3460 = vmul.f32 %v1341, %v3426
        %v3461 = vmul.f32 %v1346, %v3428
        %v3462 = vmul.f32 %v1351, %v3430
        %v3463 = vstv %s1111
        %v3464 = vmul.f32 %v3463, %v1772
        %v3465 = vmul.f32 %v3463, %v1773
        %v3466 = vmul.f32 %v3463, %v1774
        %v3467 = vmul.f32 %v3463, %v1775
        %v3468 = vmul.f32 %v3463, %v1776
        %v3469 = vmul.f32 %v3463, %v1777
        %v3470 = vmul.f32 %v3463, %v1778
        %v3471 = vmul.f32 %v3463, %v1779
        %v3472 = vmul.f32 %v3463, %v1780
        %v3473 = vmul.f32 %v3463, %v1781
        %v3474 = vmul.f32 %v3463, %v1782
        %v3475 = vmul.f32 %v3463, %v1783
        %v3476 = vmul.f32 %v3463, %v1784
        %v3477 = vmul.f32 %v3463, %v1785
        %v3478 = vmul.f32 %v3463, %v1786
        %v3479 = vmul.f32 %v3463, %v1787
        %v3480 = vmul.f32 %v3463, %v1788
        %v3481 = vmul.f32 %v3463, %v1789
        %v3482 = vmul.f32 %v3463, %v1790
        %v3483 = vmul.f32 %v3463, %v1791
        %v3484 = vmul.f32 %v3463, %v1792
        %v3485 = vmul.f32 %v3463, %v1793
        %v3486 = vmul.f32 %v3463, %v1794
        %v3487 = vmul.f32 %v3463, %v1795
        %v3488 = vmul.f32 %v3463, %v1796
        %v3489 = vmul.f32 %v3463, %v1797
        %v3490 = vmul.f32 %v3463, %v1798
        %v3491 = vmul.f32 %v3463, %v1799
        %v3492 = vmul.f32 %v3463, %v1800
        %v3493 = vmul.f32 %v3463, %v1801
        %v3494 = vmul.f32 %v3463, %v1802
        %v3495 = vmul.f32 %v3463, %v1803
        %v3496 = vadd.f32 %v3431, %v3464
        %v3497 = vadd.f32 %v3432, %v3465
        %v3498 = vadd.f32 %v3433, %v3466
        %v3499 = vadd.f32 %v3434, %v3467
        %v3500 = vadd.f32 %v3435, %v3468
        %v3501 = vadd.f32 %v3436, %v3469
        %v3502 = vadd.f32 %v3437, %v3470
        %v3503 = vadd.f32 %v3438, %v3471
        %v3504 = vadd.f32 %v3439, %v3472
        %v3505 = vadd.f32 %v3440, %v3473
        %v3506 = vadd.f32 %v3441, %v3474
        %v3507 = vadd.f32 %v3442, %v3475
        %v3508 = vadd.f32 %v3443, %v3476
        %v3509 = vadd.f32 %v3444, %v3477
        %v3510 = vadd.f32 %v3445, %v3478
        %v3511 = vadd.f32 %v3446, %v3479
        %v3512 = vadd.f32 %v3447, %v3480
        %v3513 = vadd.f32 %v3448, %v3481
        %v3514 = vadd.f32 %v3449, %v3482
        %v3515 = vadd.f32 %v3450, %v3483
        %v3516 = vadd.f32 %v3451, %v3484
        %v3517 = vadd.f32 %v3452, %v3485
        %v3518 = vadd.f32 %v3453, %v3486
        %v3519 = vadd.f32 %v3454, %v3487
        %v3520 = vadd.f32 %v3455, %v3488
        %v3521 = vadd.f32 %v3456, %v3489
        %v3522 = vadd.f32 %v3457, %v3490
        %v3523 = vadd.f32 %v3458, %v3491
        %v3524 = vadd.f32 %v3459, %v3492
        %v3525 = vadd.f32 %v3460, %v3493
        %v3526 = vadd.f32 %v3461, %v3494
        %v3527 = vadd.f32 %v3462, %v3495
        %3528 = vst [vmem:[%s1104] sm:$0xff] %v3496
        %3529 = vst [vmem:[%s1104 + $0x8] sm:$0xff] %v3497
        %3530 = vst [vmem:[%s1104 + $0x10] sm:$0xff] %v3498
        %3531 = vst [vmem:[%s1104 + $0x18] sm:$0xff] %v3499
        %3532 = vst [vmem:[%s1104 + $0x20] sm:$0xff] %v3500
        %3533 = vst [vmem:[%s1104 + $0x28] sm:$0xff] %v3501
        %3534 = vst [vmem:[%s1104 + $0x30] sm:$0xff] %v3502
        %3535 = vst [vmem:[%s1104 + $0x38] sm:$0xff] %v3503
        %3536 = vst [vmem:[%s1104 + $0x40] sm:$0xff] %v3504
        %3537 = vst [vmem:[%s1104 + $0x48] sm:$0xff] %v3505
        %3538 = vst [vmem:[%s1104 + $0x50] sm:$0xff] %v3506
        %3539 = vst [vmem:[%s1104 + $0x58] sm:$0xff] %v3507
        %3540 = vst [vmem:[%s1104 + $0x60] sm:$0xff] %v3508
        %3541 = vst [vmem:[%s1104 + $0x68] sm:$0xff] %v3509
        %3542 = vst [vmem:[%s1104 + $0x70] sm:$0xff] %v3510
        %3543 = vst [vmem:[%s1104 + $0x78] sm:$0xff] %v3511
        %3544 = vst [vmem:[%s1104 + $0x80] sm:$0xff] %v3512
        %3545 = vst [vmem:[%s1104 + $0x88] sm:$0xff] %v3513
        %3546 = vst [vmem:[%s1104 + $0x90] sm:$0xff] %v3514
        %3547 = vst [vmem:[%s1104 + $0x98] sm:$0xff] %v3515
        %3548 = vst [vmem:[%s1104 + $0xa0] sm:$0xff] %v3516
        %3549 = vst [vmem:[%s1104 + $0xa8] sm:$0xff] %v3517
        %3550 = vst [vmem:[%s1104 + $0xb0] sm:$0xff] %v3518
        %3551 = vst [vmem:[%s1104 + $0xb8] sm:$0xff] %v3519
        %3552 = vst [vmem:[%s1104 + $0xc0] sm:$0xff] %v3520
        %3553 = vst [vmem:[%s1104 + $0xc8] sm:$0xff] %v3521
        %3554 = vst [vmem:[%s1104 + $0xd0] sm:$0xff] %v3522
        %3555 = vst [vmem:[%s1104 + $0xd8] sm:$0xff] %v3523
        %3556 = vst [vmem:[%s1104 + $0xe0] sm:$0xff] %v3524
        %3557 = vst [vmem:[%s1104 + $0xe8] sm:$0xff] %v3525
        %3558 = vst [vmem:[%s1104 + $0xf0] sm:$0xff] %v3526
        %3559 = vst [vmem:[%s1104 + $0xf8] sm:$0xff] %v3527
        %v3560 = vsub.f32 %v3143, %v3303
        %v3561 = vsub.f32 %v3144, %v3304
        %v3562 = vsub.f32 %v3145, %v3305
        %v3563 = vsub.f32 %v3146, %v3306
        %v3564 = vsub.f32 %v3147, %v3307
        %v3565 = vsub.f32 %v3148, %v3308
        %v3566 = vsub.f32 %v3149, %v3309
        %v3567 = vsub.f32 %v3150, %v3310
        %v3568 = vsub.f32 %v3151, %v3311
        %v3569 = vsub.f32 %v3152, %v3312
        %v3570 = vsub.f32 %v3153, %v3313
        %v3571 = vsub.f32 %v3154, %v3314
        %v3572 = vsub.f32 %v3155, %v3315
        %v3573 = vsub.f32 %v3156, %v3316
        %v3574 = vsub.f32 %v3157, %v3317
        %v3575 = vsub.f32 %v3158, %v3318
        %v3576 = vsub.f32 %v3159, %v3319
        %v3577 = vsub.f32 %v3160, %v3320
        %v3578 = vsub.f32 %v3161, %v3321
        %v3579 = vsub.f32 %v3162, %v3322
        %v3580 = vsub.f32 %v3163, %v3323
        %v3581 = vsub.f32 %v3164, %v3324
        %v3582 = vsub.f32 %v3165, %v3325
        %v3583 = vsub.f32 %v3166, %v3326
        %v3584 = vsub.f32 %v3167, %v3327
        %v3585 = vsub.f32 %v3168, %v3328
        %v3586 = vsub.f32 %v3169, %v3329
        %v3587 = vsub.f32 %v3170, %v3330
        %v3588 = vsub.f32 %v3171, %v3331
        %v3589 = vsub.f32 %v3172, %v3332
        %v3590 = vsub.f32 %v3173, %v3333
        %v3591 = vsub.f32 %v3174, %v3334
        %v3592 = vmul.f32 %v3560, 1.442695
        %v3593 = vpow.pop %v3592
        %v3594 = vmul.f32 %v3561, 1.442695
        %v3595 = vpow.pop %v3594
        %v3596 = vmul.f32 %v3562, 1.442695
        %v3597 = vpow.pop %v3596
        %v3598 = vmul.f32 %v3563, 1.442695
        %v3599 = vpow.pop %v3598
        %v3600 = vmul.f32 %v3564, 1.442695
        %v3601 = vpow.pop %v3600
        %v3602 = vmul.f32 %v3565, 1.442695
        %v3603 = vpow.pop %v3602
        %v3604 = vmul.f32 %v3566, 1.442695
        %v3605 = vpow.pop %v3604
        %v3606 = vmul.f32 %v3567, 1.442695
        %v3607 = vpow.pop %v3606
        %v3608 = vmul.f32 %v3568, 1.442695
        %v3609 = vpow.pop %v3608
        %v3610 = vmul.f32 %v3569, 1.442695
        %v3611 = vpow.pop %v3610
        %v3612 = vmul.f32 %v3570, 1.442695
        %v3613 = vpow.pop %v3612
        %v3614 = vmul.f32 %v3571, 1.442695
        %v3615 = vpow.pop %v3614
        %v3616 = vmul.f32 %v3572, 1.442695
        %v3617 = vpow.pop %v3616
        %v3618 = vmul.f32 %v3573, 1.442695
        %v3619 = vpow.pop %v3618
        %v3620 = vmul.f32 %v3574, 1.442695
        %v3621 = vpow.pop %v3620
        %v3622 = vmul.f32 %v3575, 1.442695
        %v3623 = vpow.pop %v3622
        %v3624 = vmul.f32 %v3576, 1.442695
        %v3625 = vpow.pop %v3624
        %v3626 = vmul.f32 %v3577, 1.442695
        %v3627 = vpow.pop %v3626
        %v3628 = vmul.f32 %v3578, 1.442695
        %v3629 = vpow.pop %v3628
        %v3630 = vmul.f32 %v3579, 1.442695
        %v3631 = vpow.pop %v3630
        %v3632 = vmul.f32 %v3580, 1.442695
        %v3633 = vpow.pop %v3632
        %v3634 = vmul.f32 %v3581, 1.442695
        %v3635 = vpow.pop %v3634
        %v3636 = vmul.f32 %v3582, 1.442695
        %v3637 = vpow.pop %v3636
        %v3638 = vmul.f32 %v3583, 1.442695
        %v3639 = vpow.pop %v3638
        %v3640 = vmul.f32 %v3584, 1.442695
        %v3641 = vpow.pop %v3640
        %v3642 = vmul.f32 %v3585, 1.442695
        %v3643 = vpow.pop %v3642
        %v3644 = vmul.f32 %v3586, 1.442695
        %v3645 = vpow.pop %v3644
        %v3646 = vmul.f32 %v3587, 1.442695
        %v3647 = vpow.pop %v3646
        %v3648 = vmul.f32 %v3588, 1.442695
        %v3649 = vpow.pop %v3648
        %v3650 = vmul.f32 %v3589, 1.442695
        %v3651 = vpow.pop %v3650
        %v3652 = vmul.f32 %v3590, 1.442695
        %v3653 = vpow.pop %v3652
        %v3654 = vmul.f32 %v3591, 1.442695
        %v3655 = vpow.pop %v3654
        %v3656 = vmul.f32 %v1196, %v3593
        %v3657 = vmul.f32 %v1201, %v3595
        %v3658 = vmul.f32 %v1206, %v3597
        %v3659 = vmul.f32 %v1211, %v3599
        %v3660 = vmul.f32 %v1216, %v3601
        %v3661 = vmul.f32 %v1221, %v3603
        %v3662 = vmul.f32 %v1226, %v3605
        %v3663 = vmul.f32 %v1231, %v3607
        %v3664 = vmul.f32 %v1236, %v3609
        %v3665 = vmul.f32 %v1241, %v3611
        %v3666 = vmul.f32 %v1246, %v3613
        %v3667 = vmul.f32 %v1251, %v3615
        %v3668 = vmul.f32 %v1256, %v3617
        %v3669 = vmul.f32 %v1261, %v3619
        %v3670 = vmul.f32 %v1266, %v3621
        %v3671 = vmul.f32 %v1271, %v3623
        %v3672 = vmul.f32 %v1276, %v3625
        %v3673 = vmul.f32 %v1281, %v3627
        %v3674 = vmul.f32 %v1286, %v3629
        %v3675 = vmul.f32 %v1291, %v3631
        %v3676 = vmul.f32 %v1296, %v3633
        %v3677 = vmul.f32 %v1301, %v3635
        %v3678 = vmul.f32 %v1306, %v3637
        %v3679 = vmul.f32 %v1311, %v3639
        %v3680 = vmul.f32 %v1316, %v3641
        %v3681 = vmul.f32 %v1321, %v3643
        %v3682 = vmul.f32 %v1326, %v3645
        %v3683 = vmul.f32 %v1331, %v3647
        %v3684 = vmul.f32 %v1336, %v3649
        %v3685 = vmul.f32 %v1341, %v3651
        %v3686 = vmul.f32 %v1346, %v3653
        %v3687 = vmul.f32 %v1351, %v3655
        %v3688 = vmul.f32 %v3463, %v1804
        %v3689 = vmul.f32 %v3463, %v1805
        %v3690 = vmul.f32 %v3463, %v1806
        %v3691 = vmul.f32 %v3463, %v1807
        %v3692 = vmul.f32 %v3463, %v1808
        %v3693 = vmul.f32 %v3463, %v1809
        %v3694 = vmul.f32 %v3463, %v1810
        %v3695 = vmul.f32 %v3463, %v1811
        %v3696 = vmul.f32 %v3463, %v1812
        %v3697 = vmul.f32 %v3463, %v1813
        %v3698 = vmul.f32 %v3463, %v1814
        %v3699 = vmul.f32 %v3463, %v1815
        %v3700 = vmul.f32 %v3463, %v1816
        %v3701 = vmul.f32 %v3463, %v1817
        %v3702 = vmul.f32 %v3463, %v1818
        %v3703 = vmul.f32 %v3463, %v1819
        %v3704 = vmul.f32 %v3463, %v1820
        %v3705 = vmul.f32 %v3463, %v1821
        %v3706 = vmul.f32 %v3463, %v1822
        %v3707 = vmul.f32 %v3463, %v1823
        %v3708 = vmul.f32 %v3463, %v1824
        %v3709 = vmul.f32 %v3463, %v1825
        %v3710 = vmul.f32 %v3463, %v1826
        %v3711 = vmul.f32 %v3463, %v1827
        %v3712 = vmul.f32 %v3463, %v1828
        %v3713 = vmul.f32 %v3463, %v1829
        %v3714 = vmul.f32 %v3463, %v1830
        %v3715 = vmul.f32 %v3463, %v1831
        %v3716 = vmul.f32 %v3463, %v1832
        %v3717 = vmul.f32 %v3463, %v1833
        %v3718 = vmul.f32 %v3463, %v1834
        %v3719 = vmul.f32 %v3463, %v1835
        %v3720 = vadd.f32 %v3656, %v3688
        %v3721 = vadd.f32 %v3657, %v3689
        %v3722 = vadd.f32 %v3658, %v3690
        %v3723 = vadd.f32 %v3659, %v3691
        %v3724 = vadd.f32 %v3660, %v3692
        %v3725 = vadd.f32 %v3661, %v3693
        %v3726 = vadd.f32 %v3662, %v3694
        %v3727 = vadd.f32 %v3663, %v3695
        %v3728 = vadd.f32 %v3664, %v3696
        %v3729 = vadd.f32 %v3665, %v3697
        %v3730 = vadd.f32 %v3666, %v3698
        %v3731 = vadd.f32 %v3667, %v3699
        %v3732 = vadd.f32 %v3668, %v3700
        %v3733 = vadd.f32 %v3669, %v3701
        %v3734 = vadd.f32 %v3670, %v3702
        %v3735 = vadd.f32 %v3671, %v3703
        %v3736 = vadd.f32 %v3672, %v3704
        %v3737 = vadd.f32 %v3673, %v3705
        %v3738 = vadd.f32 %v3674, %v3706
        %v3739 = vadd.f32 %v3675, %v3707
        %v3740 = vadd.f32 %v3676, %v3708
        %v3741 = vadd.f32 %v3677, %v3709
        %v3742 = vadd.f32 %v3678, %v3710
        %v3743 = vadd.f32 %v3679, %v3711
        %v3744 = vadd.f32 %v3680, %v3712
        %v3745 = vadd.f32 %v3681, %v3713
        %v3746 = vadd.f32 %v3682, %v3714
        %v3747 = vadd.f32 %v3683, %v3715
        %v3748 = vadd.f32 %v3684, %v3716
        %v3749 = vadd.f32 %v3685, %v3717
        %v3750 = vadd.f32 %v3686, %v3718
        %v3751 = vadd.f32 %v3687, %v3719
        %s3752 = scalar_lea.vmem %s1104, 256 [#allocation7]
        %3753 = vst [vmem:[%s3752] sm:$0xff] %v3720
        %3754 = vst [vmem:[%s3752 + $0x8] sm:$0xff] %v3721
        %3755 = vst [vmem:[%s3752 + $0x10] sm:$0xff] %v3722
        %3756 = vst [vmem:[%s3752 + $0x18] sm:$0xff] %v3723
        %3757 = vst [vmem:[%s3752 + $0x20] sm:$0xff] %v3724
        %3758 = vst [vmem:[%s3752 + $0x28] sm:$0xff] %v3725
        %3759 = vst [vmem:[%s3752 + $0x30] sm:$0xff] %v3726
        %3760 = vst [vmem:[%s3752 + $0x38] sm:$0xff] %v3727
        %3761 = vst [vmem:[%s3752 + $0x40] sm:$0xff] %v3728
        %3762 = vst [vmem:[%s3752 + $0x48] sm:$0xff] %v3729
        %3763 = vst [vmem:[%s3752 + $0x50] sm:$0xff] %v3730
        %3764 = vst [vmem:[%s3752 + $0x58] sm:$0xff] %v3731
        %3765 = vst [vmem:[%s3752 + $0x60] sm:$0xff] %v3732
        %3766 = vst [vmem:[%s3752 + $0x68] sm:$0xff] %v3733
        %3767 = vst [vmem:[%s3752 + $0x70] sm:$0xff] %v3734
        %3768 = vst [vmem:[%s3752 + $0x78] sm:$0xff] %v3735
        %3769 = vst [vmem:[%s3752 + $0x80] sm:$0xff] %v3736
        %3770 = vst [vmem:[%s3752 + $0x88] sm:$0xff] %v3737
        %3771 = vst [vmem:[%s3752 + $0x90] sm:$0xff] %v3738
        %3772 = vst [vmem:[%s3752 + $0x98] sm:$0xff] %v3739
        %3773 = vst [vmem:[%s3752 + $0xa0] sm:$0xff] %v3740
        %3774 = vst [vmem:[%s3752 + $0xa8] sm:$0xff] %v3741
        %3775 = vst [vmem:[%s3752 + $0xb0] sm:$0xff] %v3742
        %3776 = vst [vmem:[%s3752 + $0xb8] sm:$0xff] %v3743
        %3777 = vst [vmem:[%s3752 + $0xc0] sm:$0xff] %v3744
        %3778 = vst [vmem:[%s3752 + $0xc8] sm:$0xff] %v3745
        %3779 = vst [vmem:[%s3752 + $0xd0] sm:$0xff] %v3746
        %3780 = vst [vmem:[%s3752 + $0xd8] sm:$0xff] %v3747
        %3781 = vst [vmem:[%s3752 + $0xe0] sm:$0xff] %v3748
        %3782 = vst [vmem:[%s3752 + $0xe8] sm:$0xff] %v3749
        %3783 = vst [vmem:[%s3752 + $0xf0] sm:$0xff] %v3750
        %3784 = vst [vmem:[%s3752 + $0xf8] sm:$0xff] %v3751
        %v3785 = vsub.f32 %v3175, %v3303
        %v3786 = vsub.f32 %v3176, %v3304
        %v3787 = vsub.f32 %v3177, %v3305
        %v3788 = vsub.f32 %v3178, %v3306
        %v3789 = vsub.f32 %v3179, %v3307
        %v3790 = vsub.f32 %v3180, %v3308
        %v3791 = vsub.f32 %v3181, %v3309
        %v3792 = vsub.f32 %v3182, %v3310
        %v3793 = vsub.f32 %v3183, %v3311
        %v3794 = vsub.f32 %v3184, %v3312
        %v3795 = vsub.f32 %v3185, %v3313
        %v3796 = vsub.f32 %v3186, %v3314
        %v3797 = vsub.f32 %v3187, %v3315
        %v3798 = vsub.f32 %v3188, %v3316
        %v3799 = vsub.f32 %v3189, %v3317
        %v3800 = vsub.f32 %v3190, %v3318
        %v3801 = vsub.f32 %v3191, %v3319
        %v3802 = vsub.f32 %v3192, %v3320
        %v3803 = vsub.f32 %v3193, %v3321
        %v3804 = vsub.f32 %v3194, %v3322
        %v3805 = vsub.f32 %v3195, %v3323
        %v3806 = vsub.f32 %v3196, %v3324
        %v3807 = vsub.f32 %v3197, %v3325
        %v3808 = vsub.f32 %v3198, %v3326
        %v3809 = vsub.f32 %v3199, %v3327
        %v3810 = vsub.f32 %v3200, %v3328
        %v3811 = vsub.f32 %v3201, %v3329
        %v3812 = vsub.f32 %v3202, %v3330
        %v3813 = vsub.f32 %v3203, %v3331
        %v3814 = vsub.f32 %v3204, %v3332
        %v3815 = vsub.f32 %v3205, %v3333
        %v3816 = vsub.f32 %v3206, %v3334
        %v3817 = vmul.f32 %v3785, 1.442695
        %v3818 = vpow.pop %v3817
        %v3819 = vmul.f32 %v3786, 1.442695
        %v3820 = vpow.pop %v3819
        %v3821 = vmul.f32 %v3787, 1.442695
        %v3822 = vpow.pop %v3821
        %v3823 = vmul.f32 %v3788, 1.442695
        %v3824 = vpow.pop %v3823
        %v3825 = vmul.f32 %v3789, 1.442695
        %v3826 = vpow.pop %v3825
        %v3827 = vmul.f32 %v3790, 1.442695
        %v3828 = vpow.pop %v3827
        %v3829 = vmul.f32 %v3791, 1.442695
        %v3830 = vpow.pop %v3829
        %v3831 = vmul.f32 %v3792, 1.442695
        %v3832 = vpow.pop %v3831
        %v3833 = vmul.f32 %v3793, 1.442695
        %v3834 = vpow.pop %v3833
        %v3835 = vmul.f32 %v3794, 1.442695
        %v3836 = vpow.pop %v3835
        %v3837 = vmul.f32 %v3795, 1.442695
        %v3838 = vpow.pop %v3837
        %v3839 = vmul.f32 %v3796, 1.442695
        %v3840 = vpow.pop %v3839
        %v3841 = vmul.f32 %v3797, 1.442695
        %v3842 = vpow.pop %v3841
        %v3843 = vmul.f32 %v3798, 1.442695
        %v3844 = vpow.pop %v3843
        %v3845 = vmul.f32 %v3799, 1.442695
        %v3846 = vpow.pop %v3845
        %v3847 = vmul.f32 %v3800, 1.442695
        %v3848 = vpow.pop %v3847
        %v3849 = vmul.f32 %v3801, 1.442695
        %v3850 = vpow.pop %v3849
        %v3851 = vmul.f32 %v3802, 1.442695
        %v3852 = vpow.pop %v3851
        %v3853 = vmul.f32 %v3803, 1.442695
        %v3854 = vpow.pop %v3853
        %v3855 = vmul.f32 %v3804, 1.442695
        %v3856 = vpow.pop %v3855
        %v3857 = vmul.f32 %v3805, 1.442695
        %v3858 = vpow.pop %v3857
        %v3859 = vmul.f32 %v3806, 1.442695
        %v3860 = vpow.pop %v3859
        %v3861 = vmul.f32 %v3807, 1.442695
        %v3862 = vpow.pop %v3861
        %v3863 = vmul.f32 %v3808, 1.442695
        %v3864 = vpow.pop %v3863
        %v3865 = vmul.f32 %v3809, 1.442695
        %v3866 = vpow.pop %v3865
        %v3867 = vmul.f32 %v3810, 1.442695
        %v3868 = vpow.pop %v3867
        %v3869 = vmul.f32 %v3811, 1.442695
        %v3870 = vpow.pop %v3869
        %v3871 = vmul.f32 %v3812, 1.442695
        %v3872 = vpow.pop %v3871
        %v3873 = vmul.f32 %v3813, 1.442695
        %v3874 = vpow.pop %v3873
        %v3875 = vmul.f32 %v3814, 1.442695
        %v3876 = vpow.pop %v3875
        %v3877 = vmul.f32 %v3815, 1.442695
        %v3878 = vpow.pop %v3877
        %v3879 = vmul.f32 %v3816, 1.442695
        %v3880 = vpow.pop %v3879
        %v3881 = vmul.f32 %v1196, %v3818
        %v3882 = vmul.f32 %v1201, %v3820
        %v3883 = vmul.f32 %v1206, %v3822
        %v3884 = vmul.f32 %v1211, %v3824
        %v3885 = vmul.f32 %v1216, %v3826
        %v3886 = vmul.f32 %v1221, %v3828
        %v3887 = vmul.f32 %v1226, %v3830
        %v3888 = vmul.f32 %v1231, %v3832
        %v3889 = vmul.f32 %v1236, %v3834
        %v3890 = vmul.f32 %v1241, %v3836
        %v3891 = vmul.f32 %v1246, %v3838
        %v3892 = vmul.f32 %v1251, %v3840
        %v3893 = vmul.f32 %v1256, %v3842
        %v3894 = vmul.f32 %v1261, %v3844
        %v3895 = vmul.f32 %v1266, %v3846
        %v3896 = vmul.f32 %v1271, %v3848
        %v3897 = vmul.f32 %v1276, %v3850
        %v3898 = vmul.f32 %v1281, %v3852
        %v3899 = vmul.f32 %v1286, %v3854
        %v3900 = vmul.f32 %v1291, %v3856
        %v3901 = vmul.f32 %v1296, %v3858
        %v3902 = vmul.f32 %v1301, %v3860
        %v3903 = vmul.f32 %v1306, %v3862
        %v3904 = vmul.f32 %v1311, %v3864
        %v3905 = vmul.f32 %v1316, %v3866
        %v3906 = vmul.f32 %v1321, %v3868
        %v3907 = vmul.f32 %v1326, %v3870
        %v3908 = vmul.f32 %v1331, %v3872
        %v3909 = vmul.f32 %v1336, %v3874
        %v3910 = vmul.f32 %v1341, %v3876
        %v3911 = vmul.f32 %v1346, %v3878
        %v3912 = vmul.f32 %v1351, %v3880
        %v3913 = vmul.f32 %v3463, %v1836
        %v3914 = vmul.f32 %v3463, %v1837
        %v3915 = vmul.f32 %v3463, %v1838
        %v3916 = vmul.f32 %v3463, %v1839
        %v3917 = vmul.f32 %v3463, %v1840
        %v3918 = vmul.f32 %v3463, %v1841
        %v3919 = vmul.f32 %v3463, %v1842
        %v3920 = vmul.f32 %v3463, %v1843
        %v3921 = vmul.f32 %v3463, %v1844
        %v3922 = vmul.f32 %v3463, %v1845
        %v3923 = vmul.f32 %v3463, %v1846
        %v3924 = vmul.f32 %v3463, %v1847
        %v3925 = vmul.f32 %v3463, %v1848
        %v3926 = vmul.f32 %v3463, %v1849
        %v3927 = vmul.f32 %v3463, %v1850
        %v3928 = vmul.f32 %v3463, %v1851
        %v3929 = vmul.f32 %v3463, %v1852
        %v3930 = vmul.f32 %v3463, %v1853
        %v3931 = vmul.f32 %v3463, %v1854
        %v3932 = vmul.f32 %v3463, %v1855
        %v3933 = vmul.f32 %v3463, %v1856
        %v3934 = vmul.f32 %v3463, %v1857
        %v3935 = vmul.f32 %v3463, %v1858
        %v3936 = vmul.f32 %v3463, %v1859
        %v3937 = vmul.f32 %v3463, %v1860
        %v3938 = vmul.f32 %v3463, %v1861
        %v3939 = vmul.f32 %v3463, %v1862
        %v3940 = vmul.f32 %v3463, %v1863
        %v3941 = vmul.f32 %v3463, %v1864
        %v3942 = vmul.f32 %v3463, %v1865
        %v3943 = vmul.f32 %v3463, %v1866
        %v3944 = vmul.f32 %v3463, %v1867
        %v3945 = vadd.f32 %v3881, %v3913
        %v3946 = vadd.f32 %v3882, %v3914
        %v3947 = vadd.f32 %v3883, %v3915
        %v3948 = vadd.f32 %v3884, %v3916
        %v3949 = vadd.f32 %v3885, %v3917
        %v3950 = vadd.f32 %v3886, %v3918
        %v3951 = vadd.f32 %v3887, %v3919
        %v3952 = vadd.f32 %v3888, %v3920
        %v3953 = vadd.f32 %v3889, %v3921
        %v3954 = vadd.f32 %v3890, %v3922
        %v3955 = vadd.f32 %v3891, %v3923
        %v3956 = vadd.f32 %v3892, %v3924
        %v3957 = vadd.f32 %v3893, %v3925
        %v3958 = vadd.f32 %v3894, %v3926
        %v3959 = vadd.f32 %v3895, %v3927
        %v3960 = vadd.f32 %v3896, %v3928
        %v3961 = vadd.f32 %v3897, %v3929
        %v3962 = vadd.f32 %v3898, %v3930
        %v3963 = vadd.f32 %v3899, %v3931
        %v3964 = vadd.f32 %v3900, %v3932
        %v3965 = vadd.f32 %v3901, %v3933
        %v3966 = vadd.f32 %v3902, %v3934
        %v3967 = vadd.f32 %v3903, %v3935
        %v3968 = vadd.f32 %v3904, %v3936
        %v3969 = vadd.f32 %v3905, %v3937
        %v3970 = vadd.f32 %v3906, %v3938
        %v3971 = vadd.f32 %v3907, %v3939
        %v3972 = vadd.f32 %v3908, %v3940
        %v3973 = vadd.f32 %v3909, %v3941
        %v3974 = vadd.f32 %v3910, %v3942
        %v3975 = vadd.f32 %v3911, %v3943
        %v3976 = vadd.f32 %v3912, %v3944
        %s3977 = scalar_lea.vmem %s1104, 512 [#allocation7]
        %3978 = vst [vmem:[%s3977] sm:$0xff] %v3945
        %3979 = vst [vmem:[%s3977 + $0x8] sm:$0xff] %v3946
        %3980 = vst [vmem:[%s3977 + $0x10] sm:$0xff] %v3947
        %3981 = vst [vmem:[%s3977 + $0x18] sm:$0xff] %v3948
        %3982 = vst [vmem:[%s3977 + $0x20] sm:$0xff] %v3949
        %3983 = vst [vmem:[%s3977 + $0x28] sm:$0xff] %v3950
        %3984 = vst [vmem:[%s3977 + $0x30] sm:$0xff] %v3951
        %3985 = vst [vmem:[%s3977 + $0x38] sm:$0xff] %v3952
        %3986 = vst [vmem:[%s3977 + $0x40] sm:$0xff] %v3953
        %3987 = vst [vmem:[%s3977 + $0x48] sm:$0xff] %v3954
        %3988 = vst [vmem:[%s3977 + $0x50] sm:$0xff] %v3955
        %3989 = vst [vmem:[%s3977 + $0x58] sm:$0xff] %v3956
        %3990 = vst [vmem:[%s3977 + $0x60] sm:$0xff] %v3957
        %3991 = vst [vmem:[%s3977 + $0x68] sm:$0xff] %v3958
        %3992 = vst [vmem:[%s3977 + $0x70] sm:$0xff] %v3959
        %3993 = vst [vmem:[%s3977 + $0x78] sm:$0xff] %v3960
        %3994 = vst [vmem:[%s3977 + $0x80] sm:$0xff] %v3961
        %3995 = vst [vmem:[%s3977 + $0x88] sm:$0xff] %v3962
        %3996 = vst [vmem:[%s3977 + $0x90] sm:$0xff] %v3963
        %3997 = vst [vmem:[%s3977 + $0x98] sm:$0xff] %v3964
        %3998 = vst [vmem:[%s3977 + $0xa0] sm:$0xff] %v3965
        %3999 = vst [vmem:[%s3977 + $0xa8] sm:$0xff] %v3966
        %4000 = vst [vmem:[%s3977 + $0xb0] sm:$0xff] %v3967
        %4001 = vst [vmem:[%s3977 + $0xb8] sm:$0xff] %v3968
        %4002 = vst [vmem:[%s3977 + $0xc0] sm:$0xff] %v3969
        %4003 = vst [vmem:[%s3977 + $0xc8] sm:$0xff] %v3970
        %4004 = vst [vmem:[%s3977 + $0xd0] sm:$0xff] %v3971
        %4005 = vst [vmem:[%s3977 + $0xd8] sm:$0xff] %v3972
        %4006 = vst [vmem:[%s3977 + $0xe0] sm:$0xff] %v3973
        %4007 = vst [vmem:[%s3977 + $0xe8] sm:$0xff] %v3974
        %4008 = vst [vmem:[%s3977 + $0xf0] sm:$0xff] %v3975
        %4009 = vst [vmem:[%s3977 + $0xf8] sm:$0xff] %v3976
        %v4010 = vsub.f32 %v3207, %v3303
        %v4011 = vsub.f32 %v3208, %v3304
        %v4012 = vsub.f32 %v3209, %v3305
        %v4013 = vsub.f32 %v3210, %v3306
        %v4014 = vsub.f32 %v3211, %v3307
        %v4015 = vsub.f32 %v3212, %v3308
        %v4016 = vsub.f32 %v3213, %v3309
        %v4017 = vsub.f32 %v3214, %v3310
        %v4018 = vsub.f32 %v3215, %v3311
        %v4019 = vsub.f32 %v3216, %v3312
        %v4020 = vsub.f32 %v3217, %v3313
        %v4021 = vsub.f32 %v3218, %v3314
        %v4022 = vsub.f32 %v3219, %v3315
        %v4023 = vsub.f32 %v3220, %v3316
        %v4024 = vsub.f32 %v3221, %v3317
        %v4025 = vsub.f32 %v3222, %v3318
        %v4026 = vsub.f32 %v3223, %v3319
        %v4027 = vsub.f32 %v3224, %v3320
        %v4028 = vsub.f32 %v3225, %v3321
        %v4029 = vsub.f32 %v3226, %v3322
        %v4030 = vsub.f32 %v3227, %v3323
        %v4031 = vsub.f32 %v3228, %v3324
        %v4032 = vsub.f32 %v3229, %v3325
        %v4033 = vsub.f32 %v3230, %v3326
        %v4034 = vsub.f32 %v3231, %v3327
        %v4035 = vsub.f32 %v3232, %v3328
        %v4036 = vsub.f32 %v3233, %v3329
        %v4037 = vsub.f32 %v3234, %v3330
        %v4038 = vsub.f32 %v3235, %v3331
        %v4039 = vsub.f32 %v3236, %v3332
        %v4040 = vsub.f32 %v3237, %v3333
        %v4041 = vsub.f32 %v3238, %v3334
        %v4042 = vmul.f32 %v4010, 1.442695
        %v4043 = vpow.pop %v4042
        %v4044 = vmul.f32 %v4011, 1.442695
        %v4045 = vpow.pop %v4044
        %v4046 = vmul.f32 %v4012, 1.442695
        %v4047 = vpow.pop %v4046
        %v4048 = vmul.f32 %v4013, 1.442695
        %v4049 = vpow.pop %v4048
        %v4050 = vmul.f32 %v4014, 1.442695
        %v4051 = vpow.pop %v4050
        %v4052 = vmul.f32 %v4015, 1.442695
        %v4053 = vpow.pop %v4052
        %v4054 = vmul.f32 %v4016, 1.442695
        %v4055 = vpow.pop %v4054
        %v4056 = vmul.f32 %v4017, 1.442695
        %v4057 = vpow.pop %v4056
        %v4058 = vmul.f32 %v4018, 1.442695
        %v4059 = vpow.pop %v4058
        %v4060 = vmul.f32 %v4019, 1.442695
        %v4061 = vpow.pop %v4060
        %v4062 = vmul.f32 %v4020, 1.442695
        %v4063 = vpow.pop %v4062
        %v4064 = vmul.f32 %v4021, 1.442695
        %v4065 = vpow.pop %v4064
        %v4066 = vmul.f32 %v4022, 1.442695
        %v4067 = vpow.pop %v4066
        %v4068 = vmul.f32 %v4023, 1.442695
        %v4069 = vpow.pop %v4068
        %v4070 = vmul.f32 %v4024, 1.442695
        %v4071 = vpow.pop %v4070
        %v4072 = vmul.f32 %v4025, 1.442695
        %v4073 = vpow.pop %v4072
        %v4074 = vmul.f32 %v4026, 1.442695
        %v4075 = vpow.pop %v4074
        %v4076 = vmul.f32 %v4027, 1.442695
        %v4077 = vpow.pop %v4076
        %v4078 = vmul.f32 %v4028, 1.442695
        %v4079 = vpow.pop %v4078
        %v4080 = vmul.f32 %v4029, 1.442695
        %v4081 = vpow.pop %v4080
        %v4082 = vmul.f32 %v4030, 1.442695
        %v4083 = vpow.pop %v4082
        %v4084 = vmul.f32 %v4031, 1.442695
        %v4085 = vpow.pop %v4084
        %v4086 = vmul.f32 %v4032, 1.442695
        %v4087 = vpow.pop %v4086
        %v4088 = vmul.f32 %v4033, 1.442695
        %v4089 = vpow.pop %v4088
        %v4090 = vmul.f32 %v4034, 1.442695
        %v4091 = vpow.pop %v4090
        %v4092 = vmul.f32 %v4035, 1.442695
        %v4093 = vpow.pop %v4092
        %v4094 = vmul.f32 %v4036, 1.442695
        %v4095 = vpow.pop %v4094
        %v4096 = vmul.f32 %v4037, 1.442695
        %v4097 = vpow.pop %v4096
        %v4098 = vmul.f32 %v4038, 1.442695
        %v4099 = vpow.pop %v4098
        %v4100 = vmul.f32 %v4039, 1.442695
        %v4101 = vpow.pop %v4100
        %v4102 = vmul.f32 %v4040, 1.442695
        %v4103 = vpow.pop %v4102
        %v4104 = vmul.f32 %v4041, 1.442695
        %v4105 = vpow.pop %v4104
        %v4106 = vmul.f32 %v1196, %v4043
        %v4107 = vmul.f32 %v1201, %v4045
        %v4108 = vmul.f32 %v1206, %v4047
        %v4109 = vmul.f32 %v1211, %v4049
        %v4110 = vmul.f32 %v1216, %v4051
        %v4111 = vmul.f32 %v1221, %v4053
        %v4112 = vmul.f32 %v1226, %v4055
        %v4113 = vmul.f32 %v1231, %v4057
        %v4114 = vmul.f32 %v1236, %v4059
        %v4115 = vmul.f32 %v1241, %v4061
        %v4116 = vmul.f32 %v1246, %v4063
        %v4117 = vmul.f32 %v1251, %v4065
        %v4118 = vmul.f32 %v1256, %v4067
        %v4119 = vmul.f32 %v1261, %v4069
        %v4120 = vmul.f32 %v1266, %v4071
        %v4121 = vmul.f32 %v1271, %v4073
        %v4122 = vmul.f32 %v1276, %v4075
        %v4123 = vmul.f32 %v1281, %v4077
        %v4124 = vmul.f32 %v1286, %v4079
        %v4125 = vmul.f32 %v1291, %v4081
        %v4126 = vmul.f32 %v1296, %v4083
        %v4127 = vmul.f32 %v1301, %v4085
        %v4128 = vmul.f32 %v1306, %v4087
        %v4129 = vmul.f32 %v1311, %v4089
        %v4130 = vmul.f32 %v1316, %v4091
        %v4131 = vmul.f32 %v1321, %v4093
        %v4132 = vmul.f32 %v1326, %v4095
        %v4133 = vmul.f32 %v1331, %v4097
        %v4134 = vmul.f32 %v1336, %v4099
        %v4135 = vmul.f32 %v1341, %v4101
        %v4136 = vmul.f32 %v1346, %v4103
        %v4137 = vmul.f32 %v1351, %v4105
        %v4138 = vmul.f32 %v3463, %v1868
        %v4139 = vmul.f32 %v3463, %v1869
        %v4140 = vmul.f32 %v3463, %v1870
        %v4141 = vmul.f32 %v3463, %v1871
        %v4142 = vmul.f32 %v3463, %v1872
        %v4143 = vmul.f32 %v3463, %v1873
        %v4144 = vmul.f32 %v3463, %v1874
        %v4145 = vmul.f32 %v3463, %v1875
        %v4146 = vmul.f32 %v3463, %v1876
        %v4147 = vmul.f32 %v3463, %v1877
        %v4148 = vmul.f32 %v3463, %v1878
        %v4149 = vmul.f32 %v3463, %v1879
        %v4150 = vmul.f32 %v3463, %v1880
        %v4151 = vmul.f32 %v3463, %v1881
        %v4152 = vmul.f32 %v3463, %v1882
        %v4153 = vmul.f32 %v3463, %v1883
        %v4154 = vmul.f32 %v3463, %v1884
        %v4155 = vmul.f32 %v3463, %v1885
        %v4156 = vmul.f32 %v3463, %v1886
        %v4157 = vmul.f32 %v3463, %v1887
        %v4158 = vmul.f32 %v3463, %v1888
        %v4159 = vmul.f32 %v3463, %v1889
        %v4160 = vmul.f32 %v3463, %v1890
        %v4161 = vmul.f32 %v3463, %v1891
        %v4162 = vmul.f32 %v3463, %v1892
        %v4163 = vmul.f32 %v3463, %v1893
        %v4164 = vmul.f32 %v3463, %v1894
        %v4165 = vmul.f32 %v3463, %v1895
        %v4166 = vmul.f32 %v3463, %v1896
        %v4167 = vmul.f32 %v3463, %v1897
        %v4168 = vmul.f32 %v3463, %v1898
        %v4169 = vmul.f32 %v3463, %v1899
        %v4170 = vadd.f32 %v4106, %v4138
        %v4171 = vadd.f32 %v4107, %v4139
        %v4172 = vadd.f32 %v4108, %v4140
        %v4173 = vadd.f32 %v4109, %v4141
        %v4174 = vadd.f32 %v4110, %v4142
        %v4175 = vadd.f32 %v4111, %v4143
        %v4176 = vadd.f32 %v4112, %v4144
        %v4177 = vadd.f32 %v4113, %v4145
        %v4178 = vadd.f32 %v4114, %v4146
        %v4179 = vadd.f32 %v4115, %v4147
        %v4180 = vadd.f32 %v4116, %v4148
        %v4181 = vadd.f32 %v4117, %v4149
        %v4182 = vadd.f32 %v4118, %v4150
        %v4183 = vadd.f32 %v4119, %v4151
        %v4184 = vadd.f32 %v4120, %v4152
        %v4185 = vadd.f32 %v4121, %v4153
        %v4186 = vadd.f32 %v4122, %v4154
        %v4187 = vadd.f32 %v4123, %v4155
        %v4188 = vadd.f32 %v4124, %v4156
        %v4189 = vadd.f32 %v4125, %v4157
        %v4190 = vadd.f32 %v4126, %v4158
        %v4191 = vadd.f32 %v4127, %v4159
        %v4192 = vadd.f32 %v4128, %v4160
        %v4193 = vadd.f32 %v4129, %v4161
        %v4194 = vadd.f32 %v4130, %v4162
        %v4195 = vadd.f32 %v4131, %v4163
        %v4196 = vadd.f32 %v4132, %v4164
        %v4197 = vadd.f32 %v4133, %v4165
        %v4198 = vadd.f32 %v4134, %v4166
        %v4199 = vadd.f32 %v4135, %v4167
        %v4200 = vadd.f32 %v4136, %v4168
        %v4201 = vadd.f32 %v4137, %v4169
        %s4202 = scalar_lea.vmem %s1104, 768 [#allocation7]
        %4203 = vst [vmem:[%s4202] sm:$0xff] %v4170
        %4204 = vst [vmem:[%s4202 + $0x8] sm:$0xff] %v4171
        %4205 = vst [vmem:[%s4202 + $0x10] sm:$0xff] %v4172
        %4206 = vst [vmem:[%s4202 + $0x18] sm:$0xff] %v4173
        %4207 = vst [vmem:[%s4202 + $0x20] sm:$0xff] %v4174
        %4208 = vst [vmem:[%s4202 + $0x28] sm:$0xff] %v4175
        %4209 = vst [vmem:[%s4202 + $0x30] sm:$0xff] %v4176
        %4210 = vst [vmem:[%s4202 + $0x38] sm:$0xff] %v4177
        %4211 = vst [vmem:[%s4202 + $0x40] sm:$0xff] %v4178
        %4212 = vst [vmem:[%s4202 + $0x48] sm:$0xff] %v4179
        %4213 = vst [vmem:[%s4202 + $0x50] sm:$0xff] %v4180
        %4214 = vst [vmem:[%s4202 + $0x58] sm:$0xff] %v4181
        %4215 = vst [vmem:[%s4202 + $0x60] sm:$0xff] %v4182
        %4216 = vst [vmem:[%s4202 + $0x68] sm:$0xff] %v4183
        %4217 = vst [vmem:[%s4202 + $0x70] sm:$0xff] %v4184
        %4218 = vst [vmem:[%s4202 + $0x78] sm:$0xff] %v4185
        %4219 = vst [vmem:[%s4202 + $0x80] sm:$0xff] %v4186
        %4220 = vst [vmem:[%s4202 + $0x88] sm:$0xff] %v4187
        %4221 = vst [vmem:[%s4202 + $0x90] sm:$0xff] %v4188
        %4222 = vst [vmem:[%s4202 + $0x98] sm:$0xff] %v4189
        %4223 = vst [vmem:[%s4202 + $0xa0] sm:$0xff] %v4190
        %4224 = vst [vmem:[%s4202 + $0xa8] sm:$0xff] %v4191
        %4225 = vst [vmem:[%s4202 + $0xb0] sm:$0xff] %v4192
        %4226 = vst [vmem:[%s4202 + $0xb8] sm:$0xff] %v4193
        %4227 = vst [vmem:[%s4202 + $0xc0] sm:$0xff] %v4194
        %4228 = vst [vmem:[%s4202 + $0xc8] sm:$0xff] %v4195
        %4229 = vst [vmem:[%s4202 + $0xd0] sm:$0xff] %v4196
        %4230 = vst [vmem:[%s4202 + $0xd8] sm:$0xff] %v4197
        %4231 = vst [vmem:[%s4202 + $0xe0] sm:$0xff] %v4198
        %4232 = vst [vmem:[%s4202 + $0xe8] sm:$0xff] %v4199
        %4233 = vst [vmem:[%s4202 + $0xf0] sm:$0xff] %v4200
        %4234 = vst [vmem:[%s4202 + $0xf8] sm:$0xff] %v4201
        %4235 = vst [vmem:[%s1110] sm:$0xff] %v3067
        %4236 = vst [vmem:[%s1110 + $0x8] sm:$0xff] %v3082
        %s4237 = scalar_lea.vmem %s1110, 16 [#allocation8]
        %4238 = vst [vmem:[%s4237] sm:$0xff] %v3097
        %4239 = vst [vmem:[%s4237 + $0x8] sm:$0xff] %v3112
        %s4240 = scalar_lea.vmem %s1110, 32 [#allocation8]
        %4241 = vst [vmem:[%s4240] sm:$0xff] %v3127
        %4242 = vst [vmem:[%s4240 + $0x8] sm:$0xff] %v3142
        %s4243 = sand.u32 %s147, 1
        %s4244 = sand.u32 %s147, 1
        %s4245 = smul.addr %s4244, 1024
        %s4246 = scalar_lea.vmem [#allocation7], %s4245
        %s4247 = sand.u32 %s173, 1
        %s4248 = sand.u32 %s173, 1
        %s4249 = smul.addr %s4248, 48
        %s4250 = scalar_lea.vmem [#allocation8], %s4249
        // Predicated region
        $region162: #{ms_layer_forward.1} parent=144 // pred_check
          %p4251 = pneg %p157
        $region163: #{ms_layer_forward.1} parent=144 // pred_check_branch
          %4253 = sbr.rel (%p4251) target = $region165
        $region164: #{ms_layer_forward.1} parent=144 // pred_region
          %s4254 = smul.addr %s19, 8
          %s4255 = scalar_lea.vmem %s5, %s4254
          // Predicated region
          $region166: #{ms_layer_forward.1} parent=164 // pred_check
            _
          $region167: #{ms_layer_forward.1} parent=164 // pred_check_branch
            %4257 = sbr.rel (0) target = $region169
          $region168: #{ms_layer_forward.1} parent=164 // pred_region
            // Predicated region
            $region170: #{ms_layer_forward.1} parent=168 // pred_check
              _
            $region171: #{ms_layer_forward.1} parent=168 // pred_check_branch
              %4259 = sbr.rel (0) target = $region173
            $region172: #{ms_layer_forward.1} parent=168 // pred_region
              // Predicated region
              $region185: #{ms_layer_forward.1} parent=172 // pred_check
                _
              $region186: #{ms_layer_forward.1} parent=172 // pred_check_branch
                %4529 = sbr.rel (0) target = $region188
              $region187: #{ms_layer_forward.1} parent=172 // pred_region
                loop: start=0, step=1, limit=1
                $region189: #{ms_layer_forward.1} parent=187 // loop_pre_header
                  _
                $region190: #{ms_layer_forward.1} parent=187 // loop_header
                  %s4531 = sphi 0, %s4535
                  %p4532 = scmp.ge.s32.totalorder %s4531, 1
                  %s4536 = sphi %s4246, %s4246
                  %s4537 = sphi %s4255, %s4255
                $region191: #{ms_layer_forward.1} parent=187 // loop_header_branch
                  %4534 = sbr.rel (%p4532) target = $region195
                $region192: #{ms_layer_forward.1} parent=187 // loop_body
                  %v4538 = vld [vmem:[%s4536] sm:$0xff]
                  %4539 = vst [vmem:[%s4537] sm:$0xff] %v4538
                  %v4540 = vld [vmem:[%s4536 + $0x8] sm:$0xff]
                  %4541 = vst [vmem:[%s4537 + $0x10] sm:$0xff] %v4540
                  %v4542 = vld [vmem:[%s4536 + $0x10] sm:$0xff]
                  %4543 = vst [vmem:[%s4537 + $0x20] sm:$0xff] %v4542
                  %v4544 = vld [vmem:[%s4536 + $0x18] sm:$0xff]
                  %4545 = vst [vmem:[%s4537 + $0x30] sm:$0xff] %v4544
                  %v4546 = vld [vmem:[%s4536 + $0x20] sm:$0xff]
                  %4547 = vst [vmem:[%s4537 + $0x40] sm:$0xff] %v4546
                  %v4548 = vld [vmem:[%s4536 + $0x28] sm:$0xff]
                  %4549 = vst [vmem:[%s4537 + $0x50] sm:$0xff] %v4548
                  %v4550 = vld [vmem:[%s4536 + $0x30] sm:$0xff]
                  %4551 = vst [vmem:[%s4537 + $0x60] sm:$0xff] %v4550
                  %v4552 = vld [vmem:[%s4536 + $0x38] sm:$0xff]
                  %4553 = vst [vmem:[%s4537 + $0x70] sm:$0xff] %v4552
                  %v4554 = vld [vmem:[%s4536 + $0x40] sm:$0xff]
                  %4555 = vst [vmem:[%s4537 + $0x80] sm:$0xff] %v4554
                  %v4556 = vld [vmem:[%s4536 + $0x48] sm:$0xff]
                  %4557 = vst [vmem:[%s4537 + $0x90] sm:$0xff] %v4556
                  %v4558 = vld [vmem:[%s4536 + $0x50] sm:$0xff]
                  %4559 = vst [vmem:[%s4537 + $0xa0] sm:$0xff] %v4558
                  %v4560 = vld [vmem:[%s4536 + $0x58] sm:$0xff]
                  %4561 = vst [vmem:[%s4537 + $0xb0] sm:$0xff] %v4560
                  %v4562 = vld [vmem:[%s4536 + $0x60] sm:$0xff]
                  %4563 = vst [vmem:[%s4537 + $0xc0] sm:$0xff] %v4562
                  %v4564 = vld [vmem:[%s4536 + $0x68] sm:$0xff]
                  %4565 = vst [vmem:[%s4537 + $0xd0] sm:$0xff] %v4564
                  %v4566 = vld [vmem:[%s4536 + $0x70] sm:$0xff]
                  %4567 = vst [vmem:[%s4537 + $0xe0] sm:$0xff] %v4566
                  %v4568 = vld [vmem:[%s4536 + $0x78] sm:$0xff]
                  %4569 = vst [vmem:[%s4537 + $0xf0] sm:$0xff] %v4568
                  %v4570 = vld [vmem:[%s4536 + $0x80] sm:$0xff]
                  %4571 = vst [vmem:[%s4537 + $0x100] sm:$0xff] %v4570
                  %v4572 = vld [vmem:[%s4536 + $0x88] sm:$0xff]
                  %4573 = vst [vmem:[%s4537 + $0x110] sm:$0xff] %v4572
                  %v4574 = vld [vmem:[%s4536 + $0x90] sm:$0xff]
                  %4575 = vst [vmem:[%s4537 + $0x120] sm:$0xff] %v4574
                  %v4576 = vld [vmem:[%s4536 + $0x98] sm:$0xff]
                  %4577 = vst [vmem:[%s4537 + $0x130] sm:$0xff] %v4576
                  %v4578 = vld [vmem:[%s4536 + $0xa0] sm:$0xff]
                  %4579 = vst [vmem:[%s4537 + $0x140] sm:$0xff] %v4578
                  %v4580 = vld [vmem:[%s4536 + $0xa8] sm:$0xff]
                  %4581 = vst [vmem:[%s4537 + $0x150] sm:$0xff] %v4580
                  %v4582 = vld [vmem:[%s4536 + $0xb0] sm:$0xff]
                  %4583 = vst [vmem:[%s4537 + $0x160] sm:$0xff] %v4582
                  %v4584 = vld [vmem:[%s4536 + $0xb8] sm:$0xff]
                  %4585 = vst [vmem:[%s4537 + $0x170] sm:$0xff] %v4584
                  %v4586 = vld [vmem:[%s4536 + $0xc0] sm:$0xff]
                  %4587 = vst [vmem:[%s4537 + $0x180] sm:$0xff] %v4586
                  %v4588 = vld [vmem:[%s4536 + $0xc8] sm:$0xff]
                  %4589 = vst [vmem:[%s4537 + $0x190] sm:$0xff] %v4588
                  %v4590 = vld [vmem:[%s4536 + $0xd0] sm:$0xff]
                  %4591 = vst [vmem:[%s4537 + $0x1a0] sm:$0xff] %v4590
                  %v4592 = vld [vmem:[%s4536 + $0xd8] sm:$0xff]
                  %4593 = vst [vmem:[%s4537 + $0x1b0] sm:$0xff] %v4592
                  %v4594 = vld [vmem:[%s4536 + $0xe0] sm:$0xff]
                  %4595 = vst [vmem:[%s4537 + $0x1c0] sm:$0xff] %v4594
                  %v4596 = vld [vmem:[%s4536 + $0xe8] sm:$0xff]
                  %4597 = vst [vmem:[%s4537 + $0x1d0] sm:$0xff] %v4596
                  %v4598 = vld [vmem:[%s4536 + $0xf0] sm:$0xff]
                  %4599 = vst [vmem:[%s4537 + $0x1e0] sm:$0xff] %v4598
                  %v4600 = vld [vmem:[%s4536 + $0xf8] sm:$0xff]
                  %4601 = vst [vmem:[%s4537 + $0x1f0] sm:$0xff] %v4600
                  %v4602 = vld [vmem:[%s4536 + $0x100] sm:$0xff]
                  %4603 = vst [vmem:[%s4537 + $0x200] sm:$0xff] %v4602
                  %v4604 = vld [vmem:[%s4536 + $0x108] sm:$0xff]
                  %4605 = vst [vmem:[%s4537 + $0x210] sm:$0xff] %v4604
                  %v4606 = vld [vmem:[%s4536 + $0x110] sm:$0xff]
                  %4607 = vst [vmem:[%s4537 + $0x220] sm:$0xff] %v4606
                  %v4608 = vld [vmem:[%s4536 + $0x118] sm:$0xff]
                  %4609 = vst [vmem:[%s4537 + $0x230] sm:$0xff] %v4608
                  %v4610 = vld [vmem:[%s4536 + $0x120] sm:$0xff]
                  %4611 = vst [vmem:[%s4537 + $0x240] sm:$0xff] %v4610
                  %v4612 = vld [vmem:[%s4536 + $0x128] sm:$0xff]
                  %4613 = vst [vmem:[%s4537 + $0x250] sm:$0xff] %v4612
                  %v4614 = vld [vmem:[%s4536 + $0x130] sm:$0xff]
                  %4615 = vst [vmem:[%s4537 + $0x260] sm:$0xff] %v4614
                  %v4616 = vld [vmem:[%s4536 + $0x138] sm:$0xff]
                  %4617 = vst [vmem:[%s4537 + $0x270] sm:$0xff] %v4616
                  %v4618 = vld [vmem:[%s4536 + $0x140] sm:$0xff]
                  %4619 = vst [vmem:[%s4537 + $0x280] sm:$0xff] %v4618
                  %v4620 = vld [vmem:[%s4536 + $0x148] sm:$0xff]
                  %4621 = vst [vmem:[%s4537 + $0x290] sm:$0xff] %v4620
                  %v4622 = vld [vmem:[%s4536 + $0x150] sm:$0xff]
                  %4623 = vst [vmem:[%s4537 + $0x2a0] sm:$0xff] %v4622
                  %v4624 = vld [vmem:[%s4536 + $0x158] sm:$0xff]
                  %4625 = vst [vmem:[%s4537 + $0x2b0] sm:$0xff] %v4624
                  %v4626 = vld [vmem:[%s4536 + $0x160] sm:$0xff]
                  %4627 = vst [vmem:[%s4537 + $0x2c0] sm:$0xff] %v4626
                  %v4628 = vld [vmem:[%s4536 + $0x168] sm:$0xff]
                  %4629 = vst [vmem:[%s4537 + $0x2d0] sm:$0xff] %v4628
                  %v4630 = vld [vmem:[%s4536 + $0x170] sm:$0xff]
                  %4631 = vst [vmem:[%s4537 + $0x2e0] sm:$0xff] %v4630
                  %v4632 = vld [vmem:[%s4536 + $0x178] sm:$0xff]
                  %4633 = vst [vmem:[%s4537 + $0x2f0] sm:$0xff] %v4632
                  %v4634 = vld [vmem:[%s4536 + $0x180] sm:$0xff]
                  %4635 = vst [vmem:[%s4537 + $0x300] sm:$0xff] %v4634
                  %v4636 = vld [vmem:[%s4536 + $0x188] sm:$0xff]
                  %4637 = vst [vmem:[%s4537 + $0x310] sm:$0xff] %v4636
                  %v4638 = vld [vmem:[%s4536 + $0x190] sm:$0xff]
                  %4639 = vst [vmem:[%s4537 + $0x320] sm:$0xff] %v4638
                  %v4640 = vld [vmem:[%s4536 + $0x198] sm:$0xff]
                  %4641 = vst [vmem:[%s4537 + $0x330] sm:$0xff] %v4640
                  %v4642 = vld [vmem:[%s4536 + $0x1a0] sm:$0xff]
                  %4643 = vst [vmem:[%s4537 + $0x340] sm:$0xff] %v4642
                  %v4644 = vld [vmem:[%s4536 + $0x1a8] sm:$0xff]
                  %4645 = vst [vmem:[%s4537 + $0x350] sm:$0xff] %v4644
                  %v4646 = vld [vmem:[%s4536 + $0x1b0] sm:$0xff]
                  %4647 = vst [vmem:[%s4537 + $0x360] sm:$0xff] %v4646
                  %v4648 = vld [vmem:[%s4536 + $0x1b8] sm:$0xff]
                  %4649 = vst [vmem:[%s4537 + $0x370] sm:$0xff] %v4648
                  %v4650 = vld [vmem:[%s4536 + $0x1c0] sm:$0xff]
                  %4651 = vst [vmem:[%s4537 + $0x380] sm:$0xff] %v4650
                  %v4652 = vld [vmem:[%s4536 + $0x1c8] sm:$0xff]
                  %4653 = vst [vmem:[%s4537 + $0x390] sm:$0xff] %v4652
                  %v4654 = vld [vmem:[%s4536 + $0x1d0] sm:$0xff]
                  %4655 = vst [vmem:[%s4537 + $0x3a0] sm:$0xff] %v4654
                  %v4656 = vld [vmem:[%s4536 + $0x1d8] sm:$0xff]
                  %4657 = vst [vmem:[%s4537 + $0x3b0] sm:$0xff] %v4656
                  %v4658 = vld [vmem:[%s4536 + $0x1e0] sm:$0xff]
                  %4659 = vst [vmem:[%s4537 + $0x3c0] sm:$0xff] %v4658
                  %v4660 = vld [vmem:[%s4536 + $0x1e8] sm:$0xff]
                  %4661 = vst [vmem:[%s4537 + $0x3d0] sm:$0xff] %v4660
                  %v4662 = vld [vmem:[%s4536 + $0x1f0] sm:$0xff]
                  %4663 = vst [vmem:[%s4537 + $0x3e0] sm:$0xff] %v4662
                  %v4664 = vld [vmem:[%s4536 + $0x1f8] sm:$0xff]
                  %4665 = vst [vmem:[%s4537 + $0x3f0] sm:$0xff] %v4664
                  %v4666 = vld [vmem:[%s4536 + $0x200] sm:$0xff]
                  %4667 = vst [vmem:[%s4537 + $0x400] sm:$0xff] %v4666
                  %v4668 = vld [vmem:[%s4536 + $0x208] sm:$0xff]
                  %4669 = vst [vmem:[%s4537 + $0x410] sm:$0xff] %v4668
                  %v4670 = vld [vmem:[%s4536 + $0x210] sm:$0xff]
                  %4671 = vst [vmem:[%s4537 + $0x420] sm:$0xff] %v4670
                  %v4672 = vld [vmem:[%s4536 + $0x218] sm:$0xff]
                  %4673 = vst [vmem:[%s4537 + $0x430] sm:$0xff] %v4672
                  %v4674 = vld [vmem:[%s4536 + $0x220] sm:$0xff]
                  %4675 = vst [vmem:[%s4537 + $0x440] sm:$0xff] %v4674
                  %v4676 = vld [vmem:[%s4536 + $0x228] sm:$0xff]
                  %4677 = vst [vmem:[%s4537 + $0x450] sm:$0xff] %v4676
                  %v4678 = vld [vmem:[%s4536 + $0x230] sm:$0xff]
                  %4679 = vst [vmem:[%s4537 + $0x460] sm:$0xff] %v4678
                  %v4680 = vld [vmem:[%s4536 + $0x238] sm:$0xff]
                  %4681 = vst [vmem:[%s4537 + $0x470] sm:$0xff] %v4680
                  %v4682 = vld [vmem:[%s4536 + $0x240] sm:$0xff]
                  %4683 = vst [vmem:[%s4537 + $0x480] sm:$0xff] %v4682
                  %v4684 = vld [vmem:[%s4536 + $0x248] sm:$0xff]
                  %4685 = vst [vmem:[%s4537 + $0x490] sm:$0xff] %v4684
                  %v4686 = vld [vmem:[%s4536 + $0x250] sm:$0xff]
                  %4687 = vst [vmem:[%s4537 + $0x4a0] sm:$0xff] %v4686
                  %v4688 = vld [vmem:[%s4536 + $0x258] sm:$0xff]
                  %4689 = vst [vmem:[%s4537 + $0x4b0] sm:$0xff] %v4688
                  %v4690 = vld [vmem:[%s4536 + $0x260] sm:$0xff]
                  %4691 = vst [vmem:[%s4537 + $0x4c0] sm:$0xff] %v4690
                  %v4692 = vld [vmem:[%s4536 + $0x268] sm:$0xff]
                  %4693 = vst [vmem:[%s4537 + $0x4d0] sm:$0xff] %v4692
                  %v4694 = vld [vmem:[%s4536 + $0x270] sm:$0xff]
                  %4695 = vst [vmem:[%s4537 + $0x4e0] sm:$0xff] %v4694
                  %v4696 = vld [vmem:[%s4536 + $0x278] sm:$0xff]
                  %4697 = vst [vmem:[%s4537 + $0x4f0] sm:$0xff] %v4696
                  %v4698 = vld [vmem:[%s4536 + $0x280] sm:$0xff]
                  %4699 = vst [vmem:[%s4537 + $0x500] sm:$0xff] %v4698
                  %v4700 = vld [vmem:[%s4536 + $0x288] sm:$0xff]
                  %4701 = vst [vmem:[%s4537 + $0x510] sm:$0xff] %v4700
                  %v4702 = vld [vmem:[%s4536 + $0x290] sm:$0xff]
                  %4703 = vst [vmem:[%s4537 + $0x520] sm:$0xff] %v4702
                  %v4704 = vld [vmem:[%s4536 + $0x298] sm:$0xff]
                  %4705 = vst [vmem:[%s4537 + $0x530] sm:$0xff] %v4704
                  %v4706 = vld [vmem:[%s4536 + $0x2a0] sm:$0xff]
                  %4707 = vst [vmem:[%s4537 + $0x540] sm:$0xff] %v4706
                  %v4708 = vld [vmem:[%s4536 + $0x2a8] sm:$0xff]
                  %4709 = vst [vmem:[%s4537 + $0x550] sm:$0xff] %v4708
                  %v4710 = vld [vmem:[%s4536 + $0x2b0] sm:$0xff]
                  %4711 = vst [vmem:[%s4537 + $0x560] sm:$0xff] %v4710
                  %v4712 = vld [vmem:[%s4536 + $0x2b8] sm:$0xff]
                  %4713 = vst [vmem:[%s4537 + $0x570] sm:$0xff] %v4712
                  %v4714 = vld [vmem:[%s4536 + $0x2c0] sm:$0xff]
                  %4715 = vst [vmem:[%s4537 + $0x580] sm:$0xff] %v4714
                  %v4716 = vld [vmem:[%s4536 + $0x2c8] sm:$0xff]
                  %4717 = vst [vmem:[%s4537 + $0x590] sm:$0xff] %v4716
                  %v4718 = vld [vmem:[%s4536 + $0x2d0] sm:$0xff]
                  %4719 = vst [vmem:[%s4537 + $0x5a0] sm:$0xff] %v4718
                  %v4720 = vld [vmem:[%s4536 + $0x2d8] sm:$0xff]
                  %4721 = vst [vmem:[%s4537 + $0x5b0] sm:$0xff] %v4720
                  %v4722 = vld [vmem:[%s4536 + $0x2e0] sm:$0xff]
                  %4723 = vst [vmem:[%s4537 + $0x5c0] sm:$0xff] %v4722
                  %v4724 = vld [vmem:[%s4536 + $0x2e8] sm:$0xff]
                  %4725 = vst [vmem:[%s4537 + $0x5d0] sm:$0xff] %v4724
                  %v4726 = vld [vmem:[%s4536 + $0x2f0] sm:$0xff]
                  %4727 = vst [vmem:[%s4537 + $0x5e0] sm:$0xff] %v4726
                  %v4728 = vld [vmem:[%s4536 + $0x2f8] sm:$0xff]
                  %4729 = vst [vmem:[%s4537 + $0x5f0] sm:$0xff] %v4728
                  %v4730 = vld [vmem:[%s4536 + $0x300] sm:$0xff]
                  %4731 = vst [vmem:[%s4537 + $0x600] sm:$0xff] %v4730
                  %v4732 = vld [vmem:[%s4536 + $0x308] sm:$0xff]
                  %4733 = vst [vmem:[%s4537 + $0x610] sm:$0xff] %v4732
                  %v4734 = vld [vmem:[%s4536 + $0x310] sm:$0xff]
                  %4735 = vst [vmem:[%s4537 + $0x620] sm:$0xff] %v4734
                  %v4736 = vld [vmem:[%s4536 + $0x318] sm:$0xff]
                  %4737 = vst [vmem:[%s4537 + $0x630] sm:$0xff] %v4736
                  %v4738 = vld [vmem:[%s4536 + $0x320] sm:$0xff]
                  %4739 = vst [vmem:[%s4537 + $0x640] sm:$0xff] %v4738
                  %v4740 = vld [vmem:[%s4536 + $0x328] sm:$0xff]
                  %4741 = vst [vmem:[%s4537 + $0x650] sm:$0xff] %v4740
                  %v4742 = vld [vmem:[%s4536 + $0x330] sm:$0xff]
                  %4743 = vst [vmem:[%s4537 + $0x660] sm:$0xff] %v4742
                  %v4744 = vld [vmem:[%s4536 + $0x338] sm:$0xff]
                  %4745 = vst [vmem:[%s4537 + $0x670] sm:$0xff] %v4744
                  %v4746 = vld [vmem:[%s4536 + $0x340] sm:$0xff]
                  %4747 = vst [vmem:[%s4537 + $0x680] sm:$0xff] %v4746
                  %v4748 = vld [vmem:[%s4536 + $0x348] sm:$0xff]
                  %4749 = vst [vmem:[%s4537 + $0x690] sm:$0xff] %v4748
                  %v4750 = vld [vmem:[%s4536 + $0x350] sm:$0xff]
                  %4751 = vst [vmem:[%s4537 + $0x6a0] sm:$0xff] %v4750
                  %v4752 = vld [vmem:[%s4536 + $0x358] sm:$0xff]
                  %4753 = vst [vmem:[%s4537 + $0x6b0] sm:$0xff] %v4752
                  %v4754 = vld [vmem:[%s4536 + $0x360] sm:$0xff]
                  %4755 = vst [vmem:[%s4537 + $0x6c0] sm:$0xff] %v4754
                  %v4756 = vld [vmem:[%s4536 + $0x368] sm:$0xff]
                  %4757 = vst [vmem:[%s4537 + $0x6d0] sm:$0xff] %v4756
                  %v4758 = vld [vmem:[%s4536 + $0x370] sm:$0xff]
                  %4759 = vst [vmem:[%s4537 + $0x6e0] sm:$0xff] %v4758
                  %v4760 = vld [vmem:[%s4536 + $0x378] sm:$0xff]
                  %4761 = vst [vmem:[%s4537 + $0x6f0] sm:$0xff] %v4760
                  %v4762 = vld [vmem:[%s4536 + $0x380] sm:$0xff]
                  %4763 = vst [vmem:[%s4537 + $0x700] sm:$0xff] %v4762
                  %v4764 = vld [vmem:[%s4536 + $0x388] sm:$0xff]
                  %4765 = vst [vmem:[%s4537 + $0x710] sm:$0xff] %v4764
                  %v4766 = vld [vmem:[%s4536 + $0x390] sm:$0xff]
                  %4767 = vst [vmem:[%s4537 + $0x720] sm:$0xff] %v4766
                  %v4768 = vld [vmem:[%s4536 + $0x398] sm:$0xff]
                  %4769 = vst [vmem:[%s4537 + $0x730] sm:$0xff] %v4768
                  %v4770 = vld [vmem:[%s4536 + $0x3a0] sm:$0xff]
                  %4771 = vst [vmem:[%s4537 + $0x740] sm:$0xff] %v4770
                  %v4772 = vld [vmem:[%s4536 + $0x3a8] sm:$0xff]
                  %4773 = vst [vmem:[%s4537 + $0x750] sm:$0xff] %v4772
                  %v4774 = vld [vmem:[%s4536 + $0x3b0] sm:$0xff]
                  %4775 = vst [vmem:[%s4537 + $0x760] sm:$0xff] %v4774
                  %v4776 = vld [vmem:[%s4536 + $0x3b8] sm:$0xff]
                  %4777 = vst [vmem:[%s4537 + $0x770] sm:$0xff] %v4776
                  %v4778 = vld [vmem:[%s4536 + $0x3c0] sm:$0xff]
                  %4779 = vst [vmem:[%s4537 + $0x780] sm:$0xff] %v4778
                  %v4780 = vld [vmem:[%s4536 + $0x3c8] sm:$0xff]
                  %4781 = vst [vmem:[%s4537 + $0x790] sm:$0xff] %v4780
                  %v4782 = vld [vmem:[%s4536 + $0x3d0] sm:$0xff]
                  %4783 = vst [vmem:[%s4537 + $0x7a0] sm:$0xff] %v4782
                  %v4784 = vld [vmem:[%s4536 + $0x3d8] sm:$0xff]
                  %4785 = vst [vmem:[%s4537 + $0x7b0] sm:$0xff] %v4784
                  %v4786 = vld [vmem:[%s4536 + $0x3e0] sm:$0xff]
                  %4787 = vst [vmem:[%s4537 + $0x7c0] sm:$0xff] %v4786
                  %v4788 = vld [vmem:[%s4536 + $0x3e8] sm:$0xff]
                  %4789 = vst [vmem:[%s4537 + $0x7d0] sm:$0xff] %v4788
                  %v4790 = vld [vmem:[%s4536 + $0x3f0] sm:$0xff]
                  %4791 = vst [vmem:[%s4537 + $0x7e0] sm:$0xff] %v4790
                  %v4792 = vld [vmem:[%s4536 + $0x3f8] sm:$0xff]
                  %4793 = vst [vmem:[%s4537 + $0x7f0] sm:$0xff] %v4792
                $region193: #{ms_layer_forward.1} parent=187 // loop_footer
                  %s4535 = sadd.s32 1, %s4531
                $region194: #{ms_layer_forward.1} parent=187 // loop_footer_branch
                  %4530 = sbr.rel target = $region190
                $region195: #{ms_layer_forward.1} parent=187 // loop_exit
                  _
              $region188: #{ms_layer_forward.1} parent=172 // pred_fallthru
                _
              // Predicated region
              $region196: #{ms_layer_forward.1} parent=172 // pred_check
                _
              $region197: #{ms_layer_forward.1} parent=172 // pred_check_branch
                %4795 = sbr.rel target = $region199
              $region198: #{ms_layer_forward.1} parent=172 // pred_region
                _
              $region199: #{ms_layer_forward.1} parent=172 // pred_fallthru
                _
            $region173: #{ms_layer_forward.1} parent=168 // pred_fallthru
              _
            // Predicated region
            $region174: #{ms_layer_forward.1} parent=168 // pred_check
              _
            $region175: #{ms_layer_forward.1} parent=168 // pred_check_branch
              %4261 = sbr.rel target = $region177
            $region176: #{ms_layer_forward.1} parent=168 // pred_region
              %s4263 = ssub.s32 256, 1
              loop: start=0, step=1, limit=1
              $region178: #{ms_layer_forward.1} parent=176 // loop_pre_header
                _
              $region179: #{ms_layer_forward.1} parent=176 // loop_header
                %s4265 = sphi 0, %s4269
                %p4266 = scmp.ge.s32.totalorder %s4265, 1
                %s4270 = sphi %s4246, %s4246
                %s4271 = sphi %s4255, %s4255
              $region180: #{ms_layer_forward.1} parent=176 // loop_header_branch
                %4268 = sbr.rel (%p4266) target = $region184
              $region181: #{ms_layer_forward.1} parent=176 // loop_body
                %v4272 = vld [vmem:[%s4270] sm:%s4263]
                %4273 = vst [vmem:[%s4271] sm:%s4263] %v4272
                %v4274 = vld [vmem:[%s4270 + $0x8] sm:%s4263]
                %4275 = vst [vmem:[%s4271 + $0x10] sm:%s4263] %v4274
                %v4276 = vld [vmem:[%s4270 + $0x10] sm:%s4263]
                %4277 = vst [vmem:[%s4271 + $0x20] sm:%s4263] %v4276
                %v4278 = vld [vmem:[%s4270 + $0x18] sm:%s4263]
                %4279 = vst [vmem:[%s4271 + $0x30] sm:%s4263] %v4278
                %v4280 = vld [vmem:[%s4270 + $0x20] sm:%s4263]
                %4281 = vst [vmem:[%s4271 + $0x40] sm:%s4263] %v4280
                %v4282 = vld [vmem:[%s4270 + $0x28] sm:%s4263]
                %4283 = vst [vmem:[%s4271 + $0x50] sm:%s4263] %v4282
                %v4284 = vld [vmem:[%s4270 + $0x30] sm:%s4263]
                %4285 = vst [vmem:[%s4271 + $0x60] sm:%s4263] %v4284
                %v4286 = vld [vmem:[%s4270 + $0x38] sm:%s4263]
                %4287 = vst [vmem:[%s4271 + $0x70] sm:%s4263] %v4286
                %v4288 = vld [vmem:[%s4270 + $0x40] sm:%s4263]
                %4289 = vst [vmem:[%s4271 + $0x80] sm:%s4263] %v4288
                %v4290 = vld [vmem:[%s4270 + $0x48] sm:%s4263]
                %4291 = vst [vmem:[%s4271 + $0x90] sm:%s4263] %v4290
                %v4292 = vld [vmem:[%s4270 + $0x50] sm:%s4263]
                %4293 = vst [vmem:[%s4271 + $0xa0] sm:%s4263] %v4292
                %v4294 = vld [vmem:[%s4270 + $0x58] sm:%s4263]
                %4295 = vst [vmem:[%s4271 + $0xb0] sm:%s4263] %v4294
                %v4296 = vld [vmem:[%s4270 + $0x60] sm:%s4263]
                %4297 = vst [vmem:[%s4271 + $0xc0] sm:%s4263] %v4296
                %v4298 = vld [vmem:[%s4270 + $0x68] sm:%s4263]
                %4299 = vst [vmem:[%s4271 + $0xd0] sm:%s4263] %v4298
                %v4300 = vld [vmem:[%s4270 + $0x70] sm:%s4263]
                %4301 = vst [vmem:[%s4271 + $0xe0] sm:%s4263] %v4300
                %v4302 = vld [vmem:[%s4270 + $0x78] sm:%s4263]
                %4303 = vst [vmem:[%s4271 + $0xf0] sm:%s4263] %v4302
                %v4304 = vld [vmem:[%s4270 + $0x80] sm:%s4263]
                %4305 = vst [vmem:[%s4271 + $0x100] sm:%s4263] %v4304
                %v4306 = vld [vmem:[%s4270 + $0x88] sm:%s4263]
                %4307 = vst [vmem:[%s4271 + $0x110] sm:%s4263] %v4306
                %v4308 = vld [vmem:[%s4270 + $0x90] sm:%s4263]
                %4309 = vst [vmem:[%s4271 + $0x120] sm:%s4263] %v4308
                %v4310 = vld [vmem:[%s4270 + $0x98] sm:%s4263]
                %4311 = vst [vmem:[%s4271 + $0x130] sm:%s4263] %v4310
                %v4312 = vld [vmem:[%s4270 + $0xa0] sm:%s4263]
                %4313 = vst [vmem:[%s4271 + $0x140] sm:%s4263] %v4312
                %v4314 = vld [vmem:[%s4270 + $0xa8] sm:%s4263]
                %4315 = vst [vmem:[%s4271 + $0x150] sm:%s4263] %v4314
                %v4316 = vld [vmem:[%s4270 + $0xb0] sm:%s4263]
                %4317 = vst [vmem:[%s4271 + $0x160] sm:%s4263] %v4316
                %v4318 = vld [vmem:[%s4270 + $0xb8] sm:%s4263]
                %4319 = vst [vmem:[%s4271 + $0x170] sm:%s4263] %v4318
                %v4320 = vld [vmem:[%s4270 + $0xc0] sm:%s4263]
                %4321 = vst [vmem:[%s4271 + $0x180] sm:%s4263] %v4320
                %v4322 = vld [vmem:[%s4270 + $0xc8] sm:%s4263]
                %4323 = vst [vmem:[%s4271 + $0x190] sm:%s4263] %v4322
                %v4324 = vld [vmem:[%s4270 + $0xd0] sm:%s4263]
                %4325 = vst [vmem:[%s4271 + $0x1a0] sm:%s4263] %v4324
                %v4326 = vld [vmem:[%s4270 + $0xd8] sm:%s4263]
                %4327 = vst [vmem:[%s4271 + $0x1b0] sm:%s4263] %v4326
                %v4328 = vld [vmem:[%s4270 + $0xe0] sm:%s4263]
                %4329 = vst [vmem:[%s4271 + $0x1c0] sm:%s4263] %v4328
                %v4330 = vld [vmem:[%s4270 + $0xe8] sm:%s4263]
                %4331 = vst [vmem:[%s4271 + $0x1d0] sm:%s4263] %v4330
                %v4332 = vld [vmem:[%s4270 + $0xf0] sm:%s4263]
                %4333 = vst [vmem:[%s4271 + $0x1e0] sm:%s4263] %v4332
                %v4334 = vld [vmem:[%s4270 + $0xf8] sm:%s4263]
                %4335 = vst [vmem:[%s4271 + $0x1f0] sm:%s4263] %v4334
                %v4336 = vld [vmem:[%s4270 + $0x100] sm:%s4263]
                %4337 = vst [vmem:[%s4271 + $0x200] sm:%s4263] %v4336
                %v4338 = vld [vmem:[%s4270 + $0x108] sm:%s4263]
                %4339 = vst [vmem:[%s4271 + $0x210] sm:%s4263] %v4338
                %v4340 = vld [vmem:[%s4270 + $0x110] sm:%s4263]
                %4341 = vst [vmem:[%s4271 + $0x220] sm:%s4263] %v4340
                %v4342 = vld [vmem:[%s4270 + $0x118] sm:%s4263]
                %4343 = vst [vmem:[%s4271 + $0x230] sm:%s4263] %v4342
                %v4344 = vld [vmem:[%s4270 + $0x120] sm:%s4263]
                %4345 = vst [vmem:[%s4271 + $0x240] sm:%s4263] %v4344
                %v4346 = vld [vmem:[%s4270 + $0x128] sm:%s4263]
                %4347 = vst [vmem:[%s4271 + $0x250] sm:%s4263] %v4346
                %v4348 = vld [vmem:[%s4270 + $0x130] sm:%s4263]
                %4349 = vst [vmem:[%s4271 + $0x260] sm:%s4263] %v4348
                %v4350 = vld [vmem:[%s4270 + $0x138] sm:%s4263]
                %4351 = vst [vmem:[%s4271 + $0x270] sm:%s4263] %v4350
                %v4352 = vld [vmem:[%s4270 + $0x140] sm:%s4263]
                %4353 = vst [vmem:[%s4271 + $0x280] sm:%s4263] %v4352
                %v4354 = vld [vmem:[%s4270 + $0x148] sm:%s4263]
                %4355 = vst [vmem:[%s4271 + $0x290] sm:%s4263] %v4354
                %v4356 = vld [vmem:[%s4270 + $0x150] sm:%s4263]
                %4357 = vst [vmem:[%s4271 + $0x2a0] sm:%s4263] %v4356
                %v4358 = vld [vmem:[%s4270 + $0x158] sm:%s4263]
                %4359 = vst [vmem:[%s4271 + $0x2b0] sm:%s4263] %v4358
                %v4360 = vld [vmem:[%s4270 + $0x160] sm:%s4263]
                %4361 = vst [vmem:[%s4271 + $0x2c0] sm:%s4263] %v4360
                %v4362 = vld [vmem:[%s4270 + $0x168] sm:%s4263]
                %4363 = vst [vmem:[%s4271 + $0x2d0] sm:%s4263] %v4362
                %v4364 = vld [vmem:[%s4270 + $0x170] sm:%s4263]
                %4365 = vst [vmem:[%s4271 + $0x2e0] sm:%s4263] %v4364
                %v4366 = vld [vmem:[%s4270 + $0x178] sm:%s4263]
                %4367 = vst [vmem:[%s4271 + $0x2f0] sm:%s4263] %v4366
                %v4368 = vld [vmem:[%s4270 + $0x180] sm:%s4263]
                %4369 = vst [vmem:[%s4271 + $0x300] sm:%s4263] %v4368
                %v4370 = vld [vmem:[%s4270 + $0x188] sm:%s4263]
                %4371 = vst [vmem:[%s4271 + $0x310] sm:%s4263] %v4370
                %v4372 = vld [vmem:[%s4270 + $0x190] sm:%s4263]
                %4373 = vst [vmem:[%s4271 + $0x320] sm:%s4263] %v4372
                %v4374 = vld [vmem:[%s4270 + $0x198] sm:%s4263]
                %4375 = vst [vmem:[%s4271 + $0x330] sm:%s4263] %v4374
                %v4376 = vld [vmem:[%s4270 + $0x1a0] sm:%s4263]
                %4377 = vst [vmem:[%s4271 + $0x340] sm:%s4263] %v4376
                %v4378 = vld [vmem:[%s4270 + $0x1a8] sm:%s4263]
                %4379 = vst [vmem:[%s4271 + $0x350] sm:%s4263] %v4378
                %v4380 = vld [vmem:[%s4270 + $0x1b0] sm:%s4263]
                %4381 = vst [vmem:[%s4271 + $0x360] sm:%s4263] %v4380
                %v4382 = vld [vmem:[%s4270 + $0x1b8] sm:%s4263]
                %4383 = vst [vmem:[%s4271 + $0x370] sm:%s4263] %v4382
                %v4384 = vld [vmem:[%s4270 + $0x1c0] sm:%s4263]
                %4385 = vst [vmem:[%s4271 + $0x380] sm:%s4263] %v4384
                %v4386 = vld [vmem:[%s4270 + $0x1c8] sm:%s4263]
                %4387 = vst [vmem:[%s4271 + $0x390] sm:%s4263] %v4386
                %v4388 = vld [vmem:[%s4270 + $0x1d0] sm:%s4263]
                %4389 = vst [vmem:[%s4271 + $0x3a0] sm:%s4263] %v4388
                %v4390 = vld [vmem:[%s4270 + $0x1d8] sm:%s4263]
                %4391 = vst [vmem:[%s4271 + $0x3b0] sm:%s4263] %v4390
                %v4392 = vld [vmem:[%s4270 + $0x1e0] sm:%s4263]
                %4393 = vst [vmem:[%s4271 + $0x3c0] sm:%s4263] %v4392
                %v4394 = vld [vmem:[%s4270 + $0x1e8] sm:%s4263]
                %4395 = vst [vmem:[%s4271 + $0x3d0] sm:%s4263] %v4394
                %v4396 = vld [vmem:[%s4270 + $0x1f0] sm:%s4263]
                %4397 = vst [vmem:[%s4271 + $0x3e0] sm:%s4263] %v4396
                %v4398 = vld [vmem:[%s4270 + $0x1f8] sm:%s4263]
                %4399 = vst [vmem:[%s4271 + $0x3f0] sm:%s4263] %v4398
                %v4400 = vld [vmem:[%s4270 + $0x200] sm:%s4263]
                %4401 = vst [vmem:[%s4271 + $0x400] sm:%s4263] %v4400
                %v4402 = vld [vmem:[%s4270 + $0x208] sm:%s4263]
                %4403 = vst [vmem:[%s4271 + $0x410] sm:%s4263] %v4402
                %v4404 = vld [vmem:[%s4270 + $0x210] sm:%s4263]
                %4405 = vst [vmem:[%s4271 + $0x420] sm:%s4263] %v4404
                %v4406 = vld [vmem:[%s4270 + $0x218] sm:%s4263]
                %4407 = vst [vmem:[%s4271 + $0x430] sm:%s4263] %v4406
                %v4408 = vld [vmem:[%s4270 + $0x220] sm:%s4263]
                %4409 = vst [vmem:[%s4271 + $0x440] sm:%s4263] %v4408
                %v4410 = vld [vmem:[%s4270 + $0x228] sm:%s4263]
                %4411 = vst [vmem:[%s4271 + $0x450] sm:%s4263] %v4410
                %v4412 = vld [vmem:[%s4270 + $0x230] sm:%s4263]
                %4413 = vst [vmem:[%s4271 + $0x460] sm:%s4263] %v4412
                %v4414 = vld [vmem:[%s4270 + $0x238] sm:%s4263]
                %4415 = vst [vmem:[%s4271 + $0x470] sm:%s4263] %v4414
                %v4416 = vld [vmem:[%s4270 + $0x240] sm:%s4263]
                %4417 = vst [vmem:[%s4271 + $0x480] sm:%s4263] %v4416
                %v4418 = vld [vmem:[%s4270 + $0x248] sm:%s4263]
                %4419 = vst [vmem:[%s4271 + $0x490] sm:%s4263] %v4418
                %v4420 = vld [vmem:[%s4270 + $0x250] sm:%s4263]
                %4421 = vst [vmem:[%s4271 + $0x4a0] sm:%s4263] %v4420
                %v4422 = vld [vmem:[%s4270 + $0x258] sm:%s4263]
                %4423 = vst [vmem:[%s4271 + $0x4b0] sm:%s4263] %v4422
                %v4424 = vld [vmem:[%s4270 + $0x260] sm:%s4263]
                %4425 = vst [vmem:[%s4271 + $0x4c0] sm:%s4263] %v4424
                %v4426 = vld [vmem:[%s4270 + $0x268] sm:%s4263]
                %4427 = vst [vmem:[%s4271 + $0x4d0] sm:%s4263] %v4426
                %v4428 = vld [vmem:[%s4270 + $0x270] sm:%s4263]
                %4429 = vst [vmem:[%s4271 + $0x4e0] sm:%s4263] %v4428
                %v4430 = vld [vmem:[%s4270 + $0x278] sm:%s4263]
                %4431 = vst [vmem:[%s4271 + $0x4f0] sm:%s4263] %v4430
                %v4432 = vld [vmem:[%s4270 + $0x280] sm:%s4263]
                %4433 = vst [vmem:[%s4271 + $0x500] sm:%s4263] %v4432
                %v4434 = vld [vmem:[%s4270 + $0x288] sm:%s4263]
                %4435 = vst [vmem:[%s4271 + $0x510] sm:%s4263] %v4434
                %v4436 = vld [vmem:[%s4270 + $0x290] sm:%s4263]
                %4437 = vst [vmem:[%s4271 + $0x520] sm:%s4263] %v4436
                %v4438 = vld [vmem:[%s4270 + $0x298] sm:%s4263]
                %4439 = vst [vmem:[%s4271 + $0x530] sm:%s4263] %v4438
                %v4440 = vld [vmem:[%s4270 + $0x2a0] sm:%s4263]
                %4441 = vst [vmem:[%s4271 + $0x540] sm:%s4263] %v4440
                %v4442 = vld [vmem:[%s4270 + $0x2a8] sm:%s4263]
                %4443 = vst [vmem:[%s4271 + $0x550] sm:%s4263] %v4442
                %v4444 = vld [vmem:[%s4270 + $0x2b0] sm:%s4263]
                %4445 = vst [vmem:[%s4271 + $0x560] sm:%s4263] %v4444
                %v4446 = vld [vmem:[%s4270 + $0x2b8] sm:%s4263]
                %4447 = vst [vmem:[%s4271 + $0x570] sm:%s4263] %v4446
                %v4448 = vld [vmem:[%s4270 + $0x2c0] sm:%s4263]
                %4449 = vst [vmem:[%s4271 + $0x580] sm:%s4263] %v4448
                %v4450 = vld [vmem:[%s4270 + $0x2c8] sm:%s4263]
                %4451 = vst [vmem:[%s4271 + $0x590] sm:%s4263] %v4450
                %v4452 = vld [vmem:[%s4270 + $0x2d0] sm:%s4263]
                %4453 = vst [vmem:[%s4271 + $0x5a0] sm:%s4263] %v4452
                %v4454 = vld [vmem:[%s4270 + $0x2d8] sm:%s4263]
                %4455 = vst [vmem:[%s4271 + $0x5b0] sm:%s4263] %v4454
                %v4456 = vld [vmem:[%s4270 + $0x2e0] sm:%s4263]
                %4457 = vst [vmem:[%s4271 + $0x5c0] sm:%s4263] %v4456
                %v4458 = vld [vmem:[%s4270 + $0x2e8] sm:%s4263]
                %4459 = vst [vmem:[%s4271 + $0x5d0] sm:%s4263] %v4458
                %v4460 = vld [vmem:[%s4270 + $0x2f0] sm:%s4263]
                %4461 = vst [vmem:[%s4271 + $0x5e0] sm:%s4263] %v4460
                %v4462 = vld [vmem:[%s4270 + $0x2f8] sm:%s4263]
                %4463 = vst [vmem:[%s4271 + $0x5f0] sm:%s4263] %v4462
                %v4464 = vld [vmem:[%s4270 + $0x300] sm:%s4263]
                %4465 = vst [vmem:[%s4271 + $0x600] sm:%s4263] %v4464
                %v4466 = vld [vmem:[%s4270 + $0x308] sm:%s4263]
                %4467 = vst [vmem:[%s4271 + $0x610] sm:%s4263] %v4466
                %v4468 = vld [vmem:[%s4270 + $0x310] sm:%s4263]
                %4469 = vst [vmem:[%s4271 + $0x620] sm:%s4263] %v4468
                %v4470 = vld [vmem:[%s4270 + $0x318] sm:%s4263]
                %4471 = vst [vmem:[%s4271 + $0x630] sm:%s4263] %v4470
                %v4472 = vld [vmem:[%s4270 + $0x320] sm:%s4263]
                %4473 = vst [vmem:[%s4271 + $0x640] sm:%s4263] %v4472
                %v4474 = vld [vmem:[%s4270 + $0x328] sm:%s4263]
                %4475 = vst [vmem:[%s4271 + $0x650] sm:%s4263] %v4474
                %v4476 = vld [vmem:[%s4270 + $0x330] sm:%s4263]
                %4477 = vst [vmem:[%s4271 + $0x660] sm:%s4263] %v4476
                %v4478 = vld [vmem:[%s4270 + $0x338] sm:%s4263]
                %4479 = vst [vmem:[%s4271 + $0x670] sm:%s4263] %v4478
                %v4480 = vld [vmem:[%s4270 + $0x340] sm:%s4263]
                %4481 = vst [vmem:[%s4271 + $0x680] sm:%s4263] %v4480
                %v4482 = vld [vmem:[%s4270 + $0x348] sm:%s4263]
                %4483 = vst [vmem:[%s4271 + $0x690] sm:%s4263] %v4482
                %v4484 = vld [vmem:[%s4270 + $0x350] sm:%s4263]
                %4485 = vst [vmem:[%s4271 + $0x6a0] sm:%s4263] %v4484
                %v4486 = vld [vmem:[%s4270 + $0x358] sm:%s4263]
                %4487 = vst [vmem:[%s4271 + $0x6b0] sm:%s4263] %v4486
                %v4488 = vld [vmem:[%s4270 + $0x360] sm:%s4263]
                %4489 = vst [vmem:[%s4271 + $0x6c0] sm:%s4263] %v4488
                %v4490 = vld [vmem:[%s4270 + $0x368] sm:%s4263]
                %4491 = vst [vmem:[%s4271 + $0x6d0] sm:%s4263] %v4490
                %v4492 = vld [vmem:[%s4270 + $0x370] sm:%s4263]
                %4493 = vst [vmem:[%s4271 + $0x6e0] sm:%s4263] %v4492
                %v4494 = vld [vmem:[%s4270 + $0x378] sm:%s4263]
                %4495 = vst [vmem:[%s4271 + $0x6f0] sm:%s4263] %v4494
                %v4496 = vld [vmem:[%s4270 + $0x380] sm:%s4263]
                %4497 = vst [vmem:[%s4271 + $0x700] sm:%s4263] %v4496
                %v4498 = vld [vmem:[%s4270 + $0x388] sm:%s4263]
                %4499 = vst [vmem:[%s4271 + $0x710] sm:%s4263] %v4498
                %v4500 = vld [vmem:[%s4270 + $0x390] sm:%s4263]
                %4501 = vst [vmem:[%s4271 + $0x720] sm:%s4263] %v4500
                %v4502 = vld [vmem:[%s4270 + $0x398] sm:%s4263]
                %4503 = vst [vmem:[%s4271 + $0x730] sm:%s4263] %v4502
                %v4504 = vld [vmem:[%s4270 + $0x3a0] sm:%s4263]
                %4505 = vst [vmem:[%s4271 + $0x740] sm:%s4263] %v4504
                %v4506 = vld [vmem:[%s4270 + $0x3a8] sm:%s4263]
                %4507 = vst [vmem:[%s4271 + $0x750] sm:%s4263] %v4506
                %v4508 = vld [vmem:[%s4270 + $0x3b0] sm:%s4263]
                %4509 = vst [vmem:[%s4271 + $0x760] sm:%s4263] %v4508
                %v4510 = vld [vmem:[%s4270 + $0x3b8] sm:%s4263]
                %4511 = vst [vmem:[%s4271 + $0x770] sm:%s4263] %v4510
                %v4512 = vld [vmem:[%s4270 + $0x3c0] sm:%s4263]
                %4513 = vst [vmem:[%s4271 + $0x780] sm:%s4263] %v4512
                %v4514 = vld [vmem:[%s4270 + $0x3c8] sm:%s4263]
                %4515 = vst [vmem:[%s4271 + $0x790] sm:%s4263] %v4514
                %v4516 = vld [vmem:[%s4270 + $0x3d0] sm:%s4263]
                %4517 = vst [vmem:[%s4271 + $0x7a0] sm:%s4263] %v4516
                %v4518 = vld [vmem:[%s4270 + $0x3d8] sm:%s4263]
                %4519 = vst [vmem:[%s4271 + $0x7b0] sm:%s4263] %v4518
                %v4520 = vld [vmem:[%s4270 + $0x3e0] sm:%s4263]
                %4521 = vst [vmem:[%s4271 + $0x7c0] sm:%s4263] %v4520
                %v4522 = vld [vmem:[%s4270 + $0x3e8] sm:%s4263]
                %4523 = vst [vmem:[%s4271 + $0x7d0] sm:%s4263] %v4522
                %v4524 = vld [vmem:[%s4270 + $0x3f0] sm:%s4263]
                %4525 = vst [vmem:[%s4271 + $0x7e0] sm:%s4263] %v4524
                %v4526 = vld [vmem:[%s4270 + $0x3f8] sm:%s4263]
                %4527 = vst [vmem:[%s4271 + $0x7f0] sm:%s4263] %v4526
              $region182: #{ms_layer_forward.1} parent=176 // loop_footer
                %s4269 = sadd.s32 1, %s4265
              $region183: #{ms_layer_forward.1} parent=176 // loop_footer_branch
                %4264 = sbr.rel target = $region179
              $region184: #{ms_layer_forward.1} parent=176 // loop_exit
                _
            $region177: #{ms_layer_forward.1} parent=168 // pred_fallthru
              _
          $region169: #{ms_layer_forward.1} parent=164 // pred_fallthru
            _
          %4796 = vnop
        $region165: #{ms_layer_forward.1} parent=144 // pred_fallthru
          _
        // Predicated region
        $region200: #{ms_layer_forward.1} parent=144 // pred_check
          %p4797 = pneg %p183
        $region201: #{ms_layer_forward.1} parent=144 // pred_check_branch
          %4799 = sbr.rel (%p4797) target = $region203
        $region202: #{ms_layer_forward.1} parent=144 // pred_region
          %s4800 = smul.addr %s19, 8
          %s4801 = scalar_lea.vmem %s6, %s4800
          // Predicated region
          $region204: #{ms_layer_forward.1} parent=202 // pred_check
            _
          $region205: #{ms_layer_forward.1} parent=202 // pred_check_branch
            %4803 = sbr.rel (0) target = $region207
          $region206: #{ms_layer_forward.1} parent=202 // pred_region
            // Predicated region
            $region208: #{ms_layer_forward.1} parent=206 // pred_check
              _
            $region209: #{ms_layer_forward.1} parent=206 // pred_check_branch
              %4805 = sbr.rel (0) target = $region211
            $region210: #{ms_layer_forward.1} parent=206 // pred_region
              // Predicated region
              $region223: #{ms_layer_forward.1} parent=210 // pred_check
                _
              $region224: #{ms_layer_forward.1} parent=210 // pred_check_branch
                %4831 = sbr.rel (0) target = $region226
              $region225: #{ms_layer_forward.1} parent=210 // pred_region
                loop: start=0, step=1, limit=1
                $region227: #{ms_layer_forward.1} parent=225 // loop_pre_header
                  _
                $region228: #{ms_layer_forward.1} parent=225 // loop_header
                  %s4833 = sphi 0, %s4837
                  %p4834 = scmp.ge.s32.totalorder %s4833, 1
                  %s4838 = sphi %s4250, %s4250
                  %s4839 = sphi %s4801, %s4801
                $region229: #{ms_layer_forward.1} parent=225 // loop_header_branch
                  %4836 = sbr.rel (%p4834) target = $region233
                $region230: #{ms_layer_forward.1} parent=225 // loop_body
                  %v4840 = vld [vmem:[%s4838] sm:$0xff]
                  %4841 = vst [vmem:[%s4839] sm:$0xff] %v4840
                  %v4842 = vld [vmem:[%s4838 + $0x8] sm:$0xff]
                  %4843 = vst [vmem:[%s4839 + $0x10] sm:$0xff] %v4842
                  %v4844 = vld [vmem:[%s4838 + $0x10] sm:$0xff]
                  %4845 = vst [vmem:[%s4839 + $0x20] sm:$0xff] %v4844
                  %v4846 = vld [vmem:[%s4838 + $0x18] sm:$0xff]
                  %4847 = vst [vmem:[%s4839 + $0x30] sm:$0xff] %v4846
                  %v4848 = vld [vmem:[%s4838 + $0x20] sm:$0xff]
                  %4849 = vst [vmem:[%s4839 + $0x40] sm:$0xff] %v4848
                  %v4850 = vld [vmem:[%s4838 + $0x28] sm:$0xff]
                  %4851 = vst [vmem:[%s4839 + $0x50] sm:$0xff] %v4850
                $region231: #{ms_layer_forward.1} parent=225 // loop_footer
                  %s4837 = sadd.s32 1, %s4833
                $region232: #{ms_layer_forward.1} parent=225 // loop_footer_branch
                  %4832 = sbr.rel target = $region228
                $region233: #{ms_layer_forward.1} parent=225 // loop_exit
                  _
              $region226: #{ms_layer_forward.1} parent=210 // pred_fallthru
                _
              // Predicated region
              $region234: #{ms_layer_forward.1} parent=210 // pred_check
                _
              $region235: #{ms_layer_forward.1} parent=210 // pred_check_branch
                %4853 = sbr.rel target = $region237
              $region236: #{ms_layer_forward.1} parent=210 // pred_region
                _
              $region237: #{ms_layer_forward.1} parent=210 // pred_fallthru
                _
            $region211: #{ms_layer_forward.1} parent=206 // pred_fallthru
              _
            // Predicated region
            $region212: #{ms_layer_forward.1} parent=206 // pred_check
              _
            $region213: #{ms_layer_forward.1} parent=206 // pred_check_branch
              %4807 = sbr.rel target = $region215
            $region214: #{ms_layer_forward.1} parent=206 // pred_region
              %s4809 = ssub.s32 256, 1
              loop: start=0, step=1, limit=1
              $region216: #{ms_layer_forward.1} parent=214 // loop_pre_header
                _
              $region217: #{ms_layer_forward.1} parent=214 // loop_header
                %s4811 = sphi 0, %s4815
                %p4812 = scmp.ge.s32.totalorder %s4811, 1
                %s4816 = sphi %s4250, %s4250
                %s4817 = sphi %s4801, %s4801
              $region218: #{ms_layer_forward.1} parent=214 // loop_header_branch
                %4814 = sbr.rel (%p4812) target = $region222
              $region219: #{ms_layer_forward.1} parent=214 // loop_body
                %v4818 = vld [vmem:[%s4816] sm:%s4809]
                %4819 = vst [vmem:[%s4817] sm:%s4809] %v4818
                %v4820 = vld [vmem:[%s4816 + $0x8] sm:%s4809]
                %4821 = vst [vmem:[%s4817 + $0x10] sm:%s4809] %v4820
                %v4822 = vld [vmem:[%s4816 + $0x10] sm:%s4809]
                %4823 = vst [vmem:[%s4817 + $0x20] sm:%s4809] %v4822
                %v4824 = vld [vmem:[%s4816 + $0x18] sm:%s4809]
                %4825 = vst [vmem:[%s4817 + $0x30] sm:%s4809] %v4824
                %v4826 = vld [vmem:[%s4816 + $0x20] sm:%s4809]
                %4827 = vst [vmem:[%s4817 + $0x40] sm:%s4809] %v4826
                %v4828 = vld [vmem:[%s4816 + $0x28] sm:%s4809]
                %4829 = vst [vmem:[%s4817 + $0x50] sm:%s4809] %v4828
              $region220: #{ms_layer_forward.1} parent=214 // loop_footer
                %s4815 = sadd.s32 1, %s4811
              $region221: #{ms_layer_forward.1} parent=214 // loop_footer_branch
                %4810 = sbr.rel target = $region217
              $region222: #{ms_layer_forward.1} parent=214 // loop_exit
                _
            $region215: #{ms_layer_forward.1} parent=206 // pred_fallthru
              _
          $region207: #{ms_layer_forward.1} parent=202 // pred_fallthru
            _
          %4854 = vnop
        $region203: #{ms_layer_forward.1} parent=144 // pred_fallthru
          _
      $region145: #{ms_layer_forward.1} parent=5 // pred_fallthru
        _
      %p4855 = scmp.le.s32.totalorder 2, %s14
      // Predicated region
      $region238: #{ms_layer_forward.1} parent=5 // pred_check
        %p4856 = pneg %p4855
      $region239: #{ms_layer_forward.1} parent=5 // pred_check_branch
        %4858 = sbr.rel (%p4856) target = $region241
      $region240: #{ms_layer_forward.1} parent=5 // pred_region
        %s4859 = ssub.s32 %s14, 2
        // Predicated region
        $region242: #{ms_layer_forward.1} parent=240 // pred_check
          %p4860 = pneg %p163
        $region243: #{ms_layer_forward.1} parent=240 // pred_check_branch
          %4862 = sbr.rel (%p4860) target = $region245
        $region244: #{ms_layer_forward.1} parent=240 // pred_region
          %s4863 = sand.u32 %s148, 1
          %s4864 = sand.u32 %s148, 1
          %s4865 = smul.addr %s4864, 1024
          %s4866 = scalar_lea.vmem [#allocation7], %s4865
        $region245: #{ms_layer_forward.1} parent=240 // pred_fallthru
          _
        // Predicated region
        $region246: #{ms_layer_forward.1} parent=240 // pred_check
          %p4867 = pneg %p189
        $region247: #{ms_layer_forward.1} parent=240 // pred_check_branch
          %4869 = sbr.rel (%p4867) target = $region249
        $region248: #{ms_layer_forward.1} parent=240 // pred_region
          %s4870 = sand.u32 %s174, 1
          %s4871 = sand.u32 %s174, 1
          %s4872 = smul.addr %s4871, 48
          %s4873 = scalar_lea.vmem [#allocation8], %s4872
        $region249: #{ms_layer_forward.1} parent=240 // pred_fallthru
          _
      $region241: #{ms_layer_forward.1} parent=5 // pred_fallthru
        _
    $region6: #{ms_layer_forward.1} parent=1 // loop_footer
      %s18 = sadd.s32 1, %s14
    $region7: #{ms_layer_forward.1} parent=1 // loop_footer_branch
      %13 = sbr.rel target = $region3
    $region8: #{ms_layer_forward.1} parent=1 // loop_exit
      _
    %4874 = vsyncpa [#allocation6], 1
    %s4875 = scalar_lea.sflag [#allocation6], 1
    %4876 = vsyncpa %s4875, 1

</llo_original>
